<compile_context>
chip_gen: v7x
topology: tpu7x:2x2x1
jax: 0.10.0
libtpu: 0.0.40
codegen_flags: <defaults>
</compile_context>

<pallas_src>
import jax
import jax.numpy as jnp
from jax.experimental import pallas as pl
from jax.experimental.pallas import tpu as pltpu

# ---------------- deterministic "config" -------------------------------------
DOF = 7
NC = 6
L0, L1 = 1.0, 2.0            # config.l
M0, M1, M2 = 1.0, 2.0, 3.0   # config.m
G = 9.8                      # config.g
DTYPE = jnp.float32

SUB, LANE = 8, 128           # one vreg = (8, 128) f32
SUBT = 4                     # sub-slabs (vreg rows) per grid step
BLOCK_SUB = SUB * SUBT       # 32 sublanes per grid step
TILE = BLOCK_SUB * LANE      # 4096 batch elements per grid step

M_VALS = (M0, M0, M0 * L0 ** 2 / 12.0, M1, M1, M1 * L1 ** 2 / 12.0, M2)
IM = tuple(1.0 / m for m in M_VALS)   # compile-time mass reciprocals


def _solve_slab(qqt_ref, o_ref, r):
    """Solve the DAE for one (8,128) sub-slab of the batch.

    qqt_ref: (2*DOF, BLOCK_SUB, LANE) rows 0..6 = q, 7..13 = qt
    o_ref:   (DOF+NC, BLOCK_SUB, LANE) rows 0..6 = qtt, 7..12 = lambda
    r:       static python slice over sublanes (size SUB)
    """
    q2 = qqt_ref[2, r, :]
    q5 = qqt_ref[5, r, :]
    qt2 = qqt_ref[DOF + 2, r, :]
    qt5 = qqt_ref[DOF + 5, r, :]

    s2, c2 = jnp.sin(q2), jnp.cos(q2)
    s5, c5 = jnp.sin(q5), jnp.cos(q5)

    # Non-trivial Jacobian entries (all other entries are literal 0 / 1).
    a = (L0 / 2.0) * s2      # J[0][2]
    b = (-L0 / 2.0) * c2     # J[1][2]
    c = L0 * s2              # J[2][2] == J[4][2]
    d = (L1 / 2.0) * s5      # J[2][5]
    e = -L0 * c2             # J[3][2]
    f = (-L1 / 2.0) * c5     # J[3][5]
    g = L1 * s5              # J[4][5]
    h = L0 * c2              # J[5][2]
    kk = L1 * c5             # J[5][5]

    im0, im1, im2, im3, im4, im5, im6 = IM
    ia, ib, ic, ie, ih = im2 * a, im2 * b, im2 * c, im2 * e, im2 * h
    idd, iff, ig, ik = im5 * d, im5 * f, im5 * g, im5 * kk

    # Hoisted common products (JAX tracing does not CSE these for us).
    icc = ic * c
    ice = ic * e
    ich = ic * h

    # ---- Schur complement A = J M^-1 J^T (6x6, symmetric; upper triangle) ----
    A = [[None] * NC for _ in range(NC)]
    A[0][0] = im0 + ia * a
    A[0][1] = ia * b
    A[0][2] = ia * c
    A[0][3] = ia * e
    A[0][4] = A[0][2]
    A[0][5] = ia * h

    A[1][1] = im1 + ib * b
    A[1][2] = ib * c
    A[1][3] = ib * e
    A[1][4] = A[1][2]
    A[1][5] = ib * h

    A[2][2] = icc + im3 + idd * d
    A[2][3] = ice + idd * f
    A[2][4] = icc + idd * g
    A[2][5] = ich + idd * kk

    A[3][3] = ie * e + im4 + iff * f
    A[3][4] = ice + iff * g
    A[3][5] = ie * h + iff * kk

    A[4][4] = icc + ig * g + im6
    A[4][5] = ich + ig * kk

    A[5][5] = ih * h + ik * kk

    # ---- rhs = J M^-1 F + phi_q_qt_q_qt  (M^-1 F = [0,-G,0,0,-G,0,0]) -------
    qt2s = qt2 * qt2
    qt5s = qt5 * qt5
    u = qt2s * (L0 * c2)
    v = qt2s * (L0 * s2)
    p = qt5s * (L1 * c5)
    rr = qt5s * (L1 * s5)
    rhs = [
        0.5 * u,
        0.5 * v - G,
        u + 0.5 * p,
        v + 0.5 * rr - G,
        u + p,
        -v - rr,
    ]

    # ---- symmetric unpivoted elimination on the 6x6 (upper triangle only) ---
    inv_piv = [None] * NC
    for kcol in range(NC):
        ip = 1.0 / A[kcol][kcol]
        inv_piv[kcol] = ip
        for i in range(kcol + 1, NC):
            fct = A[kcol][i] * ip        # == A[i][kcol] by symmetry
            for j in range(i, NC):
                A[i][j] = A[i][j] - fct * A[kcol][j]
            rhs[i] = rhs[i] - fct * rhs[kcol]

    lam = [None] * NC
    for i in reversed(range(NC)):
        s = rhs[i]
        for j in range(i + 1, NC):
            s = s - A[i][j] * lam[j]
        lam[i] = s * inv_piv[i]          # reuse stored reciprocal

    # ---- qtt = M^-1 (F - J^T lam), written row by row ------------------------
    jt2 = a * lam[0] + b * lam[1] + c * (lam[2] + lam[4]) + e * lam[3] + h * lam[5]
    jt5 = d * lam[2] + f * lam[3] + g * lam[4] + kk * lam[5]

    o_ref[0, r, :] = -im0 * lam[0]
    o_ref[1, r, :] = -G - im1 * lam[1]
    o_ref[2, r, :] = -im2 * jt2
    o_ref[3, r, :] = -im3 * lam[2]
    o_ref[4, r, :] = -G - im4 * lam[3]
    o_ref[5, r, :] = -im5 * jt5
    o_ref[6, r, :] = -im6 * lam[4]
    for i in range(NC):
        o_ref[DOF + i, r, :] = lam[i]


def dae_kernel(qqt_ref, o_ref):
    # Compile-time-unrolled loop over independent 8-sublane sub-slabs; each
    # iteration's working set is ~45 vregs, so no forced spilling.
    for t in range(SUBT):
        _solve_slab(qqt_ref, o_ref, slice(t * SUB, (t + 1) * SUB))


@jax.jit
def slider_crank_dae(t, coords):
    """Equivalent of DynamicSliderCrankDAE.forward(t, coords).

    t:      (bs,)  unused (matches F_Net semantics)
    coords: (bs, 2*DOF + NC) = (bs, 20)
    returns (bs, 20) = [qt, qtt, lambdas]
    """
    del t
    bs = coords.shape[0]
    coords = coords.astype(DTYPE)

    qqt = coords[:, :2 * DOF].T                       # (14, bs) single slab
    pad = (-bs) % TILE
    qqt_p = jnp.pad(qqt, ((0, 0), (0, pad)))
    bp = bs + pad
    nchunks = bp // LANE                              # multiple of BLOCK_SUB
    qqt_r = qqt_p.reshape(2 * DOF, nchunks, LANE)

    out = pl.pallas_call(
        dae_kernel,
        out_shape=jax.ShapeDtypeStruct((DOF + NC, nchunks, LANE), DTYPE),
        grid=(bp // TILE,),
        in_specs=[pl.BlockSpec((2 * DOF, BLOCK_SUB, LANE), lambda i: (0, i, 0))],
        out_specs=pl.BlockSpec((DOF + NC, BLOCK_SUB, LANE), lambda i: (0, i, 0)),
        compiler_params=pltpu.CompilerParams(
            dimension_semantics=("parallel",)),
    )(qqt_r)

    sol = out.reshape(DOF + NC, bp)[:, :bs].T         # (bs, 13) = [qtt, lam]
    qt = coords[:, DOF:2 * DOF]
    return jnp.concatenate([qt, sol], axis=-1)        # (bs, 20)


# ---------------- pure-JAX reference (mirrors the PyTorch forward) -----------
def reference(coords):
    coords = coords.astype(DTYPE)
    bs = coords.shape[0]
    q = coords[:, :DOF]
    qt = coords[:, DOF:2 * DOF]
    s2, c2 = jnp.sin(q[:, 2]), jnp.cos(q[:, 2])
    s5, c5 = jnp.sin(q[:, 5]), jnp.cos(q[:, 5])
    e0 = jnp.zeros(bs, DTYPE)
    e1 = jnp.ones(bs, DTYPE)
    phi_q = jnp.stack([
        jnp.stack([e1, e0, L0 * s2 / 2, e0, e0, e0, e0], -1),
        jnp.stack([e0, e1, -L0 * c2 / 2, e0, e0, e0, e0], -1),
        jnp.stack([e0, e0, L0 * s2, e1, e0, L1 * s5 / 2, e0], -1),
        jnp.stack([e0, e0, -L0 * c2, e0, e1, -L1 * c5 / 2, e0], -1),
        jnp.stack([e0, e0, L0 * s2, e0, e0, L1 * s5, e1], -1),
        jnp.stack([e0, e0, L0 * c2, e0, e0, L1 * c5, e0], -1),
    ], -2)                                                     # (bs, 6, 7)
    m_vals = jnp.array(M_VALS, DTYPE)
    M = jnp.broadcast_to(jnp.diag(m_vals), (bs, DOF, DOF))
    F = jnp.broadcast_to(jnp.array([0, -M0 * G, 0, 0, -M1 * G, 0, 0], DTYPE),
                         (bs, DOF))
    qt2s, qt5s = qt[:, 2] ** 2, qt[:, 5] ** 2
    pqq = jnp.stack([
        qt2s * L0 * c2 / 2, qt2s * L0 * s2 / 2,
        qt2s * L0 * c2 + qt5s * L1 * c5 / 2,
        qt2s * L0 * s2 + qt5s * L1 * s5 / 2,
        qt2s * L0 * c2 + qt5s * L1 * c5,
        -qt2s * L0 * s2 - qt5s * L1 * s5,
    ], -1)
    e00 = jnp.zeros((bs, NC, NC), DTYPE)
    Lmat = jnp.concatenate([
        jnp.concatenate([M, jnp.swapaxes(phi_q, 1, 2)], -1),
        jnp.concatenate([phi_q, e00], -1),
    ], 1)
    R = jnp.concatenate([F, -pqq], -1)
    sol = jnp.linalg.solve(Lmat, R[..., None]).squeeze(-1)
    return jnp.concatenate([qt, sol[:, :DOF], sol[:, DOF:]], -1)


if __name__ == "__main__":
    key = jax.random.PRNGKey(0)
    bs = 8
    coords = jax.random.normal(key, (bs, 2 * DOF + NC), dtype=DTYPE)  # (8, 20)
    t = jnp.zeros((bs,), dtype=DTYPE)

    out = slider_crank_dae(t, coords)
    out = jax.block_until_ready(out)

    ref = reference(coords)
    assert out.shape == (bs, 2 * DOF + NC)
    assert jnp.allclose(out, ref, rtol=5e-3, atol=5e-3), (
        f"max abs diff {jnp.max(jnp.abs(out - ref))}")
    print("KERNEL_OK")
</pallas_src>

<mosaic_0001>
module attributes {stable_mosaic.version = 11 : i64} {
  func.func @dae_kernel(%arg0: i32, %arg1: memref<14x32x128xf32, #tpu.memory_space<vmem>>, %arg2: memref<13x32x128xf32, #tpu.memory_space<vmem>>) attributes {dimension_semantics = [#tpu.dimension_semantics<parallel>], iteration_bounds = array<i64: 1>, scalar_prefetch = 0 : i64, scratch_operands = 0 : i64, tpu.core_type = #tpu.core_type<tc>, window_params = [{transform_indices = @transform_0, window_bounds = array<i64: 14, 32, 128>}, {transform_indices = @transform_1, window_bounds = array<i64: 13, 32, 128>}]} {
    %c2 = arith.constant 2 : index
    %c0 = arith.constant 0 : index
    %c0_0 = arith.constant 0 : index
    %0 = vector.load %arg1[%c2, %c0, %c0_0] : memref<14x32x128xf32, #tpu.memory_space<vmem>>, vector<1x8x128xf32>
    %1 = vector.shape_cast %0 : vector<1x8x128xf32> to vector<8x128xf32>
    %c5 = arith.constant 5 : index
    %c0_1 = arith.constant 0 : index
    %c0_2 = arith.constant 0 : index
    %2 = vector.load %arg1[%c5, %c0_1, %c0_2] : memref<14x32x128xf32, #tpu.memory_space<vmem>>, vector<1x8x128xf32>
    %3 = vector.shape_cast %2 : vector<1x8x128xf32> to vector<8x128xf32>
    %c9 = arith.constant 9 : index
    %c0_3 = arith.constant 0 : index
    %c0_4 = arith.constant 0 : index
    %4 = vector.load %arg1[%c9, %c0_3, %c0_4] : memref<14x32x128xf32, #tpu.memory_space<vmem>>, vector<1x8x128xf32>
    %5 = vector.shape_cast %4 : vector<1x8x128xf32> to vector<8x128xf32>
    %c12 = arith.constant 12 : index
    %c0_5 = arith.constant 0 : index
    %c0_6 = arith.constant 0 : index
    %6 = vector.load %arg1[%c12, %c0_5, %c0_6] : memref<14x32x128xf32, #tpu.memory_space<vmem>>, vector<1x8x128xf32>
    %7 = vector.shape_cast %6 : vector<1x8x128xf32> to vector<8x128xf32>
    %8 = math.sin %1 : vector<8x128xf32>
    %9 = math.cos %1 : vector<8x128xf32>
    %10 = math.sin %3 : vector<8x128xf32>
    %11 = math.cos %3 : vector<8x128xf32>
    %cst = arith.constant 5.000000e-01 : f32
    %12 = vector.broadcast %cst : f32 to vector<8x128xf32>
    %13 = arith.mulf %12, %8 : vector<8x128xf32>
    %cst_7 = arith.constant -5.000000e-01 : f32
    %14 = vector.broadcast %cst_7 : f32 to vector<8x128xf32>
    %15 = arith.mulf %14, %9 : vector<8x128xf32>
    %cst_8 = arith.constant 1.000000e+00 : f32
    %16 = vector.broadcast %cst_8 : f32 to vector<8x128xf32>
    %17 = arith.mulf %16, %8 : vector<8x128xf32>
    %cst_9 = arith.constant 1.000000e+00 : f32
    %18 = vector.broadcast %cst_9 : f32 to vector<8x128xf32>
    %19 = arith.mulf %18, %10 : vector<8x128xf32>
    %cst_10 = arith.constant -1.000000e+00 : f32
    %20 = vector.broadcast %cst_10 : f32 to vector<8x128xf32>
    %21 = arith.mulf %20, %9 : vector<8x128xf32>
    %cst_11 = arith.constant -1.000000e+00 : f32
    %22 = vector.broadcast %cst_11 : f32 to vector<8x128xf32>
    %23 = arith.mulf %22, %11 : vector<8x128xf32>
    %cst_12 = arith.constant 2.000000e+00 : f32
    %24 = vector.broadcast %cst_12 : f32 to vector<8x128xf32>
    %25 = arith.mulf %24, %10 : vector<8x128xf32>
    %cst_13 = arith.constant 1.000000e+00 : f32
    %26 = vector.broadcast %cst_13 : f32 to vector<8x128xf32>
    %27 = arith.mulf %26, %9 : vector<8x128xf32>
    %cst_14 = arith.constant 2.000000e+00 : f32
    %28 = vector.broadcast %cst_14 : f32 to vector<8x128xf32>
    %29 = arith.mulf %28, %11 : vector<8x128xf32>
    %cst_15 = arith.constant 1.200000e+01 : f32
    %30 = vector.broadcast %cst_15 : f32 to vector<8x128xf32>
    %31 = arith.mulf %30, %13 : vector<8x128xf32>
    %cst_16 = arith.constant 1.200000e+01 : f32
    %32 = vector.broadcast %cst_16 : f32 to vector<8x128xf32>
    %33 = arith.mulf %32, %15 : vector<8x128xf32>
    %cst_17 = arith.constant 1.200000e+01 : f32
    %34 = vector.broadcast %cst_17 : f32 to vector<8x128xf32>
    %35 = arith.mulf %34, %17 : vector<8x128xf32>
    %cst_18 = arith.constant 1.200000e+01 : f32
    %36 = vector.broadcast %cst_18 : f32 to vector<8x128xf32>
    %37 = arith.mulf %36, %21 : vector<8x128xf32>
    %cst_19 = arith.constant 1.200000e+01 : f32
    %38 = vector.broadcast %cst_19 : f32 to vector<8x128xf32>
    %39 = arith.mulf %38, %27 : vector<8x128xf32>
    %cst_20 = arith.constant 1.500000e+00 : f32
    %40 = vector.broadcast %cst_20 : f32 to vector<8x128xf32>
    %41 = arith.mulf %40, %19 : vector<8x128xf32>
    %cst_21 = arith.constant 1.500000e+00 : f32
    %42 = vector.broadcast %cst_21 : f32 to vector<8x128xf32>
    %43 = arith.mulf %42, %23 : vector<8x128xf32>
    %cst_22 = arith.constant 1.500000e+00 : f32
    %44 = vector.broadcast %cst_22 : f32 to vector<8x128xf32>
    %45 = arith.mulf %44, %25 : vector<8x128xf32>
    %cst_23 = arith.constant 1.500000e+00 : f32
    %46 = vector.broadcast %cst_23 : f32 to vector<8x128xf32>
    %47 = arith.mulf %46, %29 : vector<8x128xf32>
    %48 = arith.mulf %35, %17 : vector<8x128xf32>
    %49 = arith.mulf %35, %21 : vector<8x128xf32>
    %50 = arith.mulf %35, %27 : vector<8x128xf32>
    %51 = arith.mulf %31, %13 : vector<8x128xf32>
    %cst_24 = arith.constant 1.000000e+00 : f32
    %52 = vector.broadcast %cst_24 : f32 to vector<8x128xf32>
    %53 = arith.addf %52, %51 : vector<8x128xf32>
    %54 = arith.mulf %31, %15 : vector<8x128xf32>
    %55 = arith.mulf %31, %17 : vector<8x128xf32>
    %56 = arith.mulf %31, %21 : vector<8x128xf32>
    %57 = arith.mulf %31, %27 : vector<8x128xf32>
    %58 = arith.mulf %33, %15 : vector<8x128xf32>
    %cst_25 = arith.constant 1.000000e+00 : f32
    %59 = vector.broadcast %cst_25 : f32 to vector<8x128xf32>
    %60 = arith.addf %59, %58 : vector<8x128xf32>
    %61 = arith.mulf %33, %17 : vector<8x128xf32>
    %62 = arith.mulf %33, %21 : vector<8x128xf32>
    %63 = arith.mulf %33, %27 : vector<8x128xf32>
    %cst_26 = arith.constant 5.000000e-01 : f32
    %64 = vector.broadcast %cst_26 : f32 to vector<8x128xf32>
    %65 = arith.addf %48, %64 : vector<8x128xf32>
    %66 = arith.mulf %41, %19 : vector<8x128xf32>
    %67 = arith.addf %65, %66 : vector<8x128xf32>
    %68 = arith.mulf %41, %23 : vector<8x128xf32>
    %69 = arith.addf %49, %68 : vector<8x128xf32>
    %70 = arith.mulf %41, %25 : vector<8x128xf32>
    %71 = arith.addf %48, %70 : vector<8x128xf32>
    %72 = arith.mulf %41, %29 : vector<8x128xf32>
    %73 = arith.addf %50, %72 : vector<8x128xf32>
    %74 = arith.mulf %37, %21 : vector<8x128xf32>
    %cst_27 = arith.constant 5.000000e-01 : f32
    %75 = vector.broadcast %cst_27 : f32 to vector<8x128xf32>
    %76 = arith.addf %74, %75 : vector<8x128xf32>
    %77 = arith.mulf %43, %23 : vector<8x128xf32>
    %78 = arith.addf %76, %77 : vector<8x128xf32>
    %79 = arith.mulf %43, %25 : vector<8x128xf32>
    %80 = arith.addf %49, %79 : vector<8x128xf32>
    %81 = arith.mulf %37, %27 : vector<8x128xf32>
    %82 = arith.mulf %43, %29 : vector<8x128xf32>
    %83 = arith.addf %81, %82 : vector<8x128xf32>
    %84 = arith.mulf %45, %25 : vector<8x128xf32>
    %85 = arith.addf %48, %84 : vector<8x128xf32>
    %cst_28 = arith.constant 0.333333343 : f32
    %86 = vector.broadcast %cst_28 : f32 to vector<8x128xf32>
    %87 = arith.addf %85, %86 : vector<8x128xf32>
    %88 = arith.mulf %45, %29 : vector<8x128xf32>
    %89 = arith.addf %50, %88 : vector<8x128xf32>
    %90 = arith.mulf %39, %27 : vector<8x128xf32>
    %91 = arith.mulf %47, %29 : vector<8x128xf32>
    %92 = arith.addf %90, %91 : vector<8x128xf32>
    %93 = arith.mulf %5, %5 : vector<8x128xf32>
    %94 = arith.mulf %7, %7 : vector<8x128xf32>
    %cst_29 = arith.constant 1.000000e+00 : f32
    %95 = vector.broadcast %cst_29 : f32 to vector<8x128xf32>
    %96 = arith.mulf %95, %9 : vector<8x128xf32>
    %97 = arith.mulf %93, %96 : vector<8x128xf32>
    %cst_30 = arith.constant 1.000000e+00 : f32
    %98 = vector.broadcast %cst_30 : f32 to vector<8x128xf32>
    %99 = arith.mulf %98, %8 : vector<8x128xf32>
    %100 = arith.mulf %93, %99 : vector<8x128xf32>
    %cst_31 = arith.constant 2.000000e+00 : f32
    %101 = vector.broadcast %cst_31 : f32 to vector<8x128xf32>
    %102 = arith.mulf %101, %11 : vector<8x128xf32>
    %103 = arith.mulf %94, %102 : vector<8x128xf32>
    %cst_32 = arith.constant 2.000000e+00 : f32
    %104 = vector.broadcast %cst_32 : f32 to vector<8x128xf32>
    %105 = arith.mulf %104, %10 : vector<8x128xf32>
    %106 = arith.mulf %94, %105 : vector<8x128xf32>
    %cst_33 = arith.constant 5.000000e-01 : f32
    %107 = vector.broadcast %cst_33 : f32 to vector<8x128xf32>
    %108 = arith.mulf %107, %97 : vector<8x128xf32>
    %cst_34 = arith.constant 5.000000e-01 : f32
    %109 = vector.broadcast %cst_34 : f32 to vector<8x128xf32>
    %110 = arith.mulf %109, %100 : vector<8x128xf32>
    %cst_35 = arith.constant 9.800000e+00 : f32
    %111 = vector.broadcast %cst_35 : f32 to vector<8x128xf32>
    %112 = arith.subf %110, %111 : vector<8x128xf32>
    %cst_36 = arith.constant 5.000000e-01 : f32
    %113 = vector.broadcast %cst_36 : f32 to vector<8x128xf32>
    %114 = arith.mulf %113, %103 : vector<8x128xf32>
    %115 = arith.addf %97, %114 : vector<8x128xf32>
    %cst_37 = arith.constant 5.000000e-01 : f32
    %116 = vector.broadcast %cst_37 : f32 to vector<8x128xf32>
    %117 = arith.mulf %116, %106 : vector<8x128xf32>
    %118 = arith.addf %100, %117 : vector<8x128xf32>
    %cst_38 = arith.constant 9.800000e+00 : f32
    %119 = vector.broadcast %cst_38 : f32 to vector<8x128xf32>
    %120 = arith.subf %118, %119 : vector<8x128xf32>
    %121 = arith.addf %97, %103 : vector<8x128xf32>
    %cst_39 = arith.constant 0.000000e+00 : f32
    %122 = vector.broadcast %cst_39 : f32 to vector<8x128xf32>
    %123 = arith.subf %122, %100 : vector<8x128xf32>
    %124 = arith.subf %123, %106 : vector<8x128xf32>
    %cst_40 = arith.constant 1.000000e+00 : f32
    %125 = vector.broadcast %cst_40 : f32 to vector<8x128xf32>
    %126 = arith.divf %125, %53 : vector<8x128xf32>
    %127 = arith.mulf %54, %126 : vector<8x128xf32>
    %128 = arith.mulf %127, %54 : vector<8x128xf32>
    %129 = arith.subf %60, %128 : vector<8x128xf32>
    %130 = arith.mulf %127, %55 : vector<8x128xf32>
    %131 = arith.subf %61, %130 : vector<8x128xf32>
    %132 = arith.mulf %127, %56 : vector<8x128xf32>
    %133 = arith.subf %62, %132 : vector<8x128xf32>
    %134 = arith.mulf %127, %55 : vector<8x128xf32>
    %135 = arith.subf %61, %134 : vector<8x128xf32>
    %136 = arith.mulf %127, %57 : vector<8x128xf32>
    %137 = arith.subf %63, %136 : vector<8x128xf32>
    %138 = arith.mulf %127, %108 : vector<8x128xf32>
    %139 = arith.subf %112, %138 : vector<8x128xf32>
    %140 = arith.mulf %55, %126 : vector<8x128xf32>
    %141 = arith.mulf %140, %55 : vector<8x128xf32>
    %142 = arith.subf %67, %141 : vector<8x128xf32>
    %143 = arith.mulf %140, %56 : vector<8x128xf32>
    %144 = arith.subf %69, %143 : vector<8x128xf32>
    %145 = arith.mulf %140, %55 : vector<8x128xf32>
    %146 = arith.subf %71, %145 : vector<8x128xf32>
    %147 = arith.mulf %140, %57 : vector<8x128xf32>
    %148 = arith.subf %73, %147 : vector<8x128xf32>
    %149 = arith.mulf %140, %108 : vector<8x128xf32>
    %150 = arith.subf %115, %149 : vector<8x128xf32>
    %151 = arith.mulf %56, %126 : vector<8x128xf32>
    %152 = arith.mulf %151, %56 : vector<8x128xf32>
    %153 = arith.subf %78, %152 : vector<8x128xf32>
    %154 = arith.mulf %151, %55 : vector<8x128xf32>
    %155 = arith.subf %80, %154 : vector<8x128xf32>
    %156 = arith.mulf %151, %57 : vector<8x128xf32>
    %157 = arith.subf %83, %156 : vector<8x128xf32>
    %158 = arith.mulf %151, %108 : vector<8x128xf32>
    %159 = arith.subf %120, %158 : vector<8x128xf32>
    %160 = arith.mulf %55, %126 : vector<8x128xf32>
    %161 = arith.mulf %160, %55 : vector<8x128xf32>
    %162 = arith.subf %87, %161 : vector<8x128xf32>
    %163 = arith.mulf %160, %57 : vector<8x128xf32>
    %164 = arith.subf %89, %163 : vector<8x128xf32>
    %165 = arith.mulf %160, %108 : vector<8x128xf32>
    %166 = arith.subf %121, %165 : vector<8x128xf32>
    %167 = arith.mulf %57, %126 : vector<8x128xf32>
    %168 = arith.mulf %167, %57 : vector<8x128xf32>
    %169 = arith.subf %92, %168 : vector<8x128xf32>
    %170 = arith.mulf %167, %108 : vector<8x128xf32>
    %171 = arith.subf %124, %170 : vector<8x128xf32>
    %cst_41 = arith.constant 1.000000e+00 : f32
    %172 = vector.broadcast %cst_41 : f32 to vector<8x128xf32>
    %173 = arith.divf %172, %129 : vector<8x128xf32>
    %174 = arith.mulf %131, %173 : vector<8x128xf32>
    %175 = arith.mulf %174, %131 : vector<8x128xf32>
    %176 = arith.subf %142, %175 : vector<8x128xf32>
    %177 = arith.mulf %174, %133 : vector<8x128xf32>
    %178 = arith.subf %144, %177 : vector<8x128xf32>
    %179 = arith.mulf %174, %135 : vector<8x128xf32>
    %180 = arith.subf %146, %179 : vector<8x128xf32>
    %181 = arith.mulf %174, %137 : vector<8x128xf32>
    %182 = arith.subf %148, %181 : vector<8x128xf32>
    %183 = arith.mulf %174, %139 : vector<8x128xf32>
    %184 = arith.subf %150, %183 : vector<8x128xf32>
    %185 = arith.mulf %133, %173 : vector<8x128xf32>
    %186 = arith.mulf %185, %133 : vector<8x128xf32>
    %187 = arith.subf %153, %186 : vector<8x128xf32>
    %188 = arith.mulf %185, %135 : vector<8x128xf32>
    %189 = arith.subf %155, %188 : vector<8x128xf32>
    %190 = arith.mulf %185, %137 : vector<8x128xf32>
    %191 = arith.subf %157, %190 : vector<8x128xf32>
    %192 = arith.mulf %185, %139 : vector<8x128xf32>
    %193 = arith.subf %159, %192 : vector<8x128xf32>
    %194 = arith.mulf %135, %173 : vector<8x128xf32>
    %195 = arith.mulf %194, %135 : vector<8x128xf32>
    %196 = arith.subf %162, %195 : vector<8x128xf32>
    %197 = arith.mulf %194, %137 : vector<8x128xf32>
    %198 = arith.subf %164, %197 : vector<8x128xf32>
    %199 = arith.mulf %194, %139 : vector<8x128xf32>
    %200 = arith.subf %166, %199 : vector<8x128xf32>
    %201 = arith.mulf %137, %173 : vector<8x128xf32>
    %202 = arith.mulf %201, %137 : vector<8x128xf32>
    %203 = arith.subf %169, %202 : vector<8x128xf32>
    %204 = arith.mulf %201, %139 : vector<8x128xf32>
    %205 = arith.subf %171, %204 : vector<8x128xf32>
    %cst_42 = arith.constant 1.000000e+00 : f32
    %206 = vector.broadcast %cst_42 : f32 to vector<8x128xf32>
    %207 = arith.divf %206, %176 : vector<8x128xf32>
    %208 = arith.mulf %178, %207 : vector<8x128xf32>
    %209 = arith.mulf %208, %178 : vector<8x128xf32>
    %210 = arith.subf %187, %209 : vector<8x128xf32>
    %211 = arith.mulf %208, %180 : vector<8x128xf32>
    %212 = arith.subf %189, %211 : vector<8x128xf32>
    %213 = arith.mulf %208, %182 : vector<8x128xf32>
    %214 = arith.subf %191, %213 : vector<8x128xf32>
    %215 = arith.mulf %208, %184 : vector<8x128xf32>
    %216 = arith.subf %193, %215 : vector<8x128xf32>
    %217 = arith.mulf %180, %207 : vector<8x128xf32>
    %218 = arith.mulf %217, %180 : vector<8x128xf32>
    %219 = arith.subf %196, %218 : vector<8x128xf32>
    %220 = arith.mulf %217, %182 : vector<8x128xf32>
    %221 = arith.subf %198, %220 : vector<8x128xf32>
    %222 = arith.mulf %217, %184 : vector<8x128xf32>
    %223 = arith.subf %200, %222 : vector<8x128xf32>
    %224 = arith.mulf %182, %207 : vector<8x128xf32>
    %225 = arith.mulf %224, %182 : vector<8x128xf32>
    %226 = arith.subf %203, %225 : vector<8x128xf32>
    %227 = arith.mulf %224, %184 : vector<8x128xf32>
    %228 = arith.subf %205, %227 : vector<8x128xf32>
    %cst_43 = arith.constant 1.000000e+00 : f32
    %229 = vector.broadcast %cst_43 : f32 to vector<8x128xf32>
    %230 = arith.divf %229, %210 : vector<8x128xf32>
    %231 = arith.mulf %212, %230 : vector<8x128xf32>
    %232 = arith.mulf %231, %212 : vector<8x128xf32>
    %233 = arith.subf %219, %232 : vector<8x128xf32>
    %234 = arith.mulf %231, %214 : vector<8x128xf32>
    %235 = arith.subf %221, %234 : vector<8x128xf32>
    %236 = arith.mulf %231, %216 : vector<8x128xf32>
    %237 = arith.subf %223, %236 : vector<8x128xf32>
    %238 = arith.mulf %214, %230 : vector<8x128xf32>
    %239 = arith.mulf %238, %214 : vector<8x128xf32>
    %240 = arith.subf %226, %239 : vector<8x128xf32>
    %241 = arith.mulf %238, %216 : vector<8x128xf32>
    %242 = arith.subf %228, %241 : vector<8x128xf32>
    %cst_44 = arith.constant 1.000000e+00 : f32
    %243 = vector.broadcast %cst_44 : f32 to vector<8x128xf32>
    %244 = arith.divf %243, %233 : vector<8x128xf32>
    %245 = arith.mulf %235, %244 : vector<8x128xf32>
    %246 = arith.mulf %245, %235 : vector<8x128xf32>
    %247 = arith.subf %240, %246 : vector<8x128xf32>
    %248 = arith.mulf %245, %237 : vector<8x128xf32>
    %249 = arith.subf %242, %248 : vector<8x128xf32>
    %cst_45 = arith.constant 1.000000e+00 : f32
    %250 = vector.broadcast %cst_45 : f32 to vector<8x128xf32>
    %251 = arith.divf %250, %247 : vector<8x128xf32>
    %252 = arith.mulf %249, %251 : vector<8x128xf32>
    %253 = arith.mulf %235, %252 : vector<8x128xf32>
    %254 = arith.subf %237, %253 : vector<8x128xf32>
    %255 = arith.mulf %254, %244 : vector<8x128xf32>
    %256 = arith.mulf %212, %255 : vector<8x128xf32>
    %257 = arith.subf %216, %256 : vector<8x128xf32>
    %258 = arith.mulf %214, %252 : vector<8x128xf32>
    %259 = arith.subf %257, %258 : vector<8x128xf32>
    %260 = arith.mulf %259, %230 : vector<8x128xf32>
    %261 = arith.mulf %178, %260 : vector<8x128xf32>
    %262 = arith.subf %184, %261 : vector<8x128xf32>
    %263 = arith.mulf %180, %255 : vector<8x128xf32>
    %264 = arith.subf %262, %263 : vector<8x128xf32>
    %265 = arith.mulf %182, %252 : vector<8x128xf32>
    %266 = arith.subf %264, %265 : vector<8x128xf32>
    %267 = arith.mulf %266, %207 : vector<8x128xf32>
    %268 = arith.mulf %131, %267 : vector<8x128xf32>
    %269 = arith.subf %139, %268 : vector<8x128xf32>
    %270 = arith.mulf %133, %260 : vector<8x128xf32>
    %271 = arith.subf %269, %270 : vector<8x128xf32>
    %272 = arith.mulf %135, %255 : vector<8x128xf32>
    %273 = arith.subf %271, %272 : vector<8x128xf32>
    %274 = arith.mulf %137, %252 : vector<8x128xf32>
    %275 = arith.subf %273, %274 : vector<8x128xf32>
    %276 = arith.mulf %275, %173 : vector<8x128xf32>
    %277 = arith.mulf %54, %276 : vector<8x128xf32>
    %278 = arith.subf %108, %277 : vector<8x128xf32>
    %279 = arith.mulf %55, %267 : vector<8x128xf32>
    %280 = arith.subf %278, %279 : vector<8x128xf32>
    %281 = arith.mulf %56, %260 : vector<8x128xf32>
    %282 = arith.subf %280, %281 : vector<8x128xf32>
    %283 = arith.mulf %55, %255 : vector<8x128xf32>
    %284 = arith.subf %282, %283 : vector<8x128xf32>
    %285 = arith.mulf %57, %252 : vector<8x128xf32>
    %286 = arith.subf %284, %285 : vector<8x128xf32>
    %287 = arith.mulf %286, %126 : vector<8x128xf32>
    %288 = arith.mulf %13, %287 : vector<8x128xf32>
    %289 = arith.mulf %15, %276 : vector<8x128xf32>
    %290 = arith.addf %288, %289 : vector<8x128xf32>
    %291 = arith.addf %267, %255 : vector<8x128xf32>
    %292 = arith.mulf %17, %291 : vector<8x128xf32>
    %293 = arith.addf %290, %292 : vector<8x128xf32>
    %294 = arith.mulf %21, %260 : vector<8x128xf32>
    %295 = arith.addf %293, %294 : vector<8x128xf32>
    %296 = arith.mulf %27, %252 : vector<8x128xf32>
    %297 = arith.addf %295, %296 : vector<8x128xf32>
    %298 = arith.mulf %19, %267 : vector<8x128xf32>
    %299 = arith.mulf %23, %260 : vector<8x128xf32>
    %300 = arith.addf %298, %299 : vector<8x128xf32>
    %301 = arith.mulf %25, %255 : vector<8x128xf32>
    %302 = arith.addf %300, %301 : vector<8x128xf32>
    %303 = arith.mulf %29, %252 : vector<8x128xf32>
    %304 = arith.addf %302, %303 : vector<8x128xf32>
    %cst_46 = arith.constant -1.000000e+00 : f32
    %305 = vector.broadcast %cst_46 : f32 to vector<8x128xf32>
    %306 = arith.mulf %305, %287 : vector<8x128xf32>
    %c0_47 = arith.constant 0 : index
    %c0_48 = arith.constant 0 : index
    %c0_49 = arith.constant 0 : index
    %307 = vector.load %arg2[%c0_47, %c0_48, %c0_49] : memref<13x32x128xf32, #tpu.memory_space<vmem>>, vector<1x8x128xf32>
    %308 = vector.shape_cast %307 : vector<1x8x128xf32> to vector<8x128xf32>
    %309 = vector.shape_cast %306 : vector<8x128xf32> to vector<1x8x128xf32>
    tpu.vector_store %arg2[%c0_47, %c0_48, %c0_49], %309 {strides = array<i32>} : memref<13x32x128xf32, #tpu.memory_space<vmem>>, vector<1x8x128xf32>,
    %cst_50 = arith.constant 1.000000e+00 : f32
    %310 = vector.broadcast %cst_50 : f32 to vector<8x128xf32>
    %311 = arith.mulf %310, %276 : vector<8x128xf32>
    %cst_51 = arith.constant -9.800000e+00 : f32
    %312 = vector.broadcast %cst_51 : f32 to vector<8x128xf32>
    %313 = arith.subf %312, %311 : vector<8x128xf32>
    %c1 = arith.constant 1 : index
    %c0_52 = arith.constant 0 : index
    %c0_53 = arith.constant 0 : index
    %314 = vector.load %arg2[%c1, %c0_52, %c0_53] : memref<13x32x128xf32, #tpu.memory_space<vmem>>, vector<1x8x128xf32>
    %315 = vector.shape_cast %314 : vector<1x8x128xf32> to vector<8x128xf32>
    %316 = vector.shape_cast %313 : vector<8x128xf32> to vector<1x8x128xf32>
    tpu.vector_store %arg2[%c1, %c0_52, %c0_53], %316 {strides = array<i32>} : memref<13x32x128xf32, #tpu.memory_space<vmem>>, vector<1x8x128xf32>,
    %cst_54 = arith.constant -1.200000e+01 : f32
    %317 = vector.broadcast %cst_54 : f32 to vector<8x128xf32>
    %318 = arith.mulf %317, %297 : vector<8x128xf32>
    %c2_55 = arith.constant 2 : index
    %c0_56 = arith.constant 0 : index
    %c0_57 = arith.constant 0 : index
    %319 = vector.load %arg2[%c2_55, %c0_56, %c0_57] : memref<13x32x128xf32, #tpu.memory_space<vmem>>, vector<1x8x128xf32>
    %320 = vector.shape_cast %319 : vector<1x8x128xf32> to vector<8x128xf32>
    %321 = vector.shape_cast %318 : vector<8x128xf32> to vector<1x8x128xf32>
    tpu.vector_store %arg2[%c2_55, %c0_56, %c0_57], %321 {strides = array<i32>} : memref<13x32x128xf32, #tpu.memory_space<vmem>>, vector<1x8x128xf32>,
    %cst_58 = arith.constant -5.000000e-01 : f32
    %322 = vector.broadcast %cst_58 : f32 to vector<8x128xf32>
    %323 = arith.mulf %322, %267 : vector<8x128xf32>
    %c3 = arith.constant 3 : index
    %c0_59 = arith.constant 0 : index
    %c0_60 = arith.constant 0 : index
    %324 = vector.load %arg2[%c3, %c0_59, %c0_60] : memref<13x32x128xf32, #tpu.memory_space<vmem>>, vector<1x8x128xf32>
    %325 = vector.shape_cast %324 : vector<1x8x128xf32> to vector<8x128xf32>
    %326 = vector.shape_cast %323 : vector<8x128xf32> to vector<1x8x128xf32>
    tpu.vector_store %arg2[%c3, %c0_59, %c0_60], %326 {strides = array<i32>} : memref<13x32x128xf32, #tpu.memory_space<vmem>>, vector<1x8x128xf32>,
    %cst_61 = arith.constant 5.000000e-01 : f32
    %327 = vector.broadcast %cst_61 : f32 to vector<8x128xf32>
    %328 = arith.mulf %327, %260 : vector<8x128xf32>
    %cst_62 = arith.constant -9.800000e+00 : f32
    %329 = vector.broadcast %cst_62 : f32 to vector<8x128xf32>
    %330 = arith.subf %329, %328 : vector<8x128xf32>
    %c4 = arith.constant 4 : index
    %c0_63 = arith.constant 0 : index
    %c0_64 = arith.constant 0 : index
    %331 = vector.load %arg2[%c4, %c0_63, %c0_64] : memref<13x32x128xf32, #tpu.memory_space<vmem>>, vector<1x8x128xf32>
    %332 = vector.shape_cast %331 : vector<1x8x128xf32> to vector<8x128xf32>
    %333 = vector.shape_cast %330 : vector<8x128xf32> to vector<1x8x128xf32>
    tpu.vector_store %arg2[%c4, %c0_63, %c0_64], %333 {strides = array<i32>} : memref<13x32x128xf32, #tpu.memory_space<vmem>>, vector<1x8x128xf32>,
    %cst_65 = arith.constant -1.500000e+00 : f32
    %334 = vector.broadcast %cst_65 : f32 to vector<8x128xf32>
    %335 = arith.mulf %334, %304 : vector<8x128xf32>
    %c5_66 = arith.constant 5 : index
    %c0_67 = arith.constant 0 : index
    %c0_68 = arith.constant 0 : index
    %336 = vector.load %arg2[%c5_66, %c0_67, %c0_68] : memref<13x32x128xf32, #tpu.memory_space<vmem>>, vector<1x8x128xf32>
    %337 = vector.shape_cast %336 : vector<1x8x128xf32> to vector<8x128xf32>
    %338 = vector.shape_cast %335 : vector<8x128xf32> to vector<1x8x128xf32>
    tpu.vector_store %arg2[%c5_66, %c0_67, %c0_68], %338 {strides = array<i32>} : memref<13x32x128xf32, #tpu.memory_space<vmem>>, vector<1x8x128xf32>,
    %cst_69 = arith.constant -0.333333343 : f32
    %339 = vector.broadcast %cst_69 : f32 to vector<8x128xf32>
    %340 = arith.mulf %339, %255 : vector<8x128xf32>
    %c6 = arith.constant 6 : index
    %c0_70 = arith.constant 0 : index
    %c0_71 = arith.constant 0 : index
    %341 = vector.load %arg2[%c6, %c0_70, %c0_71] : memref<13x32x128xf32, #tpu.memory_space<vmem>>, vector<1x8x128xf32>
    %342 = vector.shape_cast %341 : vector<1x8x128xf32> to vector<8x128xf32>
    %343 = vector.shape_cast %340 : vector<8x128xf32> to vector<1x8x128xf32>
    tpu.vector_store %arg2[%c6, %c0_70, %c0_71], %343 {strides = array<i32>} : memref<13x32x128xf32, #tpu.memory_space<vmem>>, vector<1x8x128xf32>,
    %c7 = arith.constant 7 : index
    %c0_72 = arith.constant 0 : index
    %c0_73 = arith.constant 0 : index
    %344 = vector.load %arg2[%c7, %c0_72, %c0_73] : memref<13x32x128xf32, #tpu.memory_space<vmem>>, vector<1x8x128xf32>
    %345 = vector.shape_cast %344 : vector<1x8x128xf32> to vector<8x128xf32>
    %346 = vector.shape_cast %287 : vector<8x128xf32> to vector<1x8x128xf32>
    tpu.vector_store %arg2[%c7, %c0_72, %c0_73], %346 {strides = array<i32>} : memref<13x32x128xf32, #tpu.memory_space<vmem>>, vector<1x8x128xf32>,
    %c8 = arith.constant 8 : index
    %c0_74 = arith.constant 0 : index
    %c0_75 = arith.constant 0 : index
    %347 = vector.load %arg2[%c8, %c0_74, %c0_75] : memref<13x32x128xf32, #tpu.memory_space<vmem>>, vector<1x8x128xf32>
    %348 = vector.shape_cast %347 : vector<1x8x128xf32> to vector<8x128xf32>
    %349 = vector.shape_cast %276 : vector<8x128xf32> to vector<1x8x128xf32>
    tpu.vector_store %arg2[%c8, %c0_74, %c0_75], %349 {strides = array<i32>} : memref<13x32x128xf32, #tpu.memory_space<vmem>>, vector<1x8x128xf32>,
    %c9_76 = arith.constant 9 : index
    %c0_77 = arith.constant 0 : index
    %c0_78 = arith.constant 0 : index
    %350 = vector.load %arg2[%c9_76, %c0_77, %c0_78] : memref<13x32x128xf32, #tpu.memory_space<vmem>>, vector<1x8x128xf32>
    %351 = vector.shape_cast %350 : vector<1x8x128xf32> to vector<8x128xf32>
    %352 = vector.shape_cast %267 : vector<8x128xf32> to vector<1x8x128xf32>
    tpu.vector_store %arg2[%c9_76, %c0_77, %c0_78], %352 {strides = array<i32>} : memref<13x32x128xf32, #tpu.memory_space<vmem>>, vector<1x8x128xf32>,
    %c10 = arith.constant 10 : index
    %c0_79 = arith.constant 0 : index
    %c0_80 = arith.constant 0 : index
    %353 = vector.load %arg2[%c10, %c0_79, %c0_80] : memref<13x32x128xf32, #tpu.memory_space<vmem>>, vector<1x8x128xf32>
    %354 = vector.shape_cast %353 : vector<1x8x128xf32> to vector<8x128xf32>
    %355 = vector.shape_cast %260 : vector<8x128xf32> to vector<1x8x128xf32>
    tpu.vector_store %arg2[%c10, %c0_79, %c0_80], %355 {strides = array<i32>} : memref<13x32x128xf32, #tpu.memory_space<vmem>>, vector<1x8x128xf32>,
    %c11 = arith.constant 11 : index
    %c0_81 = arith.constant 0 : index
    %c0_82 = arith.constant 0 : index
    %356 = vector.load %arg2[%c11, %c0_81, %c0_82] : memref<13x32x128xf32, #tpu.memory_space<vmem>>, vector<1x8x128xf32>
    %357 = vector.shape_cast %356 : vector<1x8x128xf32> to vector<8x128xf32>
    %358 = vector.shape_cast %255 : vector<8x128xf32> to vector<1x8x128xf32>
    tpu.vector_store %arg2[%c11, %c0_81, %c0_82], %358 {strides = array<i32>} : memref<13x32x128xf32, #tpu.memory_space<vmem>>, vector<1x8x128xf32>,
    %c12_83 = arith.constant 12 : index
    %c0_84 = arith.constant 0 : index
    %c0_85 = arith.constant 0 : index
    %359 = vector.load %arg2[%c12_83, %c0_84, %c0_85] : memref<13x32x128xf32, #tpu.memory_space<vmem>>, vector<1x8x128xf32>
    %360 = vector.shape_cast %359 : vector<1x8x128xf32> to vector<8x128xf32>
    %361 = vector.shape_cast %252 : vector<8x128xf32> to vector<1x8x128xf32>
    tpu.vector_store %arg2[%c12_83, %c0_84, %c0_85], %361 {strides = array<i32>} : memref<13x32x128xf32, #tpu.memory_space<vmem>>, vector<1x8x128xf32>,
    %c2_86 = arith.constant 2 : index
    %c8_87 = arith.constant 8 : index
    %c0_88 = arith.constant 0 : index
    %362 = vector.load %arg1[%c2_86, %c8_87, %c0_88] : memref<14x32x128xf32, #tpu.memory_space<vmem>>, vector<1x8x128xf32>
    %363 = vector.shape_cast %362 : vector<1x8x128xf32> to vector<8x128xf32>
    %c5_89 = arith.constant 5 : index
    %c8_90 = arith.constant 8 : index
    %c0_91 = arith.constant 0 : index
    %364 = vector.load %arg1[%c5_89, %c8_90, %c0_91] : memref<14x32x128xf32, #tpu.memory_space<vmem>>, vector<1x8x128xf32>
    %365 = vector.shape_cast %364 : vector<1x8x128xf32> to vector<8x128xf32>
    %c9_92 = arith.constant 9 : index
    %c8_93 = arith.constant 8 : index
    %c0_94 = arith.constant 0 : index
    %366 = vector.load %arg1[%c9_92, %c8_93, %c0_94] : memref<14x32x128xf32, #tpu.memory_space<vmem>>, vector<1x8x128xf32>
    %367 = vector.shape_cast %366 : vector<1x8x128xf32> to vector<8x128xf32>
    %c12_95 = arith.constant 12 : index
    %c8_96 = arith.constant 8 : index
    %c0_97 = arith.constant 0 : index
    %368 = vector.load %arg1[%c12_95, %c8_96, %c0_97] : memref<14x32x128xf32, #tpu.memory_space<vmem>>, vector<1x8x128xf32>
    %369 = vector.shape_cast %368 : vector<1x8x128xf32> to vector<8x128xf32>
    %370 = math.sin %363 : vector<8x128xf32>
    %371 = math.cos %363 : vector<8x128xf32>
    %372 = math.sin %365 : vector<8x128xf32>
    %373 = math.cos %365 : vector<8x128xf32>
    %cst_98 = arith.constant 5.000000e-01 : f32
    %374 = vector.broadcast %cst_98 : f32 to vector<8x128xf32>
    %375 = arith.mulf %374, %370 : vector<8x128xf32>
    %cst_99 = arith.constant -5.000000e-01 : f32
    %376 = vector.broadcast %cst_99 : f32 to vector<8x128xf32>
    %377 = arith.mulf %376, %371 : vector<8x128xf32>
    %cst_100 = arith.constant 1.000000e+00 : f32
    %378 = vector.broadcast %cst_100 : f32 to vector<8x128xf32>
    %379 = arith.mulf %378, %370 : vector<8x128xf32>
    %cst_101 = arith.constant 1.000000e+00 : f32
    %380 = vector.broadcast %cst_101 : f32 to vector<8x128xf32>
    %381 = arith.mulf %380, %372 : vector<8x128xf32>
    %cst_102 = arith.constant -1.000000e+00 : f32
    %382 = vector.broadcast %cst_102 : f32 to vector<8x128xf32>
    %383 = arith.mulf %382, %371 : vector<8x128xf32>
    %cst_103 = arith.constant -1.000000e+00 : f32
    %384 = vector.broadcast %cst_103 : f32 to vector<8x128xf32>
    %385 = arith.mulf %384, %373 : vector<8x128xf32>
    %cst_104 = arith.constant 2.000000e+00 : f32
    %386 = vector.broadcast %cst_104 : f32 to vector<8x128xf32>
    %387 = arith.mulf %386, %372 : vector<8x128xf32>
    %cst_105 = arith.constant 1.000000e+00 : f32
    %388 = vector.broadcast %cst_105 : f32 to vector<8x128xf32>
    %389 = arith.mulf %388, %371 : vector<8x128xf32>
    %cst_106 = arith.constant 2.000000e+00 : f32
    %390 = vector.broadcast %cst_106 : f32 to vector<8x128xf32>
    %391 = arith.mulf %390, %373 : vector<8x128xf32>
    %cst_107 = arith.constant 1.200000e+01 : f32
    %392 = vector.broadcast %cst_107 : f32 to vector<8x128xf32>
    %393 = arith.mulf %392, %375 : vector<8x128xf32>
    %cst_108 = arith.constant 1.200000e+01 : f32
    %394 = vector.broadcast %cst_108 : f32 to vector<8x128xf32>
    %395 = arith.mulf %394, %377 : vector<8x128xf32>
    %cst_109 = arith.constant 1.200000e+01 : f32
    %396 = vector.broadcast %cst_109 : f32 to vector<8x128xf32>
    %397 = arith.mulf %396, %379 : vector<8x128xf32>
    %cst_110 = arith.constant 1.200000e+01 : f32
    %398 = vector.broadcast %cst_110 : f32 to vector<8x128xf32>
    %399 = arith.mulf %398, %383 : vector<8x128xf32>
    %cst_111 = arith.constant 1.200000e+01 : f32
    %400 = vector.broadcast %cst_111 : f32 to vector<8x128xf32>
    %401 = arith.mulf %400, %389 : vector<8x128xf32>
    %cst_112 = arith.constant 1.500000e+00 : f32
    %402 = vector.broadcast %cst_112 : f32 to vector<8x128xf32>
    %403 = arith.mulf %402, %381 : vector<8x128xf32>
    %cst_113 = arith.constant 1.500000e+00 : f32
    %404 = vector.broadcast %cst_113 : f32 to vector<8x128xf32>
    %405 = arith.mulf %404, %385 : vector<8x128xf32>
    %cst_114 = arith.constant 1.500000e+00 : f32
    %406 = vector.broadcast %cst_114 : f32 to vector<8x128xf32>
    %407 = arith.mulf %406, %387 : vector<8x128xf32>
    %cst_115 = arith.constant 1.500000e+00 : f32
    %408 = vector.broadcast %cst_115 : f32 to vector<8x128xf32>
    %409 = arith.mulf %408, %391 : vector<8x128xf32>
    %410 = arith.mulf %397, %379 : vector<8x128xf32>
    %411 = arith.mulf %397, %383 : vector<8x128xf32>
    %412 = arith.mulf %397, %389 : vector<8x128xf32>
    %413 = arith.mulf %393, %375 : vector<8x128xf32>
    %cst_116 = arith.constant 1.000000e+00 : f32
    %414 = vector.broadcast %cst_116 : f32 to vector<8x128xf32>
    %415 = arith.addf %414, %413 : vector<8x128xf32>
    %416 = arith.mulf %393, %377 : vector<8x128xf32>
    %417 = arith.mulf %393, %379 : vector<8x128xf32>
    %418 = arith.mulf %393, %383 : vector<8x128xf32>
    %419 = arith.mulf %393, %389 : vector<8x128xf32>
    %420 = arith.mulf %395, %377 : vector<8x128xf32>
    %cst_117 = arith.constant 1.000000e+00 : f32
    %421 = vector.broadcast %cst_117 : f32 to vector<8x128xf32>
    %422 = arith.addf %421, %420 : vector<8x128xf32>
    %423 = arith.mulf %395, %379 : vector<8x128xf32>
    %424 = arith.mulf %395, %383 : vector<8x128xf32>
    %425 = arith.mulf %395, %389 : vector<8x128xf32>
    %cst_118 = arith.constant 5.000000e-01 : f32
    %426 = vector.broadcast %cst_118 : f32 to vector<8x128xf32>
    %427 = arith.addf %410, %426 : vector<8x128xf32>
    %428 = arith.mulf %403, %381 : vector<8x128xf32>
    %429 = arith.addf %427, %428 : vector<8x128xf32>
    %430 = arith.mulf %403, %385 : vector<8x128xf32>
    %431 = arith.addf %411, %430 : vector<8x128xf32>
    %432 = arith.mulf %403, %387 : vector<8x128xf32>
    %433 = arith.addf %410, %432 : vector<8x128xf32>
    %434 = arith.mulf %403, %391 : vector<8x128xf32>
    %435 = arith.addf %412, %434 : vector<8x128xf32>
    %436 = arith.mulf %399, %383 : vector<8x128xf32>
    %cst_119 = arith.constant 5.000000e-01 : f32
    %437 = vector.broadcast %cst_119 : f32 to vector<8x128xf32>
    %438 = arith.addf %436, %437 : vector<8x128xf32>
    %439 = arith.mulf %405, %385 : vector<8x128xf32>
    %440 = arith.addf %438, %439 : vector<8x128xf32>
    %441 = arith.mulf %405, %387 : vector<8x128xf32>
    %442 = arith.addf %411, %441 : vector<8x128xf32>
    %443 = arith.mulf %399, %389 : vector<8x128xf32>
    %444 = arith.mulf %405, %391 : vector<8x128xf32>
    %445 = arith.addf %443, %444 : vector<8x128xf32>
    %446 = arith.mulf %407, %387 : vector<8x128xf32>
    %447 = arith.addf %410, %446 : vector<8x128xf32>
    %cst_120 = arith.constant 0.333333343 : f32
    %448 = vector.broadcast %cst_120 : f32 to vector<8x128xf32>
    %449 = arith.addf %447, %448 : vector<8x128xf32>
    %450 = arith.mulf %407, %391 : vector<8x128xf32>
    %451 = arith.addf %412, %450 : vector<8x128xf32>
    %452 = arith.mulf %401, %389 : vector<8x128xf32>
    %453 = arith.mulf %409, %391 : vector<8x128xf32>
    %454 = arith.addf %452, %453 : vector<8x128xf32>
    %455 = arith.mulf %367, %367 : vector<8x128xf32>
    %456 = arith.mulf %369, %369 : vector<8x128xf32>
    %cst_121 = arith.constant 1.000000e+00 : f32
    %457 = vector.broadcast %cst_121 : f32 to vector<8x128xf32>
    %458 = arith.mulf %457, %371 : vector<8x128xf32>
    %459 = arith.mulf %455, %458 : vector<8x128xf32>
    %cst_122 = arith.constant 1.000000e+00 : f32
    %460 = vector.broadcast %cst_122 : f32 to vector<8x128xf32>
    %461 = arith.mulf %460, %370 : vector<8x128xf32>
    %462 = arith.mulf %455, %461 : vector<8x128xf32>
    %cst_123 = arith.constant 2.000000e+00 : f32
    %463 = vector.broadcast %cst_123 : f32 to vector<8x128xf32>
    %464 = arith.mulf %463, %373 : vector<8x128xf32>
    %465 = arith.mulf %456, %464 : vector<8x128xf32>
    %cst_124 = arith.constant 2.000000e+00 : f32
    %466 = vector.broadcast %cst_124 : f32 to vector<8x128xf32>
    %467 = arith.mulf %466, %372 : vector<8x128xf32>
    %468 = arith.mulf %456, %467 : vector<8x128xf32>
    %cst_125 = arith.constant 5.000000e-01 : f32
    %469 = vector.broadcast %cst_125 : f32 to vector<8x128xf32>
    %470 = arith.mulf %469, %459 : vector<8x128xf32>
    %cst_126 = arith.constant 5.000000e-01 : f32
    %471 = vector.broadcast %cst_126 : f32 to vector<8x128xf32>
    %472 = arith.mulf %471, %462 : vector<8x128xf32>
    %cst_127 = arith.constant 9.800000e+00 : f32
    %473 = vector.broadcast %cst_127 : f32 to vector<8x128xf32>
    %474 = arith.subf %472, %473 : vector<8x128xf32>
    %cst_128 = arith.constant 5.000000e-01 : f32
    %475 = vector.broadcast %cst_128 : f32 to vector<8x128xf32>
    %476 = arith.mulf %475, %465 : vector<8x128xf32>
    %477 = arith.addf %459, %476 : vector<8x128xf32>
    %cst_129 = arith.constant 5.000000e-01 : f32
    %478 = vector.broadcast %cst_129 : f32 to vector<8x128xf32>
    %479 = arith.mulf %478, %468 : vector<8x128xf32>
    %480 = arith.addf %462, %479 : vector<8x128xf32>
    %cst_130 = arith.constant 9.800000e+00 : f32
    %481 = vector.broadcast %cst_130 : f32 to vector<8x128xf32>
    %482 = arith.subf %480, %481 : vector<8x128xf32>
    %483 = arith.addf %459, %465 : vector<8x128xf32>
    %cst_131 = arith.constant 0.000000e+00 : f32
    %484 = vector.broadcast %cst_131 : f32 to vector<8x128xf32>
    %485 = arith.subf %484, %462 : vector<8x128xf32>
    %486 = arith.subf %485, %468 : vector<8x128xf32>
    %cst_132 = arith.constant 1.000000e+00 : f32
    %487 = vector.broadcast %cst_132 : f32 to vector<8x128xf32>
    %488 = arith.divf %487, %415 : vector<8x128xf32>
    %489 = arith.mulf %416, %488 : vector<8x128xf32>
    %490 = arith.mulf %489, %416 : vector<8x128xf32>
    %491 = arith.subf %422, %490 : vector<8x128xf32>
    %492 = arith.mulf %489, %417 : vector<8x128xf32>
    %493 = arith.subf %423, %492 : vector<8x128xf32>
    %494 = arith.mulf %489, %418 : vector<8x128xf32>
    %495 = arith.subf %424, %494 : vector<8x128xf32>
    %496 = arith.mulf %489, %417 : vector<8x128xf32>
    %497 = arith.subf %423, %496 : vector<8x128xf32>
    %498 = arith.mulf %489, %419 : vector<8x128xf32>
    %499 = arith.subf %425, %498 : vector<8x128xf32>
    %500 = arith.mulf %489, %470 : vector<8x128xf32>
    %501 = arith.subf %474, %500 : vector<8x128xf32>
    %502 = arith.mulf %417, %488 : vector<8x128xf32>
    %503 = arith.mulf %502, %417 : vector<8x128xf32>
    %504 = arith.subf %429, %503 : vector<8x128xf32>
    %505 = arith.mulf %502, %418 : vector<8x128xf32>
    %506 = arith.subf %431, %505 : vector<8x128xf32>
    %507 = arith.mulf %502, %417 : vector<8x128xf32>
    %508 = arith.subf %433, %507 : vector<8x128xf32>
    %509 = arith.mulf %502, %419 : vector<8x128xf32>
    %510 = arith.subf %435, %509 : vector<8x128xf32>
    %511 = arith.mulf %502, %470 : vector<8x128xf32>
    %512 = arith.subf %477, %511 : vector<8x128xf32>
    %513 = arith.mulf %418, %488 : vector<8x128xf32>
    %514 = arith.mulf %513, %418 : vector<8x128xf32>
    %515 = arith.subf %440, %514 : vector<8x128xf32>
    %516 = arith.mulf %513, %417 : vector<8x128xf32>
    %517 = arith.subf %442, %516 : vector<8x128xf32>
    %518 = arith.mulf %513, %419 : vector<8x128xf32>
    %519 = arith.subf %445, %518 : vector<8x128xf32>
    %520 = arith.mulf %513, %470 : vector<8x128xf32>
    %521 = arith.subf %482, %520 : vector<8x128xf32>
    %522 = arith.mulf %417, %488 : vector<8x128xf32>
    %523 = arith.mulf %522, %417 : vector<8x128xf32>
    %524 = arith.subf %449, %523 : vector<8x128xf32>
    %525 = arith.mulf %522, %419 : vector<8x128xf32>
    %526 = arith.subf %451, %525 : vector<8x128xf32>
    %527 = arith.mulf %522, %470 : vector<8x128xf32>
    %528 = arith.subf %483, %527 : vector<8x128xf32>
    %529 = arith.mulf %419, %488 : vector<8x128xf32>
    %530 = arith.mulf %529, %419 : vector<8x128xf32>
    %531 = arith.subf %454, %530 : vector<8x128xf32>
    %532 = arith.mulf %529, %470 : vector<8x128xf32>
    %533 = arith.subf %486, %532 : vector<8x128xf32>
    %cst_133 = arith.constant 1.000000e+00 : f32
    %534 = vector.broadcast %cst_133 : f32 to vector<8x128xf32>
    %535 = arith.divf %534, %491 : vector<8x128xf32>
    %536 = arith.mulf %493, %535 : vector<8x128xf32>
    %537 = arith.mulf %536, %493 : vector<8x128xf32>
    %538 = arith.subf %504, %537 : vector<8x128xf32>
    %539 = arith.mulf %536, %495 : vector<8x128xf32>
    %540 = arith.subf %506, %539 : vector<8x128xf32>
    %541 = arith.mulf %536, %497 : vector<8x128xf32>
    %542 = arith.subf %508, %541 : vector<8x128xf32>
    %543 = arith.mulf %536, %499 : vector<8x128xf32>
    %544 = arith.subf %510, %543 : vector<8x128xf32>
    %545 = arith.mulf %536, %501 : vector<8x128xf32>
    %546 = arith.subf %512, %545 : vector<8x128xf32>
    %547 = arith.mulf %495, %535 : vector<8x128xf32>
    %548 = arith.mulf %547, %495 : vector<8x128xf32>
    %549 = arith.subf %515, %548 : vector<8x128xf32>
    %550 = arith.mulf %547, %497 : vector<8x128xf32>
    %551 = arith.subf %517, %550 : vector<8x128xf32>
    %552 = arith.mulf %547, %499 : vector<8x128xf32>
    %553 = arith.subf %519, %552 : vector<8x128xf32>
    %554 = arith.mulf %547, %501 : vector<8x128xf32>
    %555 = arith.subf %521, %554 : vector<8x128xf32>
    %556 = arith.mulf %497, %535 : vector<8x128xf32>
    %557 = arith.mulf %556, %497 : vector<8x128xf32>
    %558 = arith.subf %524, %557 : vector<8x128xf32>
    %559 = arith.mulf %556, %499 : vector<8x128xf32>
    %560 = arith.subf %526, %559 : vector<8x128xf32>
    %561 = arith.mulf %556, %501 : vector<8x128xf32>
    %562 = arith.subf %528, %561 : vector<8x128xf32>
    %563 = arith.mulf %499, %535 : vector<8x128xf32>
    %564 = arith.mulf %563, %499 : vector<8x128xf32>
    %565 = arith.subf %531, %564 : vector<8x128xf32>
    %566 = arith.mulf %563, %501 : vector<8x128xf32>
    %567 = arith.subf %533, %566 : vector<8x128xf32>
    %cst_134 = arith.constant 1.000000e+00 : f32
    %568 = vector.broadcast %cst_134 : f32 to vector<8x128xf32>
    %569 = arith.divf %568, %538 : vector<8x128xf32>
    %570 = arith.mulf %540, %569 : vector<8x128xf32>
    %571 = arith.mulf %570, %540 : vector<8x128xf32>
    %572 = arith.subf %549, %571 : vector<8x128xf32>
    %573 = arith.mulf %570, %542 : vector<8x128xf32>
    %574 = arith.subf %551, %573 : vector<8x128xf32>
    %575 = arith.mulf %570, %544 : vector<8x128xf32>
    %576 = arith.subf %553, %575 : vector<8x128xf32>
    %577 = arith.mulf %570, %546 : vector<8x128xf32>
    %578 = arith.subf %555, %577 : vector<8x128xf32>
    %579 = arith.mulf %542, %569 : vector<8x128xf32>
    %580 = arith.mulf %579, %542 : vector<8x128xf32>
    %581 = arith.subf %558, %580 : vector<8x128xf32>
    %582 = arith.mulf %579, %544 : vector<8x128xf32>
    %583 = arith.subf %560, %582 : vector<8x128xf32>
    %584 = arith.mulf %579, %546 : vector<8x128xf32>
    %585 = arith.subf %562, %584 : vector<8x128xf32>
    %586 = arith.mulf %544, %569 : vector<8x128xf32>
    %587 = arith.mulf %586, %544 : vector<8x128xf32>
    %588 = arith.subf %565, %587 : vector<8x128xf32>
    %589 = arith.mulf %586, %546 : vector<8x128xf32>
    %590 = arith.subf %567, %589 : vector<8x128xf32>
    %cst_135 = arith.constant 1.000000e+00 : f32
    %591 = vector.broadcast %cst_135 : f32 to vector<8x128xf32>
    %592 = arith.divf %591, %572 : vector<8x128xf32>
    %593 = arith.mulf %574, %592 : vector<8x128xf32>
    %594 = arith.mulf %593, %574 : vector<8x128xf32>
    %595 = arith.subf %581, %594 : vector<8x128xf32>
    %596 = arith.mulf %593, %576 : vector<8x128xf32>
    %597 = arith.subf %583, %596 : vector<8x128xf32>
    %598 = arith.mulf %593, %578 : vector<8x128xf32>
    %599 = arith.subf %585, %598 : vector<8x128xf32>
    %600 = arith.mulf %576, %592 : vector<8x128xf32>
    %601 = arith.mulf %600, %576 : vector<8x128xf32>
    %602 = arith.subf %588, %601 : vector<8x128xf32>
    %603 = arith.mulf %600, %578 : vector<8x128xf32>
    %604 = arith.subf %590, %603 : vector<8x128xf32>
    %cst_136 = arith.constant 1.000000e+00 : f32
    %605 = vector.broadcast %cst_136 : f32 to vector<8x128xf32>
    %606 = arith.divf %605, %595 : vector<8x128xf32>
    %607 = arith.mulf %597, %606 : vector<8x128xf32>
    %608 = arith.mulf %607, %597 : vector<8x128xf32>
    %609 = arith.subf %602, %608 : vector<8x128xf32>
    %610 = arith.mulf %607, %599 : vector<8x128xf32>
    %611 = arith.subf %604, %610 : vector<8x128xf32>
    %cst_137 = arith.constant 1.000000e+00 : f32
    %612 = vector.broadcast %cst_137 : f32 to vector<8x128xf32>
    %613 = arith.divf %612, %609 : vector<8x128xf32>
    %614 = arith.mulf %611, %613 : vector<8x128xf32>
    %615 = arith.mulf %597, %614 : vector<8x128xf32>
    %616 = arith.subf %599, %615 : vector<8x128xf32>
    %617 = arith.mulf %616, %606 : vector<8x128xf32>
    %618 = arith.mulf %574, %617 : vector<8x128xf32>
    %619 = arith.subf %578, %618 : vector<8x128xf32>
    %620 = arith.mulf %576, %614 : vector<8x128xf32>
    %621 = arith.subf %619, %620 : vector<8x128xf32>
    %622 = arith.mulf %621, %592 : vector<8x128xf32>
    %623 = arith.mulf %540, %622 : vector<8x128xf32>
    %624 = arith.subf %546, %623 : vector<8x128xf32>
    %625 = arith.mulf %542, %617 : vector<8x128xf32>
    %626 = arith.subf %624, %625 : vector<8x128xf32>
    %627 = arith.mulf %544, %614 : vector<8x128xf32>
    %628 = arith.subf %626, %627 : vector<8x128xf32>
    %629 = arith.mulf %628, %569 : vector<8x128xf32>
    %630 = arith.mulf %493, %629 : vector<8x128xf32>
    %631 = arith.subf %501, %630 : vector<8x128xf32>
    %632 = arith.mulf %495, %622 : vector<8x128xf32>
    %633 = arith.subf %631, %632 : vector<8x128xf32>
    %634 = arith.mulf %497, %617 : vector<8x128xf32>
    %635 = arith.subf %633, %634 : vector<8x128xf32>
    %636 = arith.mulf %499, %614 : vector<8x128xf32>
    %637 = arith.subf %635, %636 : vector<8x128xf32>
    %638 = arith.mulf %637, %535 : vector<8x128xf32>
    %639 = arith.mulf %416, %638 : vector<8x128xf32>
    %640 = arith.subf %470, %639 : vector<8x128xf32>
    %641 = arith.mulf %417, %629 : vector<8x128xf32>
    %642 = arith.subf %640, %641 : vector<8x128xf32>
    %643 = arith.mulf %418, %622 : vector<8x128xf32>
    %644 = arith.subf %642, %643 : vector<8x128xf32>
    %645 = arith.mulf %417, %617 : vector<8x128xf32>
    %646 = arith.subf %644, %645 : vector<8x128xf32>
    %647 = arith.mulf %419, %614 : vector<8x128xf32>
    %648 = arith.subf %646, %647 : vector<8x128xf32>
    %649 = arith.mulf %648, %488 : vector<8x128xf32>
    %650 = arith.mulf %375, %649 : vector<8x128xf32>
    %651 = arith.mulf %377, %638 : vector<8x128xf32>
    %652 = arith.addf %650, %651 : vector<8x128xf32>
    %653 = arith.addf %629, %617 : vector<8x128xf32>
    %654 = arith.mulf %379, %653 : vector<8x128xf32>
    %655 = arith.addf %652, %654 : vector<8x128xf32>
    %656 = arith.mulf %383, %622 : vector<8x128xf32>
    %657 = arith.addf %655, %656 : vector<8x128xf32>
    %658 = arith.mulf %389, %614 : vector<8x128xf32>
    %659 = arith.addf %657, %658 : vector<8x128xf32>
    %660 = arith.mulf %381, %629 : vector<8x128xf32>
    %661 = arith.mulf %385, %622 : vector<8x128xf32>
    %662 = arith.addf %660, %661 : vector<8x128xf32>
    %663 = arith.mulf %387, %617 : vector<8x128xf32>
    %664 = arith.addf %662, %663 : vector<8x128xf32>
    %665 = arith.mulf %391, %614 : vector<8x128xf32>
    %666 = arith.addf %664, %665 : vector<8x128xf32>
    %cst_138 = arith.constant -1.000000e+00 : f32
    %667 = vector.broadcast %cst_138 : f32 to vector<8x128xf32>
    %668 = arith.mulf %667, %649 : vector<8x128xf32>
    %c0_139 = arith.constant 0 : index
    %c8_140 = arith.constant 8 : index
    %c0_141 = arith.constant 0 : index
    %669 = vector.load %arg2[%c0_139, %c8_140, %c0_141] : memref<13x32x128xf32, #tpu.memory_space<vmem>>, vector<1x8x128xf32>
    %670 = vector.shape_cast %669 : vector<1x8x128xf32> to vector<8x128xf32>
    %671 = vector.shape_cast %668 : vector<8x128xf32> to vector<1x8x128xf32>
    tpu.vector_store %arg2[%c0_139, %c8_140, %c0_141], %671 {strides = array<i32>} : memref<13x32x128xf32, #tpu.memory_space<vmem>>, vector<1x8x128xf32>,
    %cst_142 = arith.constant 1.000000e+00 : f32
    %672 = vector.broadcast %cst_142 : f32 to vector<8x128xf32>
    %673 = arith.mulf %672, %638 : vector<8x128xf32>
    %cst_143 = arith.constant -9.800000e+00 : f32
    %674 = vector.broadcast %cst_143 : f32 to vector<8x128xf32>
    %675 = arith.subf %674, %673 : vector<8x128xf32>
    %c1_144 = arith.constant 1 : index
    %c8_145 = arith.constant 8 : index
    %c0_146 = arith.constant 0 : index
    %676 = vector.load %arg2[%c1_144, %c8_145, %c0_146] : memref<13x32x128xf32, #tpu.memory_space<vmem>>, vector<1x8x128xf32>
    %677 = vector.shape_cast %676 : vector<1x8x128xf32> to vector<8x128xf32>
    %678 = vector.shape_cast %675 : vector<8x128xf32> to vector<1x8x128xf32>
    tpu.vector_store %arg2[%c1_144, %c8_145, %c0_146], %678 {strides = array<i32>} : memref<13x32x128xf32, #tpu.memory_space<vmem>>, vector<1x8x128xf32>,
    %cst_147 = arith.constant -1.200000e+01 : f32
    %679 = vector.broadcast %cst_147 : f32 to vector<8x128xf32>
    %680 = arith.mulf %679, %659 : vector<8x128xf32>
    %c2_148 = arith.constant 2 : index
    %c8_149 = arith.constant 8 : index
    %c0_150 = arith.constant 0 : index
    %681 = vector.load %arg2[%c2_148, %c8_149, %c0_150] : memref<13x32x128xf32, #tpu.memory_space<vmem>>, vector<1x8x128xf32>
    %682 = vector.shape_cast %681 : vector<1x8x128xf32> to vector<8x128xf32>
    %683 = vector.shape_cast %680 : vector<8x128xf32> to vector<1x8x128xf32>
    tpu.vector_store %arg2[%c2_148, %c8_149, %c0_150], %683 {strides = array<i32>} : memref<13x32x128xf32, #tpu.memory_space<vmem>>, vector<1x8x128xf32>,
    %cst_151 = arith.constant -5.000000e-01 : f32
    %684 = vector.broadcast %cst_151 : f32 to vector<8x128xf32>
    %685 = arith.mulf %684, %629 : vector<8x128xf32>
    %c3_152 = arith.constant 3 : index
    %c8_153 = arith.constant 8 : index
    %c0_154 = arith.constant 0 : index
    %686 = vector.load %arg2[%c3_152, %c8_153, %c0_154] : memref<13x32x128xf32, #tpu.memory_space<vmem>>, vector<1x8x128xf32>
    %687 = vector.shape_cast %686 : vector<1x8x128xf32> to vector<8x128xf32>
    %688 = vector.shape_cast %685 : vector<8x128xf32> to vector<1x8x128xf32>
    tpu.vector_store %arg2[%c3_152, %c8_153, %c0_154], %688 {strides = array<i32>} : memref<13x32x128xf32, #tpu.memory_space<vmem>>, vector<1x8x128xf32>,
    %cst_155 = arith.constant 5.000000e-01 : f32
    %689 = vector.broadcast %cst_155 : f32 to vector<8x128xf32>
    %690 = arith.mulf %689, %622 : vector<8x128xf32>
    %cst_156 = arith.constant -9.800000e+00 : f32
    %691 = vector.broadcast %cst_156 : f32 to vector<8x128xf32>
    %692 = arith.subf %691, %690 : vector<8x128xf32>
    %c4_157 = arith.constant 4 : index
    %c8_158 = arith.constant 8 : index
    %c0_159 = arith.constant 0 : index
    %693 = vector.load %arg2[%c4_157, %c8_158, %c0_159] : memref<13x32x128xf32, #tpu.memory_space<vmem>>, vector<1x8x128xf32>
    %694 = vector.shape_cast %693 : vector<1x8x128xf32> to vector<8x128xf32>
    %695 = vector.shape_cast %692 : vector<8x128xf32> to vector<1x8x128xf32>
    tpu.vector_store %arg2[%c4_157, %c8_158, %c0_159], %695 {strides = array<i32>} : memref<13x32x128xf32, #tpu.memory_space<vmem>>, vector<1x8x128xf32>,
    %cst_160 = arith.constant -1.500000e+00 : f32
    %696 = vector.broadcast %cst_160 : f32 to vector<8x128xf32>
    %697 = arith.mulf %696, %666 : vector<8x128xf32>
    %c5_161 = arith.constant 5 : index
    %c8_162 = arith.constant 8 : index
    %c0_163 = arith.constant 0 : index
    %698 = vector.load %arg2[%c5_161, %c8_162, %c0_163] : memref<13x32x128xf32, #tpu.memory_space<vmem>>, vector<1x8x128xf32>
    %699 = vector.shape_cast %698 : vector<1x8x128xf32> to vector<8x128xf32>
    %700 = vector.shape_cast %697 : vector<8x128xf32> to vector<1x8x128xf32>
    tpu.vector_store %arg2[%c5_161, %c8_162, %c0_163], %700 {strides = array<i32>} : memref<13x32x128xf32, #tpu.memory_space<vmem>>, vector<1x8x128xf32>,
    %cst_164 = arith.constant -0.333333343 : f32
    %701 = vector.broadcast %cst_164 : f32 to vector<8x128xf32>
    %702 = arith.mulf %701, %617 : vector<8x128xf32>
    %c6_165 = arith.constant 6 : index
    %c8_166 = arith.constant 8 : index
    %c0_167 = arith.constant 0 : index
    %703 = vector.load %arg2[%c6_165, %c8_166, %c0_167] : memref<13x32x128xf32, #tpu.memory_space<vmem>>, vector<1x8x128xf32>
    %704 = vector.shape_cast %703 : vector<1x8x128xf32> to vector<8x128xf32>
    %705 = vector.shape_cast %702 : vector<8x128xf32> to vector<1x8x128xf32>
    tpu.vector_store %arg2[%c6_165, %c8_166, %c0_167], %705 {strides = array<i32>} : memref<13x32x128xf32, #tpu.memory_space<vmem>>, vector<1x8x128xf32>,
    %c7_168 = arith.constant 7 : index
    %c8_169 = arith.constant 8 : index
    %c0_170 = arith.constant 0 : index
    %706 = vector.load %arg2[%c7_168, %c8_169, %c0_170] : memref<13x32x128xf32, #tpu.memory_space<vmem>>, vector<1x8x128xf32>
    %707 = vector.shape_cast %706 : vector<1x8x128xf32> to vector<8x128xf32>
    %708 = vector.shape_cast %649 : vector<8x128xf32> to vector<1x8x128xf32>
    tpu.vector_store %arg2[%c7_168, %c8_169, %c0_170], %708 {strides = array<i32>} : memref<13x32x128xf32, #tpu.memory_space<vmem>>, vector<1x8x128xf32>,
    %c8_171 = arith.constant 8 : index
    %c8_172 = arith.constant 8 : index
    %c0_173 = arith.constant 0 : index
    %709 = vector.load %arg2[%c8_171, %c8_172, %c0_173] : memref<13x32x128xf32, #tpu.memory_space<vmem>>, vector<1x8x128xf32>
    %710 = vector.shape_cast %709 : vector<1x8x128xf32> to vector<8x128xf32>
    %711 = vector.shape_cast %638 : vector<8x128xf32> to vector<1x8x128xf32>
    tpu.vector_store %arg2[%c8_171, %c8_172, %c0_173], %711 {strides = array<i32>} : memref<13x32x128xf32, #tpu.memory_space<vmem>>, vector<1x8x128xf32>,
    %c9_174 = arith.constant 9 : index
    %c8_175 = arith.constant 8 : index
    %c0_176 = arith.constant 0 : index
    %712 = vector.load %arg2[%c9_174, %c8_175, %c0_176] : memref<13x32x128xf32, #tpu.memory_space<vmem>>, vector<1x8x128xf32>
    %713 = vector.shape_cast %712 : vector<1x8x128xf32> to vector<8x128xf32>
    %714 = vector.shape_cast %629 : vector<8x128xf32> to vector<1x8x128xf32>
    tpu.vector_store %arg2[%c9_174, %c8_175, %c0_176], %714 {strides = array<i32>} : memref<13x32x128xf32, #tpu.memory_space<vmem>>, vector<1x8x128xf32>,
    %c10_177 = arith.constant 10 : index
    %c8_178 = arith.constant 8 : index
    %c0_179 = arith.constant 0 : index
    %715 = vector.load %arg2[%c10_177, %c8_178, %c0_179] : memref<13x32x128xf32, #tpu.memory_space<vmem>>, vector<1x8x128xf32>
    %716 = vector.shape_cast %715 : vector<1x8x128xf32> to vector<8x128xf32>
    %717 = vector.shape_cast %622 : vector<8x128xf32> to vector<1x8x128xf32>
    tpu.vector_store %arg2[%c10_177, %c8_178, %c0_179], %717 {strides = array<i32>} : memref<13x32x128xf32, #tpu.memory_space<vmem>>, vector<1x8x128xf32>,
    %c11_180 = arith.constant 11 : index
    %c8_181 = arith.constant 8 : index
    %c0_182 = arith.constant 0 : index
    %718 = vector.load %arg2[%c11_180, %c8_181, %c0_182] : memref<13x32x128xf32, #tpu.memory_space<vmem>>, vector<1x8x128xf32>
    %719 = vector.shape_cast %718 : vector<1x8x128xf32> to vector<8x128xf32>
    %720 = vector.shape_cast %617 : vector<8x128xf32> to vector<1x8x128xf32>
    tpu.vector_store %arg2[%c11_180, %c8_181, %c0_182], %720 {strides = array<i32>} : memref<13x32x128xf32, #tpu.memory_space<vmem>>, vector<1x8x128xf32>,
    %c12_183 = arith.constant 12 : index
    %c8_184 = arith.constant 8 : index
    %c0_185 = arith.constant 0 : index
    %721 = vector.load %arg2[%c12_183, %c8_184, %c0_185] : memref<13x32x128xf32, #tpu.memory_space<vmem>>, vector<1x8x128xf32>
    %722 = vector.shape_cast %721 : vector<1x8x128xf32> to vector<8x128xf32>
    %723 = vector.shape_cast %614 : vector<8x128xf32> to vector<1x8x128xf32>
    tpu.vector_store %arg2[%c12_183, %c8_184, %c0_185], %723 {strides = array<i32>} : memref<13x32x128xf32, #tpu.memory_space<vmem>>, vector<1x8x128xf32>,
    %c2_186 = arith.constant 2 : index
    %c16 = arith.constant 16 : index
    %c0_187 = arith.constant 0 : index
    %724 = vector.load %arg1[%c2_186, %c16, %c0_187] : memref<14x32x128xf32, #tpu.memory_space<vmem>>, vector<1x8x128xf32>
    %725 = vector.shape_cast %724 : vector<1x8x128xf32> to vector<8x128xf32>
    %c5_188 = arith.constant 5 : index
    %c16_189 = arith.constant 16 : index
    %c0_190 = arith.constant 0 : index
    %726 = vector.load %arg1[%c5_188, %c16_189, %c0_190] : memref<14x32x128xf32, #tpu.memory_space<vmem>>, vector<1x8x128xf32>
    %727 = vector.shape_cast %726 : vector<1x8x128xf32> to vector<8x128xf32>
    %c9_191 = arith.constant 9 : index
    %c16_192 = arith.constant 16 : index
    %c0_193 = arith.constant 0 : index
    %728 = vector.load %arg1[%c9_191, %c16_192, %c0_193] : memref<14x32x128xf32, #tpu.memory_space<vmem>>, vector<1x8x128xf32>
    %729 = vector.shape_cast %728 : vector<1x8x128xf32> to vector<8x128xf32>
    %c12_194 = arith.constant 12 : index
    %c16_195 = arith.constant 16 : index
    %c0_196 = arith.constant 0 : index
    %730 = vector.load %arg1[%c12_194, %c16_195, %c0_196] : memref<14x32x128xf32, #tpu.memory_space<vmem>>, vector<1x8x128xf32>
    %731 = vector.shape_cast %730 : vector<1x8x128xf32> to vector<8x128xf32>
    %732 = math.sin %725 : vector<8x128xf32>
    %733 = math.cos %725 : vector<8x128xf32>
    %734 = math.sin %727 : vector<8x128xf32>
    %735 = math.cos %727 : vector<8x128xf32>
    %cst_197 = arith.constant 5.000000e-01 : f32
    %736 = vector.broadcast %cst_197 : f32 to vector<8x128xf32>
    %737 = arith.mulf %736, %732 : vector<8x128xf32>
    %cst_198 = arith.constant -5.000000e-01 : f32
    %738 = vector.broadcast %cst_198 : f32 to vector<8x128xf32>
    %739 = arith.mulf %738, %733 : vector<8x128xf32>
    %cst_199 = arith.constant 1.000000e+00 : f32
    %740 = vector.broadcast %cst_199 : f32 to vector<8x128xf32>
    %741 = arith.mulf %740, %732 : vector<8x128xf32>
    %cst_200 = arith.constant 1.000000e+00 : f32
    %742 = vector.broadcast %cst_200 : f32 to vector<8x128xf32>
    %743 = arith.mulf %742, %734 : vector<8x128xf32>
    %cst_201 = arith.constant -1.000000e+00 : f32
    %744 = vector.broadcast %cst_201 : f32 to vector<8x128xf32>
    %745 = arith.mulf %744, %733 : vector<8x128xf32>
    %cst_202 = arith.constant -1.000000e+00 : f32
    %746 = vector.broadcast %cst_202 : f32 to vector<8x128xf32>
    %747 = arith.mulf %746, %735 : vector<8x128xf32>
    %cst_203 = arith.constant 2.000000e+00 : f32
    %748 = vector.broadcast %cst_203 : f32 to vector<8x128xf32>
    %749 = arith.mulf %748, %734 : vector<8x128xf32>
    %cst_204 = arith.constant 1.000000e+00 : f32
    %750 = vector.broadcast %cst_204 : f32 to vector<8x128xf32>
    %751 = arith.mulf %750, %733 : vector<8x128xf32>
    %cst_205 = arith.constant 2.000000e+00 : f32
    %752 = vector.broadcast %cst_205 : f32 to vector<8x128xf32>
    %753 = arith.mulf %752, %735 : vector<8x128xf32>
    %cst_206 = arith.constant 1.200000e+01 : f32
    %754 = vector.broadcast %cst_206 : f32 to vector<8x128xf32>
    %755 = arith.mulf %754, %737 : vector<8x128xf32>
    %cst_207 = arith.constant 1.200000e+01 : f32
    %756 = vector.broadcast %cst_207 : f32 to vector<8x128xf32>
    %757 = arith.mulf %756, %739 : vector<8x128xf32>
    %cst_208 = arith.constant 1.200000e+01 : f32
    %758 = vector.broadcast %cst_208 : f32 to vector<8x128xf32>
    %759 = arith.mulf %758, %741 : vector<8x128xf32>
    %cst_209 = arith.constant 1.200000e+01 : f32
    %760 = vector.broadcast %cst_209 : f32 to vector<8x128xf32>
    %761 = arith.mulf %760, %745 : vector<8x128xf32>
    %cst_210 = arith.constant 1.200000e+01 : f32
    %762 = vector.broadcast %cst_210 : f32 to vector<8x128xf32>
    %763 = arith.mulf %762, %751 : vector<8x128xf32>
    %cst_211 = arith.constant 1.500000e+00 : f32
    %764 = vector.broadcast %cst_211 : f32 to vector<8x128xf32>
    %765 = arith.mulf %764, %743 : vector<8x128xf32>
    %cst_212 = arith.constant 1.500000e+00 : f32
    %766 = vector.broadcast %cst_212 : f32 to vector<8x128xf32>
    %767 = arith.mulf %766, %747 : vector<8x128xf32>
    %cst_213 = arith.constant 1.500000e+00 : f32
    %768 = vector.broadcast %cst_213 : f32 to vector<8x128xf32>
    %769 = arith.mulf %768, %749 : vector<8x128xf32>
    %cst_214 = arith.constant 1.500000e+00 : f32
    %770 = vector.broadcast %cst_214 : f32 to vector<8x128xf32>
    %771 = arith.mulf %770, %753 : vector<8x128xf32>
    %772 = arith.mulf %759, %741 : vector<8x128xf32>
    %773 = arith.mulf %759, %745 : vector<8x128xf32>
    %774 = arith.mulf %759, %751 : vector<8x128xf32>
    %775 = arith.mulf %755, %737 : vector<8x128xf32>
    %cst_215 = arith.constant 1.000000e+00 : f32
    %776 = vector.broadcast %cst_215 : f32 to vector<8x128xf32>
    %777 = arith.addf %776, %775 : vector<8x128xf32>
    %778 = arith.mulf %755, %739 : vector<8x128xf32>
    %779 = arith.mulf %755, %741 : vector<8x128xf32>
    %780 = arith.mulf %755, %745 : vector<8x128xf32>
    %781 = arith.mulf %755, %751 : vector<8x128xf32>
    %782 = arith.mulf %757, %739 : vector<8x128xf32>
    %cst_216 = arith.constant 1.000000e+00 : f32
    %783 = vector.broadcast %cst_216 : f32 to vector<8x128xf32>
    %784 = arith.addf %783, %782 : vector<8x128xf32>
    %785 = arith.mulf %757, %741 : vector<8x128xf32>
    %786 = arith.mulf %757, %745 : vector<8x128xf32>
    %787 = arith.mulf %757, %751 : vector<8x128xf32>
    %cst_217 = arith.constant 5.000000e-01 : f32
    %788 = vector.broadcast %cst_217 : f32 to vector<8x128xf32>
    %789 = arith.addf %772, %788 : vector<8x128xf32>
    %790 = arith.mulf %765, %743 : vector<8x128xf32>
    %791 = arith.addf %789, %790 : vector<8x128xf32>
    %792 = arith.mulf %765, %747 : vector<8x128xf32>
    %793 = arith.addf %773, %792 : vector<8x128xf32>
    %794 = arith.mulf %765, %749 : vector<8x128xf32>
    %795 = arith.addf %772, %794 : vector<8x128xf32>
    %796 = arith.mulf %765, %753 : vector<8x128xf32>
    %797 = arith.addf %774, %796 : vector<8x128xf32>
    %798 = arith.mulf %761, %745 : vector<8x128xf32>
    %cst_218 = arith.constant 5.000000e-01 : f32
    %799 = vector.broadcast %cst_218 : f32 to vector<8x128xf32>
    %800 = arith.addf %798, %799 : vector<8x128xf32>
    %801 = arith.mulf %767, %747 : vector<8x128xf32>
    %802 = arith.addf %800, %801 : vector<8x128xf32>
    %803 = arith.mulf %767, %749 : vector<8x128xf32>
    %804 = arith.addf %773, %803 : vector<8x128xf32>
    %805 = arith.mulf %761, %751 : vector<8x128xf32>
    %806 = arith.mulf %767, %753 : vector<8x128xf32>
    %807 = arith.addf %805, %806 : vector<8x128xf32>
    %808 = arith.mulf %769, %749 : vector<8x128xf32>
    %809 = arith.addf %772, %808 : vector<8x128xf32>
    %cst_219 = arith.constant 0.333333343 : f32
    %810 = vector.broadcast %cst_219 : f32 to vector<8x128xf32>
    %811 = arith.addf %809, %810 : vector<8x128xf32>
    %812 = arith.mulf %769, %753 : vector<8x128xf32>
    %813 = arith.addf %774, %812 : vector<8x128xf32>
    %814 = arith.mulf %763, %751 : vector<8x128xf32>
    %815 = arith.mulf %771, %753 : vector<8x128xf32>
    %816 = arith.addf %814, %815 : vector<8x128xf32>
    %817 = arith.mulf %729, %729 : vector<8x128xf32>
    %818 = arith.mulf %731, %731 : vector<8x128xf32>
    %cst_220 = arith.constant 1.000000e+00 : f32
    %819 = vector.broadcast %cst_220 : f32 to vector<8x128xf32>
    %820 = arith.mulf %819, %733 : vector<8x128xf32>
    %821 = arith.mulf %817, %820 : vector<8x128xf32>
    %cst_221 = arith.constant 1.000000e+00 : f32
    %822 = vector.broadcast %cst_221 : f32 to vector<8x128xf32>
    %823 = arith.mulf %822, %732 : vector<8x128xf32>
    %824 = arith.mulf %817, %823 : vector<8x128xf32>
    %cst_222 = arith.constant 2.000000e+00 : f32
    %825 = vector.broadcast %cst_222 : f32 to vector<8x128xf32>
    %826 = arith.mulf %825, %735 : vector<8x128xf32>
    %827 = arith.mulf %818, %826 : vector<8x128xf32>
    %cst_223 = arith.constant 2.000000e+00 : f32
    %828 = vector.broadcast %cst_223 : f32 to vector<8x128xf32>
    %829 = arith.mulf %828, %734 : vector<8x128xf32>
    %830 = arith.mulf %818, %829 : vector<8x128xf32>
    %cst_224 = arith.constant 5.000000e-01 : f32
    %831 = vector.broadcast %cst_224 : f32 to vector<8x128xf32>
    %832 = arith.mulf %831, %821 : vector<8x128xf32>
    %cst_225 = arith.constant 5.000000e-01 : f32
    %833 = vector.broadcast %cst_225 : f32 to vector<8x128xf32>
    %834 = arith.mulf %833, %824 : vector<8x128xf32>
    %cst_226 = arith.constant 9.800000e+00 : f32
    %835 = vector.broadcast %cst_226 : f32 to vector<8x128xf32>
    %836 = arith.subf %834, %835 : vector<8x128xf32>
    %cst_227 = arith.constant 5.000000e-01 : f32
    %837 = vector.broadcast %cst_227 : f32 to vector<8x128xf32>
    %838 = arith.mulf %837, %827 : vector<8x128xf32>
    %839 = arith.addf %821, %838 : vector<8x128xf32>
    %cst_228 = arith.constant 5.000000e-01 : f32
    %840 = vector.broadcast %cst_228 : f32 to vector<8x128xf32>
    %841 = arith.mulf %840, %830 : vector<8x128xf32>
    %842 = arith.addf %824, %841 : vector<8x128xf32>
    %cst_229 = arith.constant 9.800000e+00 : f32
    %843 = vector.broadcast %cst_229 : f32 to vector<8x128xf32>
    %844 = arith.subf %842, %843 : vector<8x128xf32>
    %845 = arith.addf %821, %827 : vector<8x128xf32>
    %cst_230 = arith.constant 0.000000e+00 : f32
    %846 = vector.broadcast %cst_230 : f32 to vector<8x128xf32>
    %847 = arith.subf %846, %824 : vector<8x128xf32>
    %848 = arith.subf %847, %830 : vector<8x128xf32>
    %cst_231 = arith.constant 1.000000e+00 : f32
    %849 = vector.broadcast %cst_231 : f32 to vector<8x128xf32>
    %850 = arith.divf %849, %777 : vector<8x128xf32>
    %851 = arith.mulf %778, %850 : vector<8x128xf32>
    %852 = arith.mulf %851, %778 : vector<8x128xf32>
    %853 = arith.subf %784, %852 : vector<8x128xf32>
    %854 = arith.mulf %851, %779 : vector<8x128xf32>
    %855 = arith.subf %785, %854 : vector<8x128xf32>
    %856 = arith.mulf %851, %780 : vector<8x128xf32>
    %857 = arith.subf %786, %856 : vector<8x128xf32>
    %858 = arith.mulf %851, %779 : vector<8x128xf32>
    %859 = arith.subf %785, %858 : vector<8x128xf32>
    %860 = arith.mulf %851, %781 : vector<8x128xf32>
    %861 = arith.subf %787, %860 : vector<8x128xf32>
    %862 = arith.mulf %851, %832 : vector<8x128xf32>
    %863 = arith.subf %836, %862 : vector<8x128xf32>
    %864 = arith.mulf %779, %850 : vector<8x128xf32>
    %865 = arith.mulf %864, %779 : vector<8x128xf32>
    %866 = arith.subf %791, %865 : vector<8x128xf32>
    %867 = arith.mulf %864, %780 : vector<8x128xf32>
    %868 = arith.subf %793, %867 : vector<8x128xf32>
    %869 = arith.mulf %864, %779 : vector<8x128xf32>
    %870 = arith.subf %795, %869 : vector<8x128xf32>
    %871 = arith.mulf %864, %781 : vector<8x128xf32>
    %872 = arith.subf %797, %871 : vector<8x128xf32>
    %873 = arith.mulf %864, %832 : vector<8x128xf32>
    %874 = arith.subf %839, %873 : vector<8x128xf32>
    %875 = arith.mulf %780, %850 : vector<8x128xf32>
    %876 = arith.mulf %875, %780 : vector<8x128xf32>
    %877 = arith.subf %802, %876 : vector<8x128xf32>
    %878 = arith.mulf %875, %779 : vector<8x128xf32>
    %879 = arith.subf %804, %878 : vector<8x128xf32>
    %880 = arith.mulf %875, %781 : vector<8x128xf32>
    %881 = arith.subf %807, %880 : vector<8x128xf32>
    %882 = arith.mulf %875, %832 : vector<8x128xf32>
    %883 = arith.subf %844, %882 : vector<8x128xf32>
    %884 = arith.mulf %779, %850 : vector<8x128xf32>
    %885 = arith.mulf %884, %779 : vector<8x128xf32>
    %886 = arith.subf %811, %885 : vector<8x128xf32>
    %887 = arith.mulf %884, %781 : vector<8x128xf32>
    %888 = arith.subf %813, %887 : vector<8x128xf32>
    %889 = arith.mulf %884, %832 : vector<8x128xf32>
    %890 = arith.subf %845, %889 : vector<8x128xf32>
    %891 = arith.mulf %781, %850 : vector<8x128xf32>
    %892 = arith.mulf %891, %781 : vector<8x128xf32>
    %893 = arith.subf %816, %892 : vector<8x128xf32>
    %894 = arith.mulf %891, %832 : vector<8x128xf32>
    %895 = arith.subf %848, %894 : vector<8x128xf32>
    %cst_232 = arith.constant 1.000000e+00 : f32
    %896 = vector.broadcast %cst_232 : f32 to vector<8x128xf32>
    %897 = arith.divf %896, %853 : vector<8x128xf32>
    %898 = arith.mulf %855, %897 : vector<8x128xf32>
    %899 = arith.mulf %898, %855 : vector<8x128xf32>
    %900 = arith.subf %866, %899 : vector<8x128xf32>
    %901 = arith.mulf %898, %857 : vector<8x128xf32>
    %902 = arith.subf %868, %901 : vector<8x128xf32>
    %903 = arith.mulf %898, %859 : vector<8x128xf32>
    %904 = arith.subf %870, %903 : vector<8x128xf32>
    %905 = arith.mulf %898, %861 : vector<8x128xf32>
    %906 = arith.subf %872, %905 : vector<8x128xf32>
    %907 = arith.mulf %898, %863 : vector<8x128xf32>
    %908 = arith.subf %874, %907 : vector<8x128xf32>
    %909 = arith.mulf %857, %897 : vector<8x128xf32>
    %910 = arith.mulf %909, %857 : vector<8x128xf32>
    %911 = arith.subf %877, %910 : vector<8x128xf32>
    %912 = arith.mulf %909, %859 : vector<8x128xf32>
    %913 = arith.subf %879, %912 : vector<8x128xf32>
    %914 = arith.mulf %909, %861 : vector<8x128xf32>
    %915 = arith.subf %881, %914 : vector<8x128xf32>
    %916 = arith.mulf %909, %863 : vector<8x128xf32>
    %917 = arith.subf %883, %916 : vector<8x128xf32>
    %918 = arith.mulf %859, %897 : vector<8x128xf32>
    %919 = arith.mulf %918, %859 : vector<8x128xf32>
    %920 = arith.subf %886, %919 : vector<8x128xf32>
    %921 = arith.mulf %918, %861 : vector<8x128xf32>
    %922 = arith.subf %888, %921 : vector<8x128xf32>
    %923 = arith.mulf %918, %863 : vector<8x128xf32>
    %924 = arith.subf %890, %923 : vector<8x128xf32>
    %925 = arith.mulf %861, %897 : vector<8x128xf32>
    %926 = arith.mulf %925, %861 : vector<8x128xf32>
    %927 = arith.subf %893, %926 : vector<8x128xf32>
    %928 = arith.mulf %925, %863 : vector<8x128xf32>
    %929 = arith.subf %895, %928 : vector<8x128xf32>
    %cst_233 = arith.constant 1.000000e+00 : f32
    %930 = vector.broadcast %cst_233 : f32 to vector<8x128xf32>
    %931 = arith.divf %930, %900 : vector<8x128xf32>
    %932 = arith.mulf %902, %931 : vector<8x128xf32>
    %933 = arith.mulf %932, %902 : vector<8x128xf32>
    %934 = arith.subf %911, %933 : vector<8x128xf32>
    %935 = arith.mulf %932, %904 : vector<8x128xf32>
    %936 = arith.subf %913, %935 : vector<8x128xf32>
    %937 = arith.mulf %932, %906 : vector<8x128xf32>
    %938 = arith.subf %915, %937 : vector<8x128xf32>
    %939 = arith.mulf %932, %908 : vector<8x128xf32>
    %940 = arith.subf %917, %939 : vector<8x128xf32>
    %941 = arith.mulf %904, %931 : vector<8x128xf32>
    %942 = arith.mulf %941, %904 : vector<8x128xf32>
    %943 = arith.subf %920, %942 : vector<8x128xf32>
    %944 = arith.mulf %941, %906 : vector<8x128xf32>
    %945 = arith.subf %922, %944 : vector<8x128xf32>
    %946 = arith.mulf %941, %908 : vector<8x128xf32>
    %947 = arith.subf %924, %946 : vector<8x128xf32>
    %948 = arith.mulf %906, %931 : vector<8x128xf32>
    %949 = arith.mulf %948, %906 : vector<8x128xf32>
    %950 = arith.subf %927, %949 : vector<8x128xf32>
    %951 = arith.mulf %948, %908 : vector<8x128xf32>
    %952 = arith.subf %929, %951 : vector<8x128xf32>
    %cst_234 = arith.constant 1.000000e+00 : f32
    %953 = vector.broadcast %cst_234 : f32 to vector<8x128xf32>
    %954 = arith.divf %953, %934 : vector<8x128xf32>
    %955 = arith.mulf %936, %954 : vector<8x128xf32>
    %956 = arith.mulf %955, %936 : vector<8x128xf32>
    %957 = arith.subf %943, %956 : vector<8x128xf32>
    %958 = arith.mulf %955, %938 : vector<8x128xf32>
    %959 = arith.subf %945, %958 : vector<8x128xf32>
    %960 = arith.mulf %955, %940 : vector<8x128xf32>
    %961 = arith.subf %947, %960 : vector<8x128xf32>
    %962 = arith.mulf %938, %954 : vector<8x128xf32>
    %963 = arith.mulf %962, %938 : vector<8x128xf32>
    %964 = arith.subf %950, %963 : vector<8x128xf32>
    %965 = arith.mulf %962, %940 : vector<8x128xf32>
    %966 = arith.subf %952, %965 : vector<8x128xf32>
    %cst_235 = arith.constant 1.000000e+00 : f32
    %967 = vector.broadcast %cst_235 : f32 to vector<8x128xf32>
    %968 = arith.divf %967, %957 : vector<8x128xf32>
    %969 = arith.mulf %959, %968 : vector<8x128xf32>
    %970 = arith.mulf %969, %959 : vector<8x128xf32>
    %971 = arith.subf %964, %970 : vector<8x128xf32>
    %972 = arith.mulf %969, %961 : vector<8x128xf32>
    %973 = arith.subf %966, %972 : vector<8x128xf32>
    %cst_236 = arith.constant 1.000000e+00 : f32
    %974 = vector.broadcast %cst_236 : f32 to vector<8x128xf32>
    %975 = arith.divf %974, %971 : vector<8x128xf32>
    %976 = arith.mulf %973, %975 : vector<8x128xf32>
    %977 = arith.mulf %959, %976 : vector<8x128xf32>
    %978 = arith.subf %961, %977 : vector<8x128xf32>
    %979 = arith.mulf %978, %968 : vector<8x128xf32>
    %980 = arith.mulf %936, %979 : vector<8x128xf32>
    %981 = arith.subf %940, %980 : vector<8x128xf32>
    %982 = arith.mulf %938, %976 : vector<8x128xf32>
    %983 = arith.subf %981, %982 : vector<8x128xf32>
    %984 = arith.mulf %983, %954 : vector<8x128xf32>
    %985 = arith.mulf %902, %984 : vector<8x128xf32>
    %986 = arith.subf %908, %985 : vector<8x128xf32>
    %987 = arith.mulf %904, %979 : vector<8x128xf32>
    %988 = arith.subf %986, %987 : vector<8x128xf32>
    %989 = arith.mulf %906, %976 : vector<8x128xf32>
    %990 = arith.subf %988, %989 : vector<8x128xf32>
    %991 = arith.mulf %990, %931 : vector<8x128xf32>
    %992 = arith.mulf %855, %991 : vector<8x128xf32>
    %993 = arith.subf %863, %992 : vector<8x128xf32>
    %994 = arith.mulf %857, %984 : vector<8x128xf32>
    %995 = arith.subf %993, %994 : vector<8x128xf32>
    %996 = arith.mulf %859, %979 : vector<8x128xf32>
    %997 = arith.subf %995, %996 : vector<8x128xf32>
    %998 = arith.mulf %861, %976 : vector<8x128xf32>
    %999 = arith.subf %997, %998 : vector<8x128xf32>
    %1000 = arith.mulf %999, %897 : vector<8x128xf32>
    %1001 = arith.mulf %778, %1000 : vector<8x128xf32>
    %1002 = arith.subf %832, %1001 : vector<8x128xf32>
    %1003 = arith.mulf %779, %991 : vector<8x128xf32>
    %1004 = arith.subf %1002, %1003 : vector<8x128xf32>
    %1005 = arith.mulf %780, %984 : vector<8x128xf32>
    %1006 = arith.subf %1004, %1005 : vector<8x128xf32>
    %1007 = arith.mulf %779, %979 : vector<8x128xf32>
    %1008 = arith.subf %1006, %1007 : vector<8x128xf32>
    %1009 = arith.mulf %781, %976 : vector<8x128xf32>
    %1010 = arith.subf %1008, %1009 : vector<8x128xf32>
    %1011 = arith.mulf %1010, %850 : vector<8x128xf32>
    %1012 = arith.mulf %737, %1011 : vector<8x128xf32>
    %1013 = arith.mulf %739, %1000 : vector<8x128xf32>
    %1014 = arith.addf %1012, %1013 : vector<8x128xf32>
    %1015 = arith.addf %991, %979 : vector<8x128xf32>
    %1016 = arith.mulf %741, %1015 : vector<8x128xf32>
    %1017 = arith.addf %1014, %1016 : vector<8x128xf32>
    %1018 = arith.mulf %745, %984 : vector<8x128xf32>
    %1019 = arith.addf %1017, %1018 : vector<8x128xf32>
    %1020 = arith.mulf %751, %976 : vector<8x128xf32>
    %1021 = arith.addf %1019, %1020 : vector<8x128xf32>
    %1022 = arith.mulf %743, %991 : vector<8x128xf32>
    %1023 = arith.mulf %747, %984 : vector<8x128xf32>
    %1024 = arith.addf %1022, %1023 : vector<8x128xf32>
    %1025 = arith.mulf %749, %979 : vector<8x128xf32>
    %1026 = arith.addf %1024, %1025 : vector<8x128xf32>
    %1027 = arith.mulf %753, %976 : vector<8x128xf32>
    %1028 = arith.addf %1026, %1027 : vector<8x128xf32>
    %cst_237 = arith.constant -1.000000e+00 : f32
    %1029 = vector.broadcast %cst_237 : f32 to vector<8x128xf32>
    %1030 = arith.mulf %1029, %1011 : vector<8x128xf32>
    %c0_238 = arith.constant 0 : index
    %c16_239 = arith.constant 16 : index
    %c0_240 = arith.constant 0 : index
    %1031 = vector.load %arg2[%c0_238, %c16_239, %c0_240] : memref<13x32x128xf32, #tpu.memory_space<vmem>>, vector<1x8x128xf32>
    %1032 = vector.shape_cast %1031 : vector<1x8x128xf32> to vector<8x128xf32>
    %1033 = vector.shape_cast %1030 : vector<8x128xf32> to vector<1x8x128xf32>
    tpu.vector_store %arg2[%c0_238, %c16_239, %c0_240], %1033 {strides = array<i32>} : memref<13x32x128xf32, #tpu.memory_space<vmem>>, vector<1x8x128xf32>,
    %cst_241 = arith.constant 1.000000e+00 : f32
    %1034 = vector.broadcast %cst_241 : f32 to vector<8x128xf32>
    %1035 = arith.mulf %1034, %1000 : vector<8x128xf32>
    %cst_242 = arith.constant -9.800000e+00 : f32
    %1036 = vector.broadcast %cst_242 : f32 to vector<8x128xf32>
    %1037 = arith.subf %1036, %1035 : vector<8x128xf32>
    %c1_243 = arith.constant 1 : index
    %c16_244 = arith.constant 16 : index
    %c0_245 = arith.constant 0 : index
    %1038 = vector.load %arg2[%c1_243, %c16_244, %c0_245] : memref<13x32x128xf32, #tpu.memory_space<vmem>>, vector<1x8x128xf32>
    %1039 = vector.shape_cast %1038 : vector<1x8x128xf32> to vector<8x128xf32>
    %1040 = vector.shape_cast %1037 : vector<8x128xf32> to vector<1x8x128xf32>
    tpu.vector_store %arg2[%c1_243, %c16_244, %c0_245], %1040 {strides = array<i32>} : memref<13x32x128xf32, #tpu.memory_space<vmem>>, vector<1x8x128xf32>,
    %cst_246 = arith.constant -1.200000e+01 : f32
    %1041 = vector.broadcast %cst_246 : f32 to vector<8x128xf32>
    %1042 = arith.mulf %1041, %1021 : vector<8x128xf32>
    %c2_247 = arith.constant 2 : index
    %c16_248 = arith.constant 16 : index
    %c0_249 = arith.constant 0 : index
    %1043 = vector.load %arg2[%c2_247, %c16_248, %c0_249] : memref<13x32x128xf32, #tpu.memory_space<vmem>>, vector<1x8x128xf32>
    %1044 = vector.shape_cast %1043 : vector<1x8x128xf32> to vector<8x128xf32>
    %1045 = vector.shape_cast %1042 : vector<8x128xf32> to vector<1x8x128xf32>
    tpu.vector_store %arg2[%c2_247, %c16_248, %c0_249], %1045 {strides = array<i32>} : memref<13x32x128xf32, #tpu.memory_space<vmem>>, vector<1x8x128xf32>,
    %cst_250 = arith.constant -5.000000e-01 : f32
    %1046 = vector.broadcast %cst_250 : f32 to vector<8x128xf32>
    %1047 = arith.mulf %1046, %991 : vector<8x128xf32>
    %c3_251 = arith.constant 3 : index
    %c16_252 = arith.constant 16 : index
    %c0_253 = arith.constant 0 : index
    %1048 = vector.load %arg2[%c3_251, %c16_252, %c0_253] : memref<13x32x128xf32, #tpu.memory_space<vmem>>, vector<1x8x128xf32>
    %1049 = vector.shape_cast %1048 : vector<1x8x128xf32> to vector<8x128xf32>
    %1050 = vector.shape_cast %1047 : vector<8x128xf32> to vector<1x8x128xf32>
    tpu.vector_store %arg2[%c3_251, %c16_252, %c0_253], %1050 {strides = array<i32>} : memref<13x32x128xf32, #tpu.memory_space<vmem>>, vector<1x8x128xf32>,
    %cst_254 = arith.constant 5.000000e-01 : f32
    %1051 = vector.broadcast %cst_254 : f32 to vector<8x128xf32>
    %1052 = arith.mulf %1051, %984 : vector<8x128xf32>
    %cst_255 = arith.constant -9.800000e+00 : f32
    %1053 = vector.broadcast %cst_255 : f32 to vector<8x128xf32>
    %1054 = arith.subf %1053, %1052 : vector<8x128xf32>
    %c4_256 = arith.constant 4 : index
    %c16_257 = arith.constant 16 : index
    %c0_258 = arith.constant 0 : index
    %1055 = vector.load %arg2[%c4_256, %c16_257, %c0_258] : memref<13x32x128xf32, #tpu.memory_space<vmem>>, vector<1x8x128xf32>
    %1056 = vector.shape_cast %1055 : vector<1x8x128xf32> to vector<8x128xf32>
    %1057 = vector.shape_cast %1054 : vector<8x128xf32> to vector<1x8x128xf32>
    tpu.vector_store %arg2[%c4_256, %c16_257, %c0_258], %1057 {strides = array<i32>} : memref<13x32x128xf32, #tpu.memory_space<vmem>>, vector<1x8x128xf32>,
    %cst_259 = arith.constant -1.500000e+00 : f32
    %1058 = vector.broadcast %cst_259 : f32 to vector<8x128xf32>
    %1059 = arith.mulf %1058, %1028 : vector<8x128xf32>
    %c5_260 = arith.constant 5 : index
    %c16_261 = arith.constant 16 : index
    %c0_262 = arith.constant 0 : index
    %1060 = vector.load %arg2[%c5_260, %c16_261, %c0_262] : memref<13x32x128xf32, #tpu.memory_space<vmem>>, vector<1x8x128xf32>
    %1061 = vector.shape_cast %1060 : vector<1x8x128xf32> to vector<8x128xf32>
    %1062 = vector.shape_cast %1059 : vector<8x128xf32> to vector<1x8x128xf32>
    tpu.vector_store %arg2[%c5_260, %c16_261, %c0_262], %1062 {strides = array<i32>} : memref<13x32x128xf32, #tpu.memory_space<vmem>>, vector<1x8x128xf32>,
    %cst_263 = arith.constant -0.333333343 : f32
    %1063 = vector.broadcast %cst_263 : f32 to vector<8x128xf32>
    %1064 = arith.mulf %1063, %979 : vector<8x128xf32>
    %c6_264 = arith.constant 6 : index
    %c16_265 = arith.constant 16 : index
    %c0_266 = arith.constant 0 : index
    %1065 = vector.load %arg2[%c6_264, %c16_265, %c0_266] : memref<13x32x128xf32, #tpu.memory_space<vmem>>, vector<1x8x128xf32>
    %1066 = vector.shape_cast %1065 : vector<1x8x128xf32> to vector<8x128xf32>
    %1067 = vector.shape_cast %1064 : vector<8x128xf32> to vector<1x8x128xf32>
    tpu.vector_store %arg2[%c6_264, %c16_265, %c0_266], %1067 {strides = array<i32>} : memref<13x32x128xf32, #tpu.memory_space<vmem>>, vector<1x8x128xf32>,
    %c7_267 = arith.constant 7 : index
    %c16_268 = arith.constant 16 : index
    %c0_269 = arith.constant 0 : index
    %1068 = vector.load %arg2[%c7_267, %c16_268, %c0_269] : memref<13x32x128xf32, #tpu.memory_space<vmem>>, vector<1x8x128xf32>
    %1069 = vector.shape_cast %1068 : vector<1x8x128xf32> to vector<8x128xf32>
    %1070 = vector.shape_cast %1011 : vector<8x128xf32> to vector<1x8x128xf32>
    tpu.vector_store %arg2[%c7_267, %c16_268, %c0_269], %1070 {strides = array<i32>} : memref<13x32x128xf32, #tpu.memory_space<vmem>>, vector<1x8x128xf32>,
    %c8_270 = arith.constant 8 : index
    %c16_271 = arith.constant 16 : index
    %c0_272 = arith.constant 0 : index
    %1071 = vector.load %arg2[%c8_270, %c16_271, %c0_272] : memref<13x32x128xf32, #tpu.memory_space<vmem>>, vector<1x8x128xf32>
    %1072 = vector.shape_cast %1071 : vector<1x8x128xf32> to vector<8x128xf32>
    %1073 = vector.shape_cast %1000 : vector<8x128xf32> to vector<1x8x128xf32>
    tpu.vector_store %arg2[%c8_270, %c16_271, %c0_272], %1073 {strides = array<i32>} : memref<13x32x128xf32, #tpu.memory_space<vmem>>, vector<1x8x128xf32>,
    %c9_273 = arith.constant 9 : index
    %c16_274 = arith.constant 16 : index
    %c0_275 = arith.constant 0 : index
    %1074 = vector.load %arg2[%c9_273, %c16_274, %c0_275] : memref<13x32x128xf32, #tpu.memory_space<vmem>>, vector<1x8x128xf32>
    %1075 = vector.shape_cast %1074 : vector<1x8x128xf32> to vector<8x128xf32>
    %1076 = vector.shape_cast %991 : vector<8x128xf32> to vector<1x8x128xf32>
    tpu.vector_store %arg2[%c9_273, %c16_274, %c0_275], %1076 {strides = array<i32>} : memref<13x32x128xf32, #tpu.memory_space<vmem>>, vector<1x8x128xf32>,
    %c10_276 = arith.constant 10 : index
    %c16_277 = arith.constant 16 : index
    %c0_278 = arith.constant 0 : index
    %1077 = vector.load %arg2[%c10_276, %c16_277, %c0_278] : memref<13x32x128xf32, #tpu.memory_space<vmem>>, vector<1x8x128xf32>
    %1078 = vector.shape_cast %1077 : vector<1x8x128xf32> to vector<8x128xf32>
    %1079 = vector.shape_cast %984 : vector<8x128xf32> to vector<1x8x128xf32>
    tpu.vector_store %arg2[%c10_276, %c16_277, %c0_278], %1079 {strides = array<i32>} : memref<13x32x128xf32, #tpu.memory_space<vmem>>, vector<1x8x128xf32>,
    %c11_279 = arith.constant 11 : index
    %c16_280 = arith.constant 16 : index
    %c0_281 = arith.constant 0 : index
    %1080 = vector.load %arg2[%c11_279, %c16_280, %c0_281] : memref<13x32x128xf32, #tpu.memory_space<vmem>>, vector<1x8x128xf32>
    %1081 = vector.shape_cast %1080 : vector<1x8x128xf32> to vector<8x128xf32>
    %1082 = vector.shape_cast %979 : vector<8x128xf32> to vector<1x8x128xf32>
    tpu.vector_store %arg2[%c11_279, %c16_280, %c0_281], %1082 {strides = array<i32>} : memref<13x32x128xf32, #tpu.memory_space<vmem>>, vector<1x8x128xf32>,
    %c12_282 = arith.constant 12 : index
    %c16_283 = arith.constant 16 : index
    %c0_284 = arith.constant 0 : index
    %1083 = vector.load %arg2[%c12_282, %c16_283, %c0_284] : memref<13x32x128xf32, #tpu.memory_space<vmem>>, vector<1x8x128xf32>
    %1084 = vector.shape_cast %1083 : vector<1x8x128xf32> to vector<8x128xf32>
    %1085 = vector.shape_cast %976 : vector<8x128xf32> to vector<1x8x128xf32>
    tpu.vector_store %arg2[%c12_282, %c16_283, %c0_284], %1085 {strides = array<i32>} : memref<13x32x128xf32, #tpu.memory_space<vmem>>, vector<1x8x128xf32>,
    %c2_285 = arith.constant 2 : index
    %c24 = arith.constant 24 : index
    %c0_286 = arith.constant 0 : index
    %1086 = vector.load %arg1[%c2_285, %c24, %c0_286] : memref<14x32x128xf32, #tpu.memory_space<vmem>>, vector<1x8x128xf32>
    %1087 = vector.shape_cast %1086 : vector<1x8x128xf32> to vector<8x128xf32>
    %c5_287 = arith.constant 5 : index
    %c24_288 = arith.constant 24 : index
    %c0_289 = arith.constant 0 : index
    %1088 = vector.load %arg1[%c5_287, %c24_288, %c0_289] : memref<14x32x128xf32, #tpu.memory_space<vmem>>, vector<1x8x128xf32>
    %1089 = vector.shape_cast %1088 : vector<1x8x128xf32> to vector<8x128xf32>
    %c9_290 = arith.constant 9 : index
    %c24_291 = arith.constant 24 : index
    %c0_292 = arith.constant 0 : index
    %1090 = vector.load %arg1[%c9_290, %c24_291, %c0_292] : memref<14x32x128xf32, #tpu.memory_space<vmem>>, vector<1x8x128xf32>
    %1091 = vector.shape_cast %1090 : vector<1x8x128xf32> to vector<8x128xf32>
    %c12_293 = arith.constant 12 : index
    %c24_294 = arith.constant 24 : index
    %c0_295 = arith.constant 0 : index
    %1092 = vector.load %arg1[%c12_293, %c24_294, %c0_295] : memref<14x32x128xf32, #tpu.memory_space<vmem>>, vector<1x8x128xf32>
    %1093 = vector.shape_cast %1092 : vector<1x8x128xf32> to vector<8x128xf32>
    %1094 = math.sin %1087 : vector<8x128xf32>
    %1095 = math.cos %1087 : vector<8x128xf32>
    %1096 = math.sin %1089 : vector<8x128xf32>
    %1097 = math.cos %1089 : vector<8x128xf32>
    %cst_296 = arith.constant 5.000000e-01 : f32
    %1098 = vector.broadcast %cst_296 : f32 to vector<8x128xf32>
    %1099 = arith.mulf %1098, %1094 : vector<8x128xf32>
    %cst_297 = arith.constant -5.000000e-01 : f32
    %1100 = vector.broadcast %cst_297 : f32 to vector<8x128xf32>
    %1101 = arith.mulf %1100, %1095 : vector<8x128xf32>
    %cst_298 = arith.constant 1.000000e+00 : f32
    %1102 = vector.broadcast %cst_298 : f32 to vector<8x128xf32>
    %1103 = arith.mulf %1102, %1094 : vector<8x128xf32>
    %cst_299 = arith.constant 1.000000e+00 : f32
    %1104 = vector.broadcast %cst_299 : f32 to vector<8x128xf32>
    %1105 = arith.mulf %1104, %1096 : vector<8x128xf32>
    %cst_300 = arith.constant -1.000000e+00 : f32
    %1106 = vector.broadcast %cst_300 : f32 to vector<8x128xf32>
    %1107 = arith.mulf %1106, %1095 : vector<8x128xf32>
    %cst_301 = arith.constant -1.000000e+00 : f32
    %1108 = vector.broadcast %cst_301 : f32 to vector<8x128xf32>
    %1109 = arith.mulf %1108, %1097 : vector<8x128xf32>
    %cst_302 = arith.constant 2.000000e+00 : f32
    %1110 = vector.broadcast %cst_302 : f32 to vector<8x128xf32>
    %1111 = arith.mulf %1110, %1096 : vector<8x128xf32>
    %cst_303 = arith.constant 1.000000e+00 : f32
    %1112 = vector.broadcast %cst_303 : f32 to vector<8x128xf32>
    %1113 = arith.mulf %1112, %1095 : vector<8x128xf32>
    %cst_304 = arith.constant 2.000000e+00 : f32
    %1114 = vector.broadcast %cst_304 : f32 to vector<8x128xf32>
    %1115 = arith.mulf %1114, %1097 : vector<8x128xf32>
    %cst_305 = arith.constant 1.200000e+01 : f32
    %1116 = vector.broadcast %cst_305 : f32 to vector<8x128xf32>
    %1117 = arith.mulf %1116, %1099 : vector<8x128xf32>
    %cst_306 = arith.constant 1.200000e+01 : f32
    %1118 = vector.broadcast %cst_306 : f32 to vector<8x128xf32>
    %1119 = arith.mulf %1118, %1101 : vector<8x128xf32>
    %cst_307 = arith.constant 1.200000e+01 : f32
    %1120 = vector.broadcast %cst_307 : f32 to vector<8x128xf32>
    %1121 = arith.mulf %1120, %1103 : vector<8x128xf32>
    %cst_308 = arith.constant 1.200000e+01 : f32
    %1122 = vector.broadcast %cst_308 : f32 to vector<8x128xf32>
    %1123 = arith.mulf %1122, %1107 : vector<8x128xf32>
    %cst_309 = arith.constant 1.200000e+01 : f32
    %1124 = vector.broadcast %cst_309 : f32 to vector<8x128xf32>
    %1125 = arith.mulf %1124, %1113 : vector<8x128xf32>
    %cst_310 = arith.constant 1.500000e+00 : f32
    %1126 = vector.broadcast %cst_310 : f32 to vector<8x128xf32>
    %1127 = arith.mulf %1126, %1105 : vector<8x128xf32>
    %cst_311 = arith.constant 1.500000e+00 : f32
    %1128 = vector.broadcast %cst_311 : f32 to vector<8x128xf32>
    %1129 = arith.mulf %1128, %1109 : vector<8x128xf32>
    %cst_312 = arith.constant 1.500000e+00 : f32
    %1130 = vector.broadcast %cst_312 : f32 to vector<8x128xf32>
    %1131 = arith.mulf %1130, %1111 : vector<8x128xf32>
    %cst_313 = arith.constant 1.500000e+00 : f32
    %1132 = vector.broadcast %cst_313 : f32 to vector<8x128xf32>
    %1133 = arith.mulf %1132, %1115 : vector<8x128xf32>
    %1134 = arith.mulf %1121, %1103 : vector<8x128xf32>
    %1135 = arith.mulf %1121, %1107 : vector<8x128xf32>
    %1136 = arith.mulf %1121, %1113 : vector<8x128xf32>
    %1137 = arith.mulf %1117, %1099 : vector<8x128xf32>
    %cst_314 = arith.constant 1.000000e+00 : f32
    %1138 = vector.broadcast %cst_314 : f32 to vector<8x128xf32>
    %1139 = arith.addf %1138, %1137 : vector<8x128xf32>
    %1140 = arith.mulf %1117, %1101 : vector<8x128xf32>
    %1141 = arith.mulf %1117, %1103 : vector<8x128xf32>
    %1142 = arith.mulf %1117, %1107 : vector<8x128xf32>
    %1143 = arith.mulf %1117, %1113 : vector<8x128xf32>
    %1144 = arith.mulf %1119, %1101 : vector<8x128xf32>
    %cst_315 = arith.constant 1.000000e+00 : f32
    %1145 = vector.broadcast %cst_315 : f32 to vector<8x128xf32>
    %1146 = arith.addf %1145, %1144 : vector<8x128xf32>
    %1147 = arith.mulf %1119, %1103 : vector<8x128xf32>
    %1148 = arith.mulf %1119, %1107 : vector<8x128xf32>
    %1149 = arith.mulf %1119, %1113 : vector<8x128xf32>
    %cst_316 = arith.constant 5.000000e-01 : f32
    %1150 = vector.broadcast %cst_316 : f32 to vector<8x128xf32>
    %1151 = arith.addf %1134, %1150 : vector<8x128xf32>
    %1152 = arith.mulf %1127, %1105 : vector<8x128xf32>
    %1153 = arith.addf %1151, %1152 : vector<8x128xf32>
    %1154 = arith.mulf %1127, %1109 : vector<8x128xf32>
    %1155 = arith.addf %1135, %1154 : vector<8x128xf32>
    %1156 = arith.mulf %1127, %1111 : vector<8x128xf32>
    %1157 = arith.addf %1134, %1156 : vector<8x128xf32>
    %1158 = arith.mulf %1127, %1115 : vector<8x128xf32>
    %1159 = arith.addf %1136, %1158 : vector<8x128xf32>
    %1160 = arith.mulf %1123, %1107 : vector<8x128xf32>
    %cst_317 = arith.constant 5.000000e-01 : f32
    %1161 = vector.broadcast %cst_317 : f32 to vector<8x128xf32>
    %1162 = arith.addf %1160, %1161 : vector<8x128xf32>
    %1163 = arith.mulf %1129, %1109 : vector<8x128xf32>
    %1164 = arith.addf %1162, %1163 : vector<8x128xf32>
    %1165 = arith.mulf %1129, %1111 : vector<8x128xf32>
    %1166 = arith.addf %1135, %1165 : vector<8x128xf32>
    %1167 = arith.mulf %1123, %1113 : vector<8x128xf32>
    %1168 = arith.mulf %1129, %1115 : vector<8x128xf32>
    %1169 = arith.addf %1167, %1168 : vector<8x128xf32>
    %1170 = arith.mulf %1131, %1111 : vector<8x128xf32>
    %1171 = arith.addf %1134, %1170 : vector<8x128xf32>
    %cst_318 = arith.constant 0.333333343 : f32
    %1172 = vector.broadcast %cst_318 : f32 to vector<8x128xf32>
    %1173 = arith.addf %1171, %1172 : vector<8x128xf32>
    %1174 = arith.mulf %1131, %1115 : vector<8x128xf32>
    %1175 = arith.addf %1136, %1174 : vector<8x128xf32>
    %1176 = arith.mulf %1125, %1113 : vector<8x128xf32>
    %1177 = arith.mulf %1133, %1115 : vector<8x128xf32>
    %1178 = arith.addf %1176, %1177 : vector<8x128xf32>
    %1179 = arith.mulf %1091, %1091 : vector<8x128xf32>
    %1180 = arith.mulf %1093, %1093 : vector<8x128xf32>
    %cst_319 = arith.constant 1.000000e+00 : f32
    %1181 = vector.broadcast %cst_319 : f32 to vector<8x128xf32>
    %1182 = arith.mulf %1181, %1095 : vector<8x128xf32>
    %1183 = arith.mulf %1179, %1182 : vector<8x128xf32>
    %cst_320 = arith.constant 1.000000e+00 : f32
    %1184 = vector.broadcast %cst_320 : f32 to vector<8x128xf32>
    %1185 = arith.mulf %1184, %1094 : vector<8x128xf32>
    %1186 = arith.mulf %1179, %1185 : vector<8x128xf32>
    %cst_321 = arith.constant 2.000000e+00 : f32
    %1187 = vector.broadcast %cst_321 : f32 to vector<8x128xf32>
    %1188 = arith.mulf %1187, %1097 : vector<8x128xf32>
    %1189 = arith.mulf %1180, %1188 : vector<8x128xf32>
    %cst_322 = arith.constant 2.000000e+00 : f32
    %1190 = vector.broadcast %cst_322 : f32 to vector<8x128xf32>
    %1191 = arith.mulf %1190, %1096 : vector<8x128xf32>
    %1192 = arith.mulf %1180, %1191 : vector<8x128xf32>
    %cst_323 = arith.constant 5.000000e-01 : f32
    %1193 = vector.broadcast %cst_323 : f32 to vector<8x128xf32>
    %1194 = arith.mulf %1193, %1183 : vector<8x128xf32>
    %cst_324 = arith.constant 5.000000e-01 : f32
    %1195 = vector.broadcast %cst_324 : f32 to vector<8x128xf32>
    %1196 = arith.mulf %1195, %1186 : vector<8x128xf32>
    %cst_325 = arith.constant 9.800000e+00 : f32
    %1197 = vector.broadcast %cst_325 : f32 to vector<8x128xf32>
    %1198 = arith.subf %1196, %1197 : vector<8x128xf32>
    %cst_326 = arith.constant 5.000000e-01 : f32
    %1199 = vector.broadcast %cst_326 : f32 to vector<8x128xf32>
    %1200 = arith.mulf %1199, %1189 : vector<8x128xf32>
    %1201 = arith.addf %1183, %1200 : vector<8x128xf32>
    %cst_327 = arith.constant 5.000000e-01 : f32
    %1202 = vector.broadcast %cst_327 : f32 to vector<8x128xf32>
    %1203 = arith.mulf %1202, %1192 : vector<8x128xf32>
    %1204 = arith.addf %1186, %1203 : vector<8x128xf32>
    %cst_328 = arith.constant 9.800000e+00 : f32
    %1205 = vector.broadcast %cst_328 : f32 to vector<8x128xf32>
    %1206 = arith.subf %1204, %1205 : vector<8x128xf32>
    %1207 = arith.addf %1183, %1189 : vector<8x128xf32>
    %cst_329 = arith.constant 0.000000e+00 : f32
    %1208 = vector.broadcast %cst_329 : f32 to vector<8x128xf32>
    %1209 = arith.subf %1208, %1186 : vector<8x128xf32>
    %1210 = arith.subf %1209, %1192 : vector<8x128xf32>
    %cst_330 = arith.constant 1.000000e+00 : f32
    %1211 = vector.broadcast %cst_330 : f32 to vector<8x128xf32>
    %1212 = arith.divf %1211, %1139 : vector<8x128xf32>
    %1213 = arith.mulf %1140, %1212 : vector<8x128xf32>
    %1214 = arith.mulf %1213, %1140 : vector<8x128xf32>
    %1215 = arith.subf %1146, %1214 : vector<8x128xf32>
    %1216 = arith.mulf %1213, %1141 : vector<8x128xf32>
    %1217 = arith.subf %1147, %1216 : vector<8x128xf32>
    %1218 = arith.mulf %1213, %1142 : vector<8x128xf32>
    %1219 = arith.subf %1148, %1218 : vector<8x128xf32>
    %1220 = arith.mulf %1213, %1141 : vector<8x128xf32>
    %1221 = arith.subf %1147, %1220 : vector<8x128xf32>
    %1222 = arith.mulf %1213, %1143 : vector<8x128xf32>
    %1223 = arith.subf %1149, %1222 : vector<8x128xf32>
    %1224 = arith.mulf %1213, %1194 : vector<8x128xf32>
    %1225 = arith.subf %1198, %1224 : vector<8x128xf32>
    %1226 = arith.mulf %1141, %1212 : vector<8x128xf32>
    %1227 = arith.mulf %1226, %1141 : vector<8x128xf32>
    %1228 = arith.subf %1153, %1227 : vector<8x128xf32>
    %1229 = arith.mulf %1226, %1142 : vector<8x128xf32>
    %1230 = arith.subf %1155, %1229 : vector<8x128xf32>
    %1231 = arith.mulf %1226, %1141 : vector<8x128xf32>
    %1232 = arith.subf %1157, %1231 : vector<8x128xf32>
    %1233 = arith.mulf %1226, %1143 : vector<8x128xf32>
    %1234 = arith.subf %1159, %1233 : vector<8x128xf32>
    %1235 = arith.mulf %1226, %1194 : vector<8x128xf32>
    %1236 = arith.subf %1201, %1235 : vector<8x128xf32>
    %1237 = arith.mulf %1142, %1212 : vector<8x128xf32>
    %1238 = arith.mulf %1237, %1142 : vector<8x128xf32>
    %1239 = arith.subf %1164, %1238 : vector<8x128xf32>
    %1240 = arith.mulf %1237, %1141 : vector<8x128xf32>
    %1241 = arith.subf %1166, %1240 : vector<8x128xf32>
    %1242 = arith.mulf %1237, %1143 : vector<8x128xf32>
    %1243 = arith.subf %1169, %1242 : vector<8x128xf32>
    %1244 = arith.mulf %1237, %1194 : vector<8x128xf32>
    %1245 = arith.subf %1206, %1244 : vector<8x128xf32>
    %1246 = arith.mulf %1141, %1212 : vector<8x128xf32>
    %1247 = arith.mulf %1246, %1141 : vector<8x128xf32>
    %1248 = arith.subf %1173, %1247 : vector<8x128xf32>
    %1249 = arith.mulf %1246, %1143 : vector<8x128xf32>
    %1250 = arith.subf %1175, %1249 : vector<8x128xf32>
    %1251 = arith.mulf %1246, %1194 : vector<8x128xf32>
    %1252 = arith.subf %1207, %1251 : vector<8x128xf32>
    %1253 = arith.mulf %1143, %1212 : vector<8x128xf32>
    %1254 = arith.mulf %1253, %1143 : vector<8x128xf32>
    %1255 = arith.subf %1178, %1254 : vector<8x128xf32>
    %1256 = arith.mulf %1253, %1194 : vector<8x128xf32>
    %1257 = arith.subf %1210, %1256 : vector<8x128xf32>
    %cst_331 = arith.constant 1.000000e+00 : f32
    %1258 = vector.broadcast %cst_331 : f32 to vector<8x128xf32>
    %1259 = arith.divf %1258, %1215 : vector<8x128xf32>
    %1260 = arith.mulf %1217, %1259 : vector<8x128xf32>
    %1261 = arith.mulf %1260, %1217 : vector<8x128xf32>
    %1262 = arith.subf %1228, %1261 : vector<8x128xf32>
    %1263 = arith.mulf %1260, %1219 : vector<8x128xf32>
    %1264 = arith.subf %1230, %1263 : vector<8x128xf32>
    %1265 = arith.mulf %1260, %1221 : vector<8x128xf32>
    %1266 = arith.subf %1232, %1265 : vector<8x128xf32>
    %1267 = arith.mulf %1260, %1223 : vector<8x128xf32>
    %1268 = arith.subf %1234, %1267 : vector<8x128xf32>
    %1269 = arith.mulf %1260, %1225 : vector<8x128xf32>
    %1270 = arith.subf %1236, %1269 : vector<8x128xf32>
    %1271 = arith.mulf %1219, %1259 : vector<8x128xf32>
    %1272 = arith.mulf %1271, %1219 : vector<8x128xf32>
    %1273 = arith.subf %1239, %1272 : vector<8x128xf32>
    %1274 = arith.mulf %1271, %1221 : vector<8x128xf32>
    %1275 = arith.subf %1241, %1274 : vector<8x128xf32>
    %1276 = arith.mulf %1271, %1223 : vector<8x128xf32>
    %1277 = arith.subf %1243, %1276 : vector<8x128xf32>
    %1278 = arith.mulf %1271, %1225 : vector<8x128xf32>
    %1279 = arith.subf %1245, %1278 : vector<8x128xf32>
    %1280 = arith.mulf %1221, %1259 : vector<8x128xf32>
    %1281 = arith.mulf %1280, %1221 : vector<8x128xf32>
    %1282 = arith.subf %1248, %1281 : vector<8x128xf32>
    %1283 = arith.mulf %1280, %1223 : vector<8x128xf32>
    %1284 = arith.subf %1250, %1283 : vector<8x128xf32>
    %1285 = arith.mulf %1280, %1225 : vector<8x128xf32>
    %1286 = arith.subf %1252, %1285 : vector<8x128xf32>
    %1287 = arith.mulf %1223, %1259 : vector<8x128xf32>
    %1288 = arith.mulf %1287, %1223 : vector<8x128xf32>
    %1289 = arith.subf %1255, %1288 : vector<8x128xf32>
    %1290 = arith.mulf %1287, %1225 : vector<8x128xf32>
    %1291 = arith.subf %1257, %1290 : vector<8x128xf32>
    %cst_332 = arith.constant 1.000000e+00 : f32
    %1292 = vector.broadcast %cst_332 : f32 to vector<8x128xf32>
    %1293 = arith.divf %1292, %1262 : vector<8x128xf32>
    %1294 = arith.mulf %1264, %1293 : vector<8x128xf32>
    %1295 = arith.mulf %1294, %1264 : vector<8x128xf32>
    %1296 = arith.subf %1273, %1295 : vector<8x128xf32>
    %1297 = arith.mulf %1294, %1266 : vector<8x128xf32>
    %1298 = arith.subf %1275, %1297 : vector<8x128xf32>
    %1299 = arith.mulf %1294, %1268 : vector<8x128xf32>
    %1300 = arith.subf %1277, %1299 : vector<8x128xf32>
    %1301 = arith.mulf %1294, %1270 : vector<8x128xf32>
    %1302 = arith.subf %1279, %1301 : vector<8x128xf32>
    %1303 = arith.mulf %1266, %1293 : vector<8x128xf32>
    %1304 = arith.mulf %1303, %1266 : vector<8x128xf32>
    %1305 = arith.subf %1282, %1304 : vector<8x128xf32>
    %1306 = arith.mulf %1303, %1268 : vector<8x128xf32>
    %1307 = arith.subf %1284, %1306 : vector<8x128xf32>
    %1308 = arith.mulf %1303, %1270 : vector<8x128xf32>
    %1309 = arith.subf %1286, %1308 : vector<8x128xf32>
    %1310 = arith.mulf %1268, %1293 : vector<8x128xf32>
    %1311 = arith.mulf %1310, %1268 : vector<8x128xf32>
    %1312 = arith.subf %1289, %1311 : vector<8x128xf32>
    %1313 = arith.mulf %1310, %1270 : vector<8x128xf32>
    %1314 = arith.subf %1291, %1313 : vector<8x128xf32>
    %cst_333 = arith.constant 1.000000e+00 : f32
    %1315 = vector.broadcast %cst_333 : f32 to vector<8x128xf32>
    %1316 = arith.divf %1315, %1296 : vector<8x128xf32>
    %1317 = arith.mulf %1298, %1316 : vector<8x128xf32>
    %1318 = arith.mulf %1317, %1298 : vector<8x128xf32>
    %1319 = arith.subf %1305, %1318 : vector<8x128xf32>
    %1320 = arith.mulf %1317, %1300 : vector<8x128xf32>
    %1321 = arith.subf %1307, %1320 : vector<8x128xf32>
    %1322 = arith.mulf %1317, %1302 : vector<8x128xf32>
    %1323 = arith.subf %1309, %1322 : vector<8x128xf32>
    %1324 = arith.mulf %1300, %1316 : vector<8x128xf32>
    %1325 = arith.mulf %1324, %1300 : vector<8x128xf32>
    %1326 = arith.subf %1312, %1325 : vector<8x128xf32>
    %1327 = arith.mulf %1324, %1302 : vector<8x128xf32>
    %1328 = arith.subf %1314, %1327 : vector<8x128xf32>
    %cst_334 = arith.constant 1.000000e+00 : f32
    %1329 = vector.broadcast %cst_334 : f32 to vector<8x128xf32>
    %1330 = arith.divf %1329, %1319 : vector<8x128xf32>
    %1331 = arith.mulf %1321, %1330 : vector<8x128xf32>
    %1332 = arith.mulf %1331, %1321 : vector<8x128xf32>
    %1333 = arith.subf %1326, %1332 : vector<8x128xf32>
    %1334 = arith.mulf %1331, %1323 : vector<8x128xf32>
    %1335 = arith.subf %1328, %1334 : vector<8x128xf32>
    %cst_335 = arith.constant 1.000000e+00 : f32
    %1336 = vector.broadcast %cst_335 : f32 to vector<8x128xf32>
    %1337 = arith.divf %1336, %1333 : vector<8x128xf32>
    %1338 = arith.mulf %1335, %1337 : vector<8x128xf32>
    %1339 = arith.mulf %1321, %1338 : vector<8x128xf32>
    %1340 = arith.subf %1323, %1339 : vector<8x128xf32>
    %1341 = arith.mulf %1340, %1330 : vector<8x128xf32>
    %1342 = arith.mulf %1298, %1341 : vector<8x128xf32>
    %1343 = arith.subf %1302, %1342 : vector<8x128xf32>
    %1344 = arith.mulf %1300, %1338 : vector<8x128xf32>
    %1345 = arith.subf %1343, %1344 : vector<8x128xf32>
    %1346 = arith.mulf %1345, %1316 : vector<8x128xf32>
    %1347 = arith.mulf %1264, %1346 : vector<8x128xf32>
    %1348 = arith.subf %1270, %1347 : vector<8x128xf32>
    %1349 = arith.mulf %1266, %1341 : vector<8x128xf32>
    %1350 = arith.subf %1348, %1349 : vector<8x128xf32>
    %1351 = arith.mulf %1268, %1338 : vector<8x128xf32>
    %1352 = arith.subf %1350, %1351 : vector<8x128xf32>
    %1353 = arith.mulf %1352, %1293 : vector<8x128xf32>
    %1354 = arith.mulf %1217, %1353 : vector<8x128xf32>
    %1355 = arith.subf %1225, %1354 : vector<8x128xf32>
    %1356 = arith.mulf %1219, %1346 : vector<8x128xf32>
    %1357 = arith.subf %1355, %1356 : vector<8x128xf32>
    %1358 = arith.mulf %1221, %1341 : vector<8x128xf32>
    %1359 = arith.subf %1357, %1358 : vector<8x128xf32>
    %1360 = arith.mulf %1223, %1338 : vector<8x128xf32>
    %1361 = arith.subf %1359, %1360 : vector<8x128xf32>
    %1362 = arith.mulf %1361, %1259 : vector<8x128xf32>
    %1363 = arith.mulf %1140, %1362 : vector<8x128xf32>
    %1364 = arith.subf %1194, %1363 : vector<8x128xf32>
    %1365 = arith.mulf %1141, %1353 : vector<8x128xf32>
    %1366 = arith.subf %1364, %1365 : vector<8x128xf32>
    %1367 = arith.mulf %1142, %1346 : vector<8x128xf32>
    %1368 = arith.subf %1366, %1367 : vector<8x128xf32>
    %1369 = arith.mulf %1141, %1341 : vector<8x128xf32>
    %1370 = arith.subf %1368, %1369 : vector<8x128xf32>
    %1371 = arith.mulf %1143, %1338 : vector<8x128xf32>
    %1372 = arith.subf %1370, %1371 : vector<8x128xf32>
    %1373 = arith.mulf %1372, %1212 : vector<8x128xf32>
    %1374 = arith.mulf %1099, %1373 : vector<8x128xf32>
    %1375 = arith.mulf %1101, %1362 : vector<8x128xf32>
    %1376 = arith.addf %1374, %1375 : vector<8x128xf32>
    %1377 = arith.addf %1353, %1341 : vector<8x128xf32>
    %1378 = arith.mulf %1103, %1377 : vector<8x128xf32>
    %1379 = arith.addf %1376, %1378 : vector<8x128xf32>
    %1380 = arith.mulf %1107, %1346 : vector<8x128xf32>
    %1381 = arith.addf %1379, %1380 : vector<8x128xf32>
    %1382 = arith.mulf %1113, %1338 : vector<8x128xf32>
    %1383 = arith.addf %1381, %1382 : vector<8x128xf32>
    %1384 = arith.mulf %1105, %1353 : vector<8x128xf32>
    %1385 = arith.mulf %1109, %1346 : vector<8x128xf32>
    %1386 = arith.addf %1384, %1385 : vector<8x128xf32>
    %1387 = arith.mulf %1111, %1341 : vector<8x128xf32>
    %1388 = arith.addf %1386, %1387 : vector<8x128xf32>
    %1389 = arith.mulf %1115, %1338 : vector<8x128xf32>
    %1390 = arith.addf %1388, %1389 : vector<8x128xf32>
    %cst_336 = arith.constant -1.000000e+00 : f32
    %1391 = vector.broadcast %cst_336 : f32 to vector<8x128xf32>
    %1392 = arith.mulf %1391, %1373 : vector<8x128xf32>
    %c0_337 = arith.constant 0 : index
    %c24_338 = arith.constant 24 : index
    %c0_339 = arith.constant 0 : index
    %1393 = vector.load %arg2[%c0_337, %c24_338, %c0_339] : memref<13x32x128xf32, #tpu.memory_space<vmem>>, vector<1x8x128xf32>
    %1394 = vector.shape_cast %1393 : vector<1x8x128xf32> to vector<8x128xf32>
    %1395 = vector.shape_cast %1392 : vector<8x128xf32> to vector<1x8x128xf32>
    tpu.vector_store %arg2[%c0_337, %c24_338, %c0_339], %1395 {strides = array<i32>} : memref<13x32x128xf32, #tpu.memory_space<vmem>>, vector<1x8x128xf32>,
    %cst_340 = arith.constant 1.000000e+00 : f32
    %1396 = vector.broadcast %cst_340 : f32 to vector<8x128xf32>
    %1397 = arith.mulf %1396, %1362 : vector<8x128xf32>
    %cst_341 = arith.constant -9.800000e+00 : f32
    %1398 = vector.broadcast %cst_341 : f32 to vector<8x128xf32>
    %1399 = arith.subf %1398, %1397 : vector<8x128xf32>
    %c1_342 = arith.constant 1 : index
    %c24_343 = arith.constant 24 : index
    %c0_344 = arith.constant 0 : index
    %1400 = vector.load %arg2[%c1_342, %c24_343, %c0_344] : memref<13x32x128xf32, #tpu.memory_space<vmem>>, vector<1x8x128xf32>
    %1401 = vector.shape_cast %1400 : vector<1x8x128xf32> to vector<8x128xf32>
    %1402 = vector.shape_cast %1399 : vector<8x128xf32> to vector<1x8x128xf32>
    tpu.vector_store %arg2[%c1_342, %c24_343, %c0_344], %1402 {strides = array<i32>} : memref<13x32x128xf32, #tpu.memory_space<vmem>>, vector<1x8x128xf32>,
    %cst_345 = arith.constant -1.200000e+01 : f32
    %1403 = vector.broadcast %cst_345 : f32 to vector<8x128xf32>
    %1404 = arith.mulf %1403, %1383 : vector<8x128xf32>
    %c2_346 = arith.constant 2 : index
    %c24_347 = arith.constant 24 : index
    %c0_348 = arith.constant 0 : index
    %1405 = vector.load %arg2[%c2_346, %c24_347, %c0_348] : memref<13x32x128xf32, #tpu.memory_space<vmem>>, vector<1x8x128xf32>
    %1406 = vector.shape_cast %1405 : vector<1x8x128xf32> to vector<8x128xf32>
    %1407 = vector.shape_cast %1404 : vector<8x128xf32> to vector<1x8x128xf32>
    tpu.vector_store %arg2[%c2_346, %c24_347, %c0_348], %1407 {strides = array<i32>} : memref<13x32x128xf32, #tpu.memory_space<vmem>>, vector<1x8x128xf32>,
    %cst_349 = arith.constant -5.000000e-01 : f32
    %1408 = vector.broadcast %cst_349 : f32 to vector<8x128xf32>
    %1409 = arith.mulf %1408, %1353 : vector<8x128xf32>
    %c3_350 = arith.constant 3 : index
    %c24_351 = arith.constant 24 : index
    %c0_352 = arith.constant 0 : index
    %1410 = vector.load %arg2[%c3_350, %c24_351, %c0_352] : memref<13x32x128xf32, #tpu.memory_space<vmem>>, vector<1x8x128xf32>
    %1411 = vector.shape_cast %1410 : vector<1x8x128xf32> to vector<8x128xf32>
    %1412 = vector.shape_cast %1409 : vector<8x128xf32> to vector<1x8x128xf32>
    tpu.vector_store %arg2[%c3_350, %c24_351, %c0_352], %1412 {strides = array<i32>} : memref<13x32x128xf32, #tpu.memory_space<vmem>>, vector<1x8x128xf32>,
    %cst_353 = arith.constant 5.000000e-01 : f32
    %1413 = vector.broadcast %cst_353 : f32 to vector<8x128xf32>
    %1414 = arith.mulf %1413, %1346 : vector<8x128xf32>
    %cst_354 = arith.constant -9.800000e+00 : f32
    %1415 = vector.broadcast %cst_354 : f32 to vector<8x128xf32>
    %1416 = arith.subf %1415, %1414 : vector<8x128xf32>
    %c4_355 = arith.constant 4 : index
    %c24_356 = arith.constant 24 : index
    %c0_357 = arith.constant 0 : index
    %1417 = vector.load %arg2[%c4_355, %c24_356, %c0_357] : memref<13x32x128xf32, #tpu.memory_space<vmem>>, vector<1x8x128xf32>
    %1418 = vector.shape_cast %1417 : vector<1x8x128xf32> to vector<8x128xf32>
    %1419 = vector.shape_cast %1416 : vector<8x128xf32> to vector<1x8x128xf32>
    tpu.vector_store %arg2[%c4_355, %c24_356, %c0_357], %1419 {strides = array<i32>} : memref<13x32x128xf32, #tpu.memory_space<vmem>>, vector<1x8x128xf32>,
    %cst_358 = arith.constant -1.500000e+00 : f32
    %1420 = vector.broadcast %cst_358 : f32 to vector<8x128xf32>
    %1421 = arith.mulf %1420, %1390 : vector<8x128xf32>
    %c5_359 = arith.constant 5 : index
    %c24_360 = arith.constant 24 : index
    %c0_361 = arith.constant 0 : index
    %1422 = vector.load %arg2[%c5_359, %c24_360, %c0_361] : memref<13x32x128xf32, #tpu.memory_space<vmem>>, vector<1x8x128xf32>
    %1423 = vector.shape_cast %1422 : vector<1x8x128xf32> to vector<8x128xf32>
    %1424 = vector.shape_cast %1421 : vector<8x128xf32> to vector<1x8x128xf32>
    tpu.vector_store %arg2[%c5_359, %c24_360, %c0_361], %1424 {strides = array<i32>} : memref<13x32x128xf32, #tpu.memory_space<vmem>>, vector<1x8x128xf32>,
    %cst_362 = arith.constant -0.333333343 : f32
    %1425 = vector.broadcast %cst_362 : f32 to vector<8x128xf32>
    %1426 = arith.mulf %1425, %1341 : vector<8x128xf32>
    %c6_363 = arith.constant 6 : index
    %c24_364 = arith.constant 24 : index
    %c0_365 = arith.constant 0 : index
    %1427 = vector.load %arg2[%c6_363, %c24_364, %c0_365] : memref<13x32x128xf32, #tpu.memory_space<vmem>>, vector<1x8x128xf32>
    %1428 = vector.shape_cast %1427 : vector<1x8x128xf32> to vector<8x128xf32>
    %1429 = vector.shape_cast %1426 : vector<8x128xf32> to vector<1x8x128xf32>
    tpu.vector_store %arg2[%c6_363, %c24_364, %c0_365], %1429 {strides = array<i32>} : memref<13x32x128xf32, #tpu.memory_space<vmem>>, vector<1x8x128xf32>,
    %c7_366 = arith.constant 7 : index
    %c24_367 = arith.constant 24 : index
    %c0_368 = arith.constant 0 : index
    %1430 = vector.load %arg2[%c7_366, %c24_367, %c0_368] : memref<13x32x128xf32, #tpu.memory_space<vmem>>, vector<1x8x128xf32>
    %1431 = vector.shape_cast %1430 : vector<1x8x128xf32> to vector<8x128xf32>
    %1432 = vector.shape_cast %1373 : vector<8x128xf32> to vector<1x8x128xf32>
    tpu.vector_store %arg2[%c7_366, %c24_367, %c0_368], %1432 {strides = array<i32>} : memref<13x32x128xf32, #tpu.memory_space<vmem>>, vector<1x8x128xf32>,
    %c8_369 = arith.constant 8 : index
    %c24_370 = arith.constant 24 : index
    %c0_371 = arith.constant 0 : index
    %1433 = vector.load %arg2[%c8_369, %c24_370, %c0_371] : memref<13x32x128xf32, #tpu.memory_space<vmem>>, vector<1x8x128xf32>
    %1434 = vector.shape_cast %1433 : vector<1x8x128xf32> to vector<8x128xf32>
    %1435 = vector.shape_cast %1362 : vector<8x128xf32> to vector<1x8x128xf32>
    tpu.vector_store %arg2[%c8_369, %c24_370, %c0_371], %1435 {strides = array<i32>} : memref<13x32x128xf32, #tpu.memory_space<vmem>>, vector<1x8x128xf32>,
    %c9_372 = arith.constant 9 : index
    %c24_373 = arith.constant 24 : index
    %c0_374 = arith.constant 0 : index
    %1436 = vector.load %arg2[%c9_372, %c24_373, %c0_374] : memref<13x32x128xf32, #tpu.memory_space<vmem>>, vector<1x8x128xf32>
    %1437 = vector.shape_cast %1436 : vector<1x8x128xf32> to vector<8x128xf32>
    %1438 = vector.shape_cast %1353 : vector<8x128xf32> to vector<1x8x128xf32>
    tpu.vector_store %arg2[%c9_372, %c24_373, %c0_374], %1438 {strides = array<i32>} : memref<13x32x128xf32, #tpu.memory_space<vmem>>, vector<1x8x128xf32>,
    %c10_375 = arith.constant 10 : index
    %c24_376 = arith.constant 24 : index
    %c0_377 = arith.constant 0 : index
    %1439 = vector.load %arg2[%c10_375, %c24_376, %c0_377] : memref<13x32x128xf32, #tpu.memory_space<vmem>>, vector<1x8x128xf32>
    %1440 = vector.shape_cast %1439 : vector<1x8x128xf32> to vector<8x128xf32>
    %1441 = vector.shape_cast %1346 : vector<8x128xf32> to vector<1x8x128xf32>
    tpu.vector_store %arg2[%c10_375, %c24_376, %c0_377], %1441 {strides = array<i32>} : memref<13x32x128xf32, #tpu.memory_space<vmem>>, vector<1x8x128xf32>,
    %c11_378 = arith.constant 11 : index
    %c24_379 = arith.constant 24 : index
    %c0_380 = arith.constant 0 : index
    %1442 = vector.load %arg2[%c11_378, %c24_379, %c0_380] : memref<13x32x128xf32, #tpu.memory_space<vmem>>, vector<1x8x128xf32>
    %1443 = vector.shape_cast %1442 : vector<1x8x128xf32> to vector<8x128xf32>
    %1444 = vector.shape_cast %1341 : vector<8x128xf32> to vector<1x8x128xf32>
    tpu.vector_store %arg2[%c11_378, %c24_379, %c0_380], %1444 {strides = array<i32>} : memref<13x32x128xf32, #tpu.memory_space<vmem>>, vector<1x8x128xf32>,
    %c12_381 = arith.constant 12 : index
    %c24_382 = arith.constant 24 : index
    %c0_383 = arith.constant 0 : index
    %1445 = vector.load %arg2[%c12_381, %c24_382, %c0_383] : memref<13x32x128xf32, #tpu.memory_space<vmem>>, vector<1x8x128xf32>
    %1446 = vector.shape_cast %1445 : vector<1x8x128xf32> to vector<8x128xf32>
    %1447 = vector.shape_cast %1338 : vector<8x128xf32> to vector<1x8x128xf32>
    tpu.vector_store %arg2[%c12_381, %c24_382, %c0_383], %1447 {strides = array<i32>} : memref<13x32x128xf32, #tpu.memory_space<vmem>>, vector<1x8x128xf32>,
    return
  }
  func.func @transform_0(%arg0: i32) -> (i32, i32, i32) {
    %c0_i32 = arith.constant 0 : i32
    %c0_i32_0 = arith.constant 0 : i32
    %c0_i32_1 = arith.constant 0 : i32
    return %c0_i32, %arg0, %c0_i32_0 : i32, i32, i32
  }
  func.func @transform_1(%arg0: i32) -> (i32, i32, i32) {
    %c0_i32 = arith.constant 0 : i32
    %c0_i32_0 = arith.constant 0 : i32
    %c0_i32_1 = arith.constant 0 : i32
    return %c0_i32, %arg0, %c0_i32_0 : i32, i32, i32
  }
}

</mosaic_0001>

<llo_original>
// kernel: slider_crank_dae.1
$region0: #{slider_crank_dae.1}
  #allocation0 [shape = 'u32[]', space=smem, size = 0x4, offset = 0x4, fixed_abs, tag = 'smem constant byte address 0x4 - core index']
  #allocation1 [shape = 'u32[144,128]{1,0:T(1,128)}', space=vmem, size = 0x12000, scoped, tag = 'internal scratch']
  %s0 = inlined_call_operand.vmem [shape: f32[14,32,128], index: 0, kind: input, shape index: {}]
  %s1 = inlined_call_operand.vmem [shape: f32[13,32,128], index: 1, kind: output, shape index: {}]
  %s2 = sld [smem:[#allocation0]]
  $region14: #{slider_crank_dae.1} parent=0
    _
  %s4 = ssub.s32 1, %s2
  %s5 = scalar_select 0, %s4, %s2
  // Predicated region
  $region2: #{slider_crank_dae.1} parent=0 // pred_check
    _
  $region3: #{slider_crank_dae.1} parent=0 // pred_check_branch
    %7 = sbr.rel (0) target = $region5
  $region4: #{slider_crank_dae.1} parent=0 // pred_region
    _
  $region5: #{slider_crank_dae.1} parent=0 // pred_fallthru
    _
  %s8 = scalar_lea.vmem %s0, 64
  %v9 = vld [vmem:[%s8] sm:$0xff]
  %s10 = scalar_lea.vmem %s0, 160
  %v11 = vld [vmem:[%s10] sm:$0xff]
  %s12 = scalar_lea.vmem %s0, 288
  %v13 = vld [vmem:[%s12] sm:$0xff]
  %s14 = scalar_lea.vmem %s0, 384
  %v15 = vld [vmem:[%s14] sm:$0xff]
  %v16 = vand.u32 2147483647, %v9
  %vm17 = vcmp.le.f32.partialorder %v16, 0.7853982
  %vm18 = vcmp.lt.s32.totalorder %v9, 0
  %v19 = vand.u32 %v9, 2139095040
  %v20 = vshrl.u32 %v19, 23
  %v21 = vsub.s32 %v20, 127
  %v22 = vand.u32 2147483647, %v9
  %v23 = vand.u32 %v22, 8388607
  %v24 = vor.u32 %v23, 8388608
  %v25 = vsub.s32 0, %v24
  %v26 = vadd.s32 %v21, 1
  %vm27 = vcmp.gt.s32.totalorder %v26, 0
  %v28 = vsel %vm27, %v26, 0
  %v29 = vshrl.u32 %v28, 5
  %v30 = vand.u32 %v28, 31
  %v31 = vsub.s32 32, %v30
  %v32 = vshrl.u32 683565275, %v31
  %v33 = vshll.u32 683565275, %v30
  %v34 = vshrl.u32 2475754826, %v31
  %v35 = vor.u32 %v33, %v34
  %v36 = vshll.u32 2475754826, %v30
  %v37 = vshrl.u32 2131351028, %v31
  %v38 = vor.u32 %v36, %v37
  %v39 = vshll.u32 2131351028, %v30
  %v40 = vshrl.u32 2102212464, %v31
  %v41 = vor.u32 %v39, %v40
  %v42 = vshll.u32 2102212464, %v30
  %v43 = vshrl.u32 920167782, %v31
  %v44 = vor.u32 %v42, %v43
  %v45 = vshll.u32 920167782, %v30
  %v46 = vshrl.u32 1326507024, %v31
  %v47 = vor.u32 %v45, %v46
  %vm48 = vcmp.lt.s32.totalorder %v29, 1
  %vm49 = vcmp.lt.s32.totalorder %v29, 2
  %vm50 = vcmp.lt.s32.totalorder %v29, 3
  %vm51 = vcmp.lt.s32.totalorder %v29, 4
  %v52 = vsel %vm48, %v32, %v35
  %v53 = vsel %vm51, %v41, 2102212464
  %v54 = vsel %vm50, %v38, %v53
  %v55 = vsel %vm49, %v52, %v54
  %v56 = vsel %vm48, %v35, %v38
  %v57 = vsel %vm51, %v44, 920167782
  %v58 = vsel %vm50, %v41, %v57
  %v59 = vsel %vm49, %v56, %v58
  %v60 = vsel %vm48, %v38, %v41
  %v61 = vsel %vm51, %v47, 1326507024
  %v62 = vsel %vm50, %v44, %v61
  %v63 = vsel %vm49, %v60, %v62
  %v64 = vshll.u32 %v24, 8
  %v65 = vmul.u32.u64.compose %v64, %v63
  %v66 = vextract.low.u32 %v65
  %v67 = vextract.high.u32 %v65
  %v68 = vmul.u32.u64.compose %v64, %v59
  %v69 = vextract.low.u32 %v68
  %v70 = vextract.high.u32 %v68
  %v71 = vmul.u32 %v64, %v55
  %v72 = vadd.s32 %v67, %v69
  %vm73 = vc.u32 %v67, %v69
  %v74 = vadd.s32 %v70, 1
  %v75 = vsel %vm73, %v74, %v70
  %v76 = vadd.s32 %v71, %v75
  %v77 = vadd.s32 %v76, 536870912
  %v78 = vshrl.u32 %v77, 30
  %v79 = vshll.u32 %v78, 30
  %v80 = vsub.s32 %v76, %v79
  %vm81 = vcmp.lt.s32.totalorder %v80, 0
  %v82 = vsub.s32 0, %v80
  %v83 = vsel %vm81, %v82, %v80
  %v84 = vclz %v83
  %v85 = vsub.s32 %v84, 2
  %vm86 = vcmp.gt.s32.totalorder 0, %v85
  %v87 = vsel %vm86, 0, %v85
  %v88 = vsub.s32 32, %v87
  %v89 = vshll.u32 %v80, %v87
  %v90 = vshrl.u32 %v72, %v88
  %v91 = vor.u32 %v89, %v90
  %v92 = vsub.s32 4294967266, %v87
  %v93 = vadd.s32 %v92, 127
  %v94 = vshll.u32 %v93, 23
  %v95 = vor.u32 4788187, %v94
  %v96 = vand.u32 2147483647, %v95
  %v98 = vcvt.s32.f32 %v91
  %v99 = vmul.f32 %v98, %v96
  %v100 = vxor.u32 %v99, 2147483648
  %v101 = vsel %vm18, %v100, %v99
  %v102 = vsub.s32 4, %v78
  %v103 = vsel %vm18, %v102, %v78
  %v104 = vsel %vm17, %v9, %v101
  %v105 = vsel %vm17, 0, %v103
  %v106 = vcosq.f32.pop %v104
  %v107 = vsinq.f32.pop %v104
  %vm108 = vweird.f32 %v9
  %v109 = vadd.s32 %v105, 3
  %v110 = vand.u32 %v109, 3
  %vm111 = vcmp.lt.s32.totalorder %v110, 2
  %vm112 = vcmp.eq.s32.totalorder %v110, 0
  %v113 = vxor.u32 %v107, 2147483648
  %v114 = vsel %vm112, %v106, %v113
  %vm115 = vcmp.eq.s32.totalorder %v110, 2
  %v116 = vxor.u32 %v106, 2147483648
  %v117 = vsel %vm115, %v116, %v107
  %v118 = vsel %vm111, %v114, %v117
  %v119 = vsel %vm108, nan, %v118
  %v120 = vand.u32 2147483647, %v9
  %vm121 = vcmp.le.f32.partialorder %v120, 0.7853982
  %vm122 = vcmp.lt.s32.totalorder %v9, 0
  %v123 = vand.u32 %v9, 2139095040
  %v124 = vshrl.u32 %v123, 23
  %v125 = vsub.s32 %v124, 127
  %v126 = vand.u32 2147483647, %v9
  %v127 = vand.u32 %v126, 8388607
  %v128 = vor.u32 %v127, 8388608
  %v129 = vsub.s32 0, %v128
  %v130 = vadd.s32 %v125, 1
  %vm131 = vcmp.gt.s32.totalorder %v130, 0
  %v132 = vsel %vm131, %v130, 0
  %v133 = vshrl.u32 %v132, 5
  %v134 = vand.u32 %v132, 31
  %v135 = vsub.s32 32, %v134
  %v136 = vshrl.u32 683565275, %v135
  %v137 = vshll.u32 683565275, %v134
  %v138 = vshrl.u32 2475754826, %v135
  %v139 = vor.u32 %v137, %v138
  %v140 = vshll.u32 2475754826, %v134
  %v141 = vshrl.u32 2131351028, %v135
  %v142 = vor.u32 %v140, %v141
  %v143 = vshll.u32 2131351028, %v134
  %v144 = vshrl.u32 2102212464, %v135
  %v145 = vor.u32 %v143, %v144
  %v146 = vshll.u32 2102212464, %v134
  %v147 = vshrl.u32 920167782, %v135
  %v148 = vor.u32 %v146, %v147
  %v149 = vshll.u32 920167782, %v134
  %v150 = vshrl.u32 1326507024, %v135
  %v151 = vor.u32 %v149, %v150
  %vm152 = vcmp.lt.s32.totalorder %v133, 1
  %vm153 = vcmp.lt.s32.totalorder %v133, 2
  %vm154 = vcmp.lt.s32.totalorder %v133, 3
  %vm155 = vcmp.lt.s32.totalorder %v133, 4
  %v156 = vsel %vm152, %v136, %v139
  %v157 = vsel %vm155, %v145, 2102212464
  %v158 = vsel %vm154, %v142, %v157
  %v159 = vsel %vm153, %v156, %v158
  %v160 = vsel %vm152, %v139, %v142
  %v161 = vsel %vm155, %v148, 920167782
  %v162 = vsel %vm154, %v145, %v161
  %v163 = vsel %vm153, %v160, %v162
  %v164 = vsel %vm152, %v142, %v145
  %v165 = vsel %vm155, %v151, 1326507024
  %v166 = vsel %vm154, %v148, %v165
  %v167 = vsel %vm153, %v164, %v166
  %v168 = vshll.u32 %v128, 8
  %v169 = vmul.u32.u64.compose %v168, %v167
  %v170 = vextract.low.u32 %v169
  %v171 = vextract.high.u32 %v169
  %v172 = vmul.u32.u64.compose %v168, %v163
  %v173 = vextract.low.u32 %v172
  %v174 = vextract.high.u32 %v172
  %v175 = vmul.u32 %v168, %v159
  %v176 = vadd.s32 %v171, %v173
  %vm177 = vc.u32 %v171, %v173
  %v178 = vadd.s32 %v174, 1
  %v179 = vsel %vm177, %v178, %v174
  %v180 = vadd.s32 %v175, %v179
  %v181 = vadd.s32 %v180, 536870912
  %v182 = vshrl.u32 %v181, 30
  %v183 = vshll.u32 %v182, 30
  %v184 = vsub.s32 %v180, %v183
  %vm185 = vcmp.lt.s32.totalorder %v184, 0
  %v186 = vsub.s32 0, %v184
  %v187 = vsel %vm185, %v186, %v184
  %v188 = vclz %v187
  %v189 = vsub.s32 %v188, 2
  %vm190 = vcmp.gt.s32.totalorder 0, %v189
  %v191 = vsel %vm190, 0, %v189
  %v192 = vsub.s32 32, %v191
  %v193 = vshll.u32 %v184, %v191
  %v194 = vshrl.u32 %v176, %v192
  %v195 = vor.u32 %v193, %v194
  %v196 = vsub.s32 4294967266, %v191
  %v197 = vadd.s32 %v196, 127
  %v198 = vshll.u32 %v197, 23
  %v199 = vor.u32 4788187, %v198
  %v200 = vand.u32 2147483647, %v199
  %v202 = vcvt.s32.f32 %v195
  %v203 = vmul.f32 %v202, %v200
  %v204 = vxor.u32 %v203, 2147483648
  %v205 = vsel %vm122, %v204, %v203
  %v206 = vsub.s32 4, %v182
  %v207 = vsel %vm122, %v206, %v182
  %v208 = vsel %vm121, %v9, %v205
  %v209 = vsel %vm121, 0, %v207
  %v210 = vcosq.f32.pop %v208
  %v211 = vsinq.f32.pop %v208
  %vm212 = vweird.f32 %v9
  %v213 = vand.u32 %v209, 3
  %vm214 = vcmp.lt.s32.totalorder %v213, 2
  %vm215 = vcmp.eq.s32.totalorder %v213, 0
  %v216 = vxor.u32 %v211, 2147483648
  %v217 = vsel %vm215, %v210, %v216
  %vm218 = vcmp.eq.s32.totalorder %v213, 2
  %v219 = vxor.u32 %v210, 2147483648
  %v220 = vsel %vm218, %v219, %v211
  %v221 = vsel %vm214, %v217, %v220
  %v222 = vsel %vm212, nan, %v221
  %v223 = vand.u32 2147483647, %v11
  %vm224 = vcmp.le.f32.partialorder %v223, 0.7853982
  %vm225 = vcmp.lt.s32.totalorder %v11, 0
  %v226 = vand.u32 %v11, 2139095040
  %v227 = vshrl.u32 %v226, 23
  %v228 = vsub.s32 %v227, 127
  %v229 = vand.u32 2147483647, %v11
  %v230 = vand.u32 %v229, 8388607
  %v231 = vor.u32 %v230, 8388608
  %v232 = vsub.s32 0, %v231
  %v233 = vadd.s32 %v228, 1
  %vm234 = vcmp.gt.s32.totalorder %v233, 0
  %v235 = vsel %vm234, %v233, 0
  %v236 = vshrl.u32 %v235, 5
  %v237 = vand.u32 %v235, 31
  %v238 = vsub.s32 32, %v237
  %v239 = vshrl.u32 683565275, %v238
  %v240 = vshll.u32 683565275, %v237
  %v241 = vshrl.u32 2475754826, %v238
  %v242 = vor.u32 %v240, %v241
  %v243 = vshll.u32 2475754826, %v237
  %v244 = vshrl.u32 2131351028, %v238
  %v245 = vor.u32 %v243, %v244
  %v246 = vshll.u32 2131351028, %v237
  %v247 = vshrl.u32 2102212464, %v238
  %v248 = vor.u32 %v246, %v247
  %v249 = vshll.u32 2102212464, %v237
  %v250 = vshrl.u32 920167782, %v238
  %v251 = vor.u32 %v249, %v250
  %v252 = vshll.u32 920167782, %v237
  %v253 = vshrl.u32 1326507024, %v238
  %v254 = vor.u32 %v252, %v253
  %vm255 = vcmp.lt.s32.totalorder %v236, 1
  %vm256 = vcmp.lt.s32.totalorder %v236, 2
  %vm257 = vcmp.lt.s32.totalorder %v236, 3
  %vm258 = vcmp.lt.s32.totalorder %v236, 4
  %v259 = vsel %vm255, %v239, %v242
  %v260 = vsel %vm258, %v248, 2102212464
  %v261 = vsel %vm257, %v245, %v260
  %v262 = vsel %vm256, %v259, %v261
  %v263 = vsel %vm255, %v242, %v245
  %v264 = vsel %vm258, %v251, 920167782
  %v265 = vsel %vm257, %v248, %v264
  %v266 = vsel %vm256, %v263, %v265
  %v267 = vsel %vm255, %v245, %v248
  %v268 = vsel %vm258, %v254, 1326507024
  %v269 = vsel %vm257, %v251, %v268
  %v270 = vsel %vm256, %v267, %v269
  %v271 = vshll.u32 %v231, 8
  %v272 = vmul.u32.u64.compose %v271, %v270
  %v273 = vextract.low.u32 %v272
  %v274 = vextract.high.u32 %v272
  %v275 = vmul.u32.u64.compose %v271, %v266
  %v276 = vextract.low.u32 %v275
  %v277 = vextract.high.u32 %v275
  %v278 = vmul.u32 %v271, %v262
  %v279 = vadd.s32 %v274, %v276
  %vm280 = vc.u32 %v274, %v276
  %v281 = vadd.s32 %v277, 1
  %v282 = vsel %vm280, %v281, %v277
  %v283 = vadd.s32 %v278, %v282
  %v284 = vadd.s32 %v283, 536870912
  %v285 = vshrl.u32 %v284, 30
  %v286 = vshll.u32 %v285, 30
  %v287 = vsub.s32 %v283, %v286
  %vm288 = vcmp.lt.s32.totalorder %v287, 0
  %v289 = vsub.s32 0, %v287
  %v290 = vsel %vm288, %v289, %v287
  %v291 = vclz %v290
  %v292 = vsub.s32 %v291, 2
  %vm293 = vcmp.gt.s32.totalorder 0, %v292
  %v294 = vsel %vm293, 0, %v292
  %v295 = vsub.s32 32, %v294
  %v296 = vshll.u32 %v287, %v294
  %v297 = vshrl.u32 %v279, %v295
  %v298 = vor.u32 %v296, %v297
  %v299 = vsub.s32 4294967266, %v294
  %v300 = vadd.s32 %v299, 127
  %v301 = vshll.u32 %v300, 23
  %v302 = vor.u32 4788187, %v301
  %v303 = vand.u32 2147483647, %v302
  %v305 = vcvt.s32.f32 %v298
  %v306 = vmul.f32 %v305, %v303
  %v307 = vxor.u32 %v306, 2147483648
  %v308 = vsel %vm225, %v307, %v306
  %v309 = vsub.s32 4, %v285
  %v310 = vsel %vm225, %v309, %v285
  %v311 = vsel %vm224, %v11, %v308
  %v312 = vsel %vm224, 0, %v310
  %v313 = vcosq.f32.pop %v311
  %v314 = vsinq.f32.pop %v311
  %vm315 = vweird.f32 %v11
  %v316 = vadd.s32 %v312, 3
  %v317 = vand.u32 %v316, 3
  %vm318 = vcmp.lt.s32.totalorder %v317, 2
  %vm319 = vcmp.eq.s32.totalorder %v317, 0
  %v320 = vxor.u32 %v314, 2147483648
  %v321 = vsel %vm319, %v313, %v320
  %vm322 = vcmp.eq.s32.totalorder %v317, 2
  %v323 = vxor.u32 %v313, 2147483648
  %v324 = vsel %vm322, %v323, %v314
  %v325 = vsel %vm318, %v321, %v324
  %v326 = vsel %vm315, nan, %v325
  %v327 = vand.u32 2147483647, %v11
  %vm328 = vcmp.le.f32.partialorder %v327, 0.7853982
  %vm329 = vcmp.lt.s32.totalorder %v11, 0
  %v330 = vand.u32 %v11, 2139095040
  %v331 = vshrl.u32 %v330, 23
  %v332 = vsub.s32 %v331, 127
  %v333 = vand.u32 2147483647, %v11
  %v334 = vand.u32 %v333, 8388607
  %v335 = vor.u32 %v334, 8388608
  %v336 = vsub.s32 0, %v335
  %v337 = vadd.s32 %v332, 1
  %vm338 = vcmp.gt.s32.totalorder %v337, 0
  %v339 = vsel %vm338, %v337, 0
  %v340 = vshrl.u32 %v339, 5
  %v341 = vand.u32 %v339, 31
  %v342 = vsub.s32 32, %v341
  %v343 = vshrl.u32 683565275, %v342
  %v344 = vshll.u32 683565275, %v341
  %v345 = vshrl.u32 2475754826, %v342
  %v346 = vor.u32 %v344, %v345
  %v347 = vshll.u32 2475754826, %v341
  %v348 = vshrl.u32 2131351028, %v342
  %v349 = vor.u32 %v347, %v348
  %v350 = vshll.u32 2131351028, %v341
  %v351 = vshrl.u32 2102212464, %v342
  %v352 = vor.u32 %v350, %v351
  %v353 = vshll.u32 2102212464, %v341
  %v354 = vshrl.u32 920167782, %v342
  %v355 = vor.u32 %v353, %v354
  %v356 = vshll.u32 920167782, %v341
  %v357 = vshrl.u32 1326507024, %v342
  %v358 = vor.u32 %v356, %v357
  %vm359 = vcmp.lt.s32.totalorder %v340, 1
  %vm360 = vcmp.lt.s32.totalorder %v340, 2
  %vm361 = vcmp.lt.s32.totalorder %v340, 3
  %vm362 = vcmp.lt.s32.totalorder %v340, 4
  %v363 = vsel %vm359, %v343, %v346
  %v364 = vsel %vm362, %v352, 2102212464
  %v365 = vsel %vm361, %v349, %v364
  %v366 = vsel %vm360, %v363, %v365
  %v367 = vsel %vm359, %v346, %v349
  %v368 = vsel %vm362, %v355, 920167782
  %v369 = vsel %vm361, %v352, %v368
  %v370 = vsel %vm360, %v367, %v369
  %v371 = vsel %vm359, %v349, %v352
  %v372 = vsel %vm362, %v358, 1326507024
  %v373 = vsel %vm361, %v355, %v372
  %v374 = vsel %vm360, %v371, %v373
  %v375 = vshll.u32 %v335, 8
  %v376 = vmul.u32.u64.compose %v375, %v374
  %v377 = vextract.low.u32 %v376
  %v378 = vextract.high.u32 %v376
  %v379 = vmul.u32.u64.compose %v375, %v370
  %v380 = vextract.low.u32 %v379
  %v381 = vextract.high.u32 %v379
  %v382 = vmul.u32 %v375, %v366
  %v383 = vadd.s32 %v378, %v380
  %vm384 = vc.u32 %v378, %v380
  %v385 = vadd.s32 %v381, 1
  %v386 = vsel %vm384, %v385, %v381
  %v387 = vadd.s32 %v382, %v386
  %v388 = vadd.s32 %v387, 536870912
  %v389 = vshrl.u32 %v388, 30
  %v390 = vshll.u32 %v389, 30
  %v391 = vsub.s32 %v387, %v390
  %vm392 = vcmp.lt.s32.totalorder %v391, 0
  %v393 = vsub.s32 0, %v391
  %v394 = vsel %vm392, %v393, %v391
  %v395 = vclz %v394
  %v396 = vsub.s32 %v395, 2
  %vm397 = vcmp.gt.s32.totalorder 0, %v396
  %v398 = vsel %vm397, 0, %v396
  %v399 = vsub.s32 32, %v398
  %v400 = vshll.u32 %v391, %v398
  %v401 = vshrl.u32 %v383, %v399
  %v402 = vor.u32 %v400, %v401
  %v403 = vsub.s32 4294967266, %v398
  %v404 = vadd.s32 %v403, 127
  %v405 = vshll.u32 %v404, 23
  %v406 = vor.u32 4788187, %v405
  %v407 = vand.u32 2147483647, %v406
  %v409 = vcvt.s32.f32 %v402
  %v410 = vmul.f32 %v409, %v407
  %v411 = vxor.u32 %v410, 2147483648
  %v412 = vsel %vm329, %v411, %v410
  %v413 = vsub.s32 4, %v389
  %v414 = vsel %vm329, %v413, %v389
  %v415 = vsel %vm328, %v11, %v412
  %v416 = vsel %vm328, 0, %v414
  %v417 = vcosq.f32.pop %v415
  %v418 = vsinq.f32.pop %v415
  %vm419 = vweird.f32 %v11
  %v420 = vand.u32 %v416, 3
  %vm421 = vcmp.lt.s32.totalorder %v420, 2
  %vm422 = vcmp.eq.s32.totalorder %v420, 0
  %v423 = vxor.u32 %v418, 2147483648
  %v424 = vsel %vm422, %v417, %v423
  %vm425 = vcmp.eq.s32.totalorder %v420, 2
  %v426 = vxor.u32 %v417, 2147483648
  %v427 = vsel %vm425, %v426, %v418
  %v428 = vsel %vm421, %v424, %v427
  %v429 = vsel %vm419, nan, %v428
  %v430 = vmul.f32 %v119, 0.5
  %v431 = vmul.f32 %v222, -0.5
  %v432 = vmul.f32 %v222, -1.0
  %v433 = vmul.f32 %v429, -1.0
  %v434 = vmul.f32 %v326, 2.0
  %v435 = vmul.f32 %v429, 2.0
  %v436 = vmul.f32 %v430, 12.0
  %v437 = vmul.f32 %v431, 12.0
  %v438 = vmul.f32 %v119, 12.0
  %v439 = vmul.f32 %v432, 12.0
  %v440 = vmul.f32 %v222, 12.0
  %v441 = vmul.f32 %v326, 1.5
  %v442 = vmul.f32 %v433, 1.5
  %v443 = vmul.f32 %v434, 1.5
  %v444 = vmul.f32 %v435, 1.5
  %v445 = vmul.f32 %v438, %v119
  %v446 = vmul.f32 %v438, %v432
  %v447 = vmul.f32 %v438, %v222
  %v448 = vmul.f32 %v436, %v430
  %v449 = vadd.f32 %v448, 1.0
  %v450 = vmul.f32 %v436, %v431
  %v451 = vmul.f32 %v436, %v119
  %v452 = vmul.f32 %v436, %v432
  %v453 = vmul.f32 %v436, %v222
  %v454 = vmul.f32 %v437, %v431
  %v455 = vadd.f32 %v454, 1.0
  %v456 = vmul.f32 %v437, %v119
  %v457 = vmul.f32 %v437, %v432
  %v458 = vmul.f32 %v437, %v222
  %v459 = vadd.f32 %v445, 0.5
  %v460 = vmul.f32 %v441, %v326
  %v461 = vadd.f32 %v459, %v460
  %v462 = vmul.f32 %v441, %v433
  %v463 = vadd.f32 %v446, %v462
  %v464 = vmul.f32 %v441, %v434
  %v465 = vadd.f32 %v445, %v464
  %v466 = vmul.f32 %v441, %v435
  %v467 = vadd.f32 %v447, %v466
  %v468 = vmul.f32 %v439, %v432
  %v469 = vadd.f32 %v468, 0.5
  %v470 = vmul.f32 %v442, %v433
  %v471 = vadd.f32 %v469, %v470
  %v472 = vmul.f32 %v442, %v434
  %v473 = vadd.f32 %v446, %v472
  %v474 = vmul.f32 %v439, %v222
  %v475 = vmul.f32 %v442, %v435
  %v476 = vadd.f32 %v474, %v475
  %v477 = vmul.f32 %v443, %v434
  %v478 = vadd.f32 %v445, %v477
  %v479 = vadd.f32 %v478, 0.33333334
  %v480 = vmul.f32 %v443, %v435
  %v481 = vadd.f32 %v447, %v480
  %v482 = vmul.f32 %v440, %v222
  %v483 = vmul.f32 %v444, %v435
  %v484 = vadd.f32 %v482, %v483
  %v485 = vmul.f32 %v13, %v13
  %v486 = vmul.f32 %v15, %v15
  %v487 = vmul.f32 %v485, %v222
  %v488 = vmul.f32 %v485, %v119
  %v489 = vmul.f32 %v486, %v435
  %v490 = vmul.f32 %v486, %v434
  %v491 = vmul.f32 %v487, 0.5
  %v492 = vmul.f32 %v488, 0.5
  %v493 = vsub.f32 %v492, 9.8
  %v494 = vmul.f32 %v489, 0.5
  %v495 = vadd.f32 %v487, %v494
  %v496 = vmul.f32 %v490, 0.5
  %v497 = vadd.f32 %v488, %v496
  %v498 = vsub.f32 %v497, 9.8
  %v499 = vadd.f32 %v487, %v489
  %v500 = vsub.f32 0.0, %v488
  %v501 = vsub.f32 %v500, %v490
  %v502 = vrcp.pop %v449
  %v503 = vmul.f32 1.0, %v502
  %v504 = vmul.f32 %v450, %v503
  %v505 = vmul.f32 %v504, %v450
  %v506 = vsub.f32 %v455, %v505
  %v507 = vmul.f32 %v504, %v451
  %v508 = vsub.f32 %v456, %v507
  %v509 = vmul.f32 %v504, %v452
  %v510 = vsub.f32 %v457, %v509
  %v511 = vmul.f32 %v504, %v453
  %v512 = vsub.f32 %v458, %v511
  %v513 = vmul.f32 %v504, %v491
  %v514 = vsub.f32 %v493, %v513
  %v515 = vmul.f32 %v451, %v503
  %v516 = vmul.f32 %v515, %v451
  %v517 = vsub.f32 %v461, %v516
  %v518 = vmul.f32 %v515, %v452
  %v519 = vsub.f32 %v463, %v518
  %v520 = vsub.f32 %v465, %v516
  %v521 = vmul.f32 %v515, %v453
  %v522 = vsub.f32 %v467, %v521
  %v523 = vmul.f32 %v515, %v491
  %v524 = vsub.f32 %v495, %v523
  %v525 = vmul.f32 %v452, %v503
  %v526 = vmul.f32 %v525, %v452
  %v527 = vsub.f32 %v471, %v526
  %v528 = vmul.f32 %v525, %v451
  %v529 = vsub.f32 %v473, %v528
  %v530 = vmul.f32 %v525, %v453
  %v531 = vsub.f32 %v476, %v530
  %v532 = vmul.f32 %v525, %v491
  %v533 = vsub.f32 %v498, %v532
  %v534 = vsub.f32 %v479, %v516
  %v535 = vsub.f32 %v481, %v521
  %v536 = vsub.f32 %v499, %v523
  %v537 = vmul.f32 %v453, %v503
  %v538 = vmul.f32 %v537, %v453
  %v539 = vsub.f32 %v484, %v538
  %v540 = vmul.f32 %v537, %v491
  %v541 = vsub.f32 %v501, %v540
  %v542 = vrcp.pop %v506
  %v543 = vmul.f32 1.0, %v542
  %v544 = vmul.f32 %v508, %v543
  %v545 = vmul.f32 %v544, %v508
  %v546 = vsub.f32 %v517, %v545
  %v547 = vmul.f32 %v544, %v510
  %v548 = vsub.f32 %v519, %v547
  %v549 = vsub.f32 %v520, %v545
  %v550 = vmul.f32 %v544, %v512
  %v551 = vsub.f32 %v522, %v550
  %v552 = vmul.f32 %v544, %v514
  %v553 = vsub.f32 %v524, %v552
  %v554 = vmul.f32 %v510, %v543
  %v555 = vmul.f32 %v554, %v510
  %v556 = vsub.f32 %v527, %v555
  %v557 = vmul.f32 %v554, %v508
  %v558 = vsub.f32 %v529, %v557
  %v559 = vmul.f32 %v554, %v512
  %v560 = vsub.f32 %v531, %v559
  %v561 = vmul.f32 %v554, %v514
  %v562 = vsub.f32 %v533, %v561
  %v563 = vsub.f32 %v534, %v545
  %v564 = vsub.f32 %v535, %v550
  %v565 = vsub.f32 %v536, %v552
  %v566 = vmul.f32 %v512, %v543
  %v567 = vmul.f32 %v566, %v512
  %v568 = vsub.f32 %v539, %v567
  %v569 = vmul.f32 %v566, %v514
  %v570 = vsub.f32 %v541, %v569
  %v571 = vrcp.pop %v546
  %v572 = vmul.f32 1.0, %v571
  %v573 = vmul.f32 %v548, %v572
  %v574 = vmul.f32 %v573, %v548
  %v575 = vsub.f32 %v556, %v574
  %v576 = vmul.f32 %v573, %v549
  %v577 = vsub.f32 %v558, %v576
  %v578 = vmul.f32 %v573, %v551
  %v579 = vsub.f32 %v560, %v578
  %v580 = vmul.f32 %v573, %v553
  %v581 = vsub.f32 %v562, %v580
  %v582 = vmul.f32 %v549, %v572
  %v583 = vmul.f32 %v582, %v549
  %v584 = vsub.f32 %v563, %v583
  %v585 = vmul.f32 %v582, %v551
  %v586 = vsub.f32 %v564, %v585
  %v587 = vmul.f32 %v582, %v553
  %v588 = vsub.f32 %v565, %v587
  %v589 = vmul.f32 %v551, %v572
  %v590 = vmul.f32 %v589, %v551
  %v591 = vsub.f32 %v568, %v590
  %v592 = vmul.f32 %v589, %v553
  %v593 = vsub.f32 %v570, %v592
  %v594 = vrcp.pop %v575
  %v595 = vmul.f32 1.0, %v594
  %v596 = vmul.f32 %v577, %v595
  %v597 = vmul.f32 %v596, %v577
  %v598 = vsub.f32 %v584, %v597
  %v599 = vmul.f32 %v596, %v579
  %v600 = vsub.f32 %v586, %v599
  %v601 = vmul.f32 %v596, %v581
  %v602 = vsub.f32 %v588, %v601
  %v603 = vmul.f32 %v579, %v595
  %v604 = vmul.f32 %v603, %v579
  %v605 = vsub.f32 %v591, %v604
  %v606 = vmul.f32 %v603, %v581
  %v607 = vsub.f32 %v593, %v606
  %v608 = vrcp.pop %v598
  %v609 = vmul.f32 1.0, %v608
  %v610 = vmul.f32 %v600, %v609
  %v611 = vmul.f32 %v610, %v600
  %v612 = vsub.f32 %v605, %v611
  %v613 = vmul.f32 %v610, %v602
  %v614 = vsub.f32 %v607, %v613
  %v615 = vrcp.pop %v612
  %v616 = vmul.f32 1.0, %v615
  %v617 = vmul.f32 %v614, %v616
  %v618 = vmul.f32 %v600, %v617
  %v619 = vsub.f32 %v602, %v618
  %v620 = vmul.f32 %v619, %v609
  %v621 = vmul.f32 %v577, %v620
  %v622 = vsub.f32 %v581, %v621
  %v623 = vmul.f32 %v579, %v617
  %v624 = vsub.f32 %v622, %v623
  %v625 = vmul.f32 %v624, %v595
  %v626 = vmul.f32 %v548, %v625
  %v627 = vsub.f32 %v553, %v626
  %v628 = vmul.f32 %v549, %v620
  %v629 = vsub.f32 %v627, %v628
  %v630 = vmul.f32 %v551, %v617
  %v631 = vsub.f32 %v629, %v630
  %v632 = vmul.f32 %v631, %v572
  %v633 = vmul.f32 %v508, %v632
  %v634 = vsub.f32 %v514, %v633
  %v635 = vmul.f32 %v510, %v625
  %v636 = vsub.f32 %v634, %v635
  %v637 = vmul.f32 %v508, %v620
  %v638 = vsub.f32 %v636, %v637
  %v639 = vmul.f32 %v512, %v617
  %v640 = vsub.f32 %v638, %v639
  %v641 = vmul.f32 %v640, %v543
  %v642 = vmul.f32 %v450, %v641
  %v643 = vsub.f32 %v491, %v642
  %v644 = vmul.f32 %v451, %v632
  %v645 = vsub.f32 %v643, %v644
  %v646 = vmul.f32 %v452, %v625
  %v647 = vsub.f32 %v645, %v646
  %v648 = vmul.f32 %v451, %v620
  %v649 = vsub.f32 %v647, %v648
  %v650 = vmul.f32 %v453, %v617
  %v651 = vsub.f32 %v649, %v650
  %v652 = vmul.f32 %v651, %v503
  %v653 = vmul.f32 %v430, %v652
  %v654 = vmul.f32 %v431, %v641
  %v655 = vadd.f32 %v653, %v654
  %v656 = vadd.f32 %v632, %v620
  %v657 = vmul.f32 %v119, %v656
  %v658 = vadd.f32 %v655, %v657
  %v659 = vmul.f32 %v432, %v625
  %v660 = vadd.f32 %v658, %v659
  %v661 = vmul.f32 %v222, %v617
  %v662 = vadd.f32 %v660, %v661
  %v663 = vmul.f32 %v326, %v632
  %v664 = vmul.f32 %v433, %v625
  %v665 = vadd.f32 %v663, %v664
  %v666 = vmul.f32 %v434, %v620
  %v667 = vadd.f32 %v665, %v666
  %v668 = vmul.f32 %v435, %v617
  %v669 = vadd.f32 %v667, %v668
  %v670 = vmul.f32 %v652, -1.0
  %671 = vst [vmem:[%s1] sm:$0xff] %v670
  %v672 = vsub.f32 -9.8, %v641
  %s673 = scalar_lea.vmem %s1, 32
  %674 = vst [vmem:[%s673] sm:$0xff] %v672
  %v675 = vmul.f32 %v662, -12.0
  %s676 = scalar_lea.vmem %s1, 64
  %677 = vst [vmem:[%s676] sm:$0xff] %v675
  %v678 = vmul.f32 %v632, -0.5
  %s679 = scalar_lea.vmem %s1, 96
  %680 = vst [vmem:[%s679] sm:$0xff] %v678
  %v681 = vmul.f32 %v625, 0.5
  %v682 = vsub.f32 -9.8, %v681
  %s683 = scalar_lea.vmem %s1, 128
  %684 = vst [vmem:[%s683] sm:$0xff] %v682
  %v685 = vmul.f32 %v669, -1.5
  %s686 = scalar_lea.vmem %s1, 160
  %687 = vst [vmem:[%s686] sm:$0xff] %v685
  %v688 = vmul.f32 %v620, -0.33333334
  %s689 = scalar_lea.vmem %s1, 192
  %690 = vst [vmem:[%s689] sm:$0xff] %v688
  %s691 = scalar_lea.vmem %s1, 224
  %692 = vst [vmem:[%s691] sm:$0xff] %v652
  %s693 = scalar_lea.vmem %s1, 256
  %694 = vst [vmem:[%s693] sm:$0xff] %v641
  %s695 = scalar_lea.vmem %s1, 288
  %696 = vst [vmem:[%s695] sm:$0xff] %v632
  %s697 = scalar_lea.vmem %s1, 320
  %698 = vst [vmem:[%s697] sm:$0xff] %v625
  %s699 = scalar_lea.vmem %s1, 352
  %700 = vst [vmem:[%s699] sm:$0xff] %v620
  %s701 = scalar_lea.vmem %s1, 384
  %702 = vst [vmem:[%s701] sm:$0xff] %v617
  %v703 = vld [vmem:[%s8 + $0x8] sm:$0xff]
  %v704 = vld [vmem:[%s10 + $0x8] sm:$0xff]
  %v705 = vld [vmem:[%s12 + $0x8] sm:$0xff]
  %v706 = vld [vmem:[%s14 + $0x8] sm:$0xff]
  %v707 = vand.u32 2147483647, %v703
  %vm708 = vcmp.le.f32.partialorder %v707, 0.7853982
  %vm709 = vcmp.lt.s32.totalorder %v703, 0
  %v710 = vand.u32 %v703, 2139095040
  %v711 = vshrl.u32 %v710, 23
  %v712 = vsub.s32 %v711, 127
  %v713 = vand.u32 2147483647, %v703
  %v714 = vand.u32 %v713, 8388607
  %v715 = vor.u32 %v714, 8388608
  %v716 = vsub.s32 0, %v715
  %v717 = vadd.s32 %v712, 1
  %vm718 = vcmp.gt.s32.totalorder %v717, 0
  %v719 = vsel %vm718, %v717, 0
  %v720 = vshrl.u32 %v719, 5
  %v721 = vand.u32 %v719, 31
  %v722 = vsub.s32 32, %v721
  %v723 = vshrl.u32 683565275, %v722
  %v724 = vshll.u32 683565275, %v721
  %v725 = vshrl.u32 2475754826, %v722
  %v726 = vor.u32 %v724, %v725
  %v727 = vshll.u32 2475754826, %v721
  %v728 = vshrl.u32 2131351028, %v722
  %v729 = vor.u32 %v727, %v728
  %v730 = vshll.u32 2131351028, %v721
  %v731 = vshrl.u32 2102212464, %v722
  %v732 = vor.u32 %v730, %v731
  %v733 = vshll.u32 2102212464, %v721
  %v734 = vshrl.u32 920167782, %v722
  %v735 = vor.u32 %v733, %v734
  %v736 = vshll.u32 920167782, %v721
  %v737 = vshrl.u32 1326507024, %v722
  %v738 = vor.u32 %v736, %v737
  %vm739 = vcmp.lt.s32.totalorder %v720, 1
  %vm740 = vcmp.lt.s32.totalorder %v720, 2
  %vm741 = vcmp.lt.s32.totalorder %v720, 3
  %vm742 = vcmp.lt.s32.totalorder %v720, 4
  %v743 = vsel %vm739, %v723, %v726
  %v744 = vsel %vm742, %v732, 2102212464
  %v745 = vsel %vm741, %v729, %v744
  %v746 = vsel %vm740, %v743, %v745
  %v747 = vsel %vm739, %v726, %v729
  %v748 = vsel %vm742, %v735, 920167782
  %v749 = vsel %vm741, %v732, %v748
  %v750 = vsel %vm740, %v747, %v749
  %v751 = vsel %vm739, %v729, %v732
  %v752 = vsel %vm742, %v738, 1326507024
  %v753 = vsel %vm741, %v735, %v752
  %v754 = vsel %vm740, %v751, %v753
  %v755 = vshll.u32 %v715, 8
  %v756 = vmul.u32.u64.compose %v755, %v754
  %v757 = vextract.low.u32 %v756
  %v758 = vextract.high.u32 %v756
  %v759 = vmul.u32.u64.compose %v755, %v750
  %v760 = vextract.low.u32 %v759
  %v761 = vextract.high.u32 %v759
  %v762 = vmul.u32 %v755, %v746
  %v763 = vadd.s32 %v758, %v760
  %vm764 = vc.u32 %v758, %v760
  %v765 = vadd.s32 %v761, 1
  %v766 = vsel %vm764, %v765, %v761
  %v767 = vadd.s32 %v762, %v766
  %v768 = vadd.s32 %v767, 536870912
  %v769 = vshrl.u32 %v768, 30
  %v770 = vshll.u32 %v769, 30
  %v771 = vsub.s32 %v767, %v770
  %vm772 = vcmp.lt.s32.totalorder %v771, 0
  %v773 = vsub.s32 0, %v771
  %v774 = vsel %vm772, %v773, %v771
  %v775 = vclz %v774
  %v776 = vsub.s32 %v775, 2
  %vm777 = vcmp.gt.s32.totalorder 0, %v776
  %v778 = vsel %vm777, 0, %v776
  %v779 = vsub.s32 32, %v778
  %v780 = vshll.u32 %v771, %v778
  %v781 = vshrl.u32 %v763, %v779
  %v782 = vor.u32 %v780, %v781
  %v783 = vsub.s32 4294967266, %v778
  %v784 = vadd.s32 %v783, 127
  %v785 = vshll.u32 %v784, 23
  %v786 = vor.u32 4788187, %v785
  %v787 = vand.u32 2147483647, %v786
  %v789 = vcvt.s32.f32 %v782
  %v790 = vmul.f32 %v789, %v787
  %v791 = vxor.u32 %v790, 2147483648
  %v792 = vsel %vm709, %v791, %v790
  %v793 = vsub.s32 4, %v769
  %v794 = vsel %vm709, %v793, %v769
  %v795 = vsel %vm708, %v703, %v792
  %v796 = vsel %vm708, 0, %v794
  %v797 = vcosq.f32.pop %v795
  %v798 = vsinq.f32.pop %v795
  %vm799 = vweird.f32 %v703
  %v800 = vadd.s32 %v796, 3
  %v801 = vand.u32 %v800, 3
  %vm802 = vcmp.lt.s32.totalorder %v801, 2
  %vm803 = vcmp.eq.s32.totalorder %v801, 0
  %v804 = vxor.u32 %v798, 2147483648
  %v805 = vsel %vm803, %v797, %v804
  %vm806 = vcmp.eq.s32.totalorder %v801, 2
  %v807 = vxor.u32 %v797, 2147483648
  %v808 = vsel %vm806, %v807, %v798
  %v809 = vsel %vm802, %v805, %v808
  %v810 = vsel %vm799, nan, %v809
  %v811 = vand.u32 2147483647, %v703
  %vm812 = vcmp.le.f32.partialorder %v811, 0.7853982
  %vm813 = vcmp.lt.s32.totalorder %v703, 0
  %v814 = vand.u32 %v703, 2139095040
  %v815 = vshrl.u32 %v814, 23
  %v816 = vsub.s32 %v815, 127
  %v817 = vand.u32 2147483647, %v703
  %v818 = vand.u32 %v817, 8388607
  %v819 = vor.u32 %v818, 8388608
  %v820 = vsub.s32 0, %v819
  %v821 = vadd.s32 %v816, 1
  %vm822 = vcmp.gt.s32.totalorder %v821, 0
  %v823 = vsel %vm822, %v821, 0
  %v824 = vshrl.u32 %v823, 5
  %v825 = vand.u32 %v823, 31
  %v826 = vsub.s32 32, %v825
  %v827 = vshrl.u32 683565275, %v826
  %v828 = vshll.u32 683565275, %v825
  %v829 = vshrl.u32 2475754826, %v826
  %v830 = vor.u32 %v828, %v829
  %v831 = vshll.u32 2475754826, %v825
  %v832 = vshrl.u32 2131351028, %v826
  %v833 = vor.u32 %v831, %v832
  %v834 = vshll.u32 2131351028, %v825
  %v835 = vshrl.u32 2102212464, %v826
  %v836 = vor.u32 %v834, %v835
  %v837 = vshll.u32 2102212464, %v825
  %v838 = vshrl.u32 920167782, %v826
  %v839 = vor.u32 %v837, %v838
  %v840 = vshll.u32 920167782, %v825
  %v841 = vshrl.u32 1326507024, %v826
  %v842 = vor.u32 %v840, %v841
  %vm843 = vcmp.lt.s32.totalorder %v824, 1
  %vm844 = vcmp.lt.s32.totalorder %v824, 2
  %vm845 = vcmp.lt.s32.totalorder %v824, 3
  %vm846 = vcmp.lt.s32.totalorder %v824, 4
  %v847 = vsel %vm843, %v827, %v830
  %v848 = vsel %vm846, %v836, 2102212464
  %v849 = vsel %vm845, %v833, %v848
  %v850 = vsel %vm844, %v847, %v849
  %v851 = vsel %vm843, %v830, %v833
  %v852 = vsel %vm846, %v839, 920167782
  %v853 = vsel %vm845, %v836, %v852
  %v854 = vsel %vm844, %v851, %v853
  %v855 = vsel %vm843, %v833, %v836
  %v856 = vsel %vm846, %v842, 1326507024
  %v857 = vsel %vm845, %v839, %v856
  %v858 = vsel %vm844, %v855, %v857
  %v859 = vshll.u32 %v819, 8
  %v860 = vmul.u32.u64.compose %v859, %v858
  %v861 = vextract.low.u32 %v860
  %v862 = vextract.high.u32 %v860
  %v863 = vmul.u32.u64.compose %v859, %v854
  %v864 = vextract.low.u32 %v863
  %v865 = vextract.high.u32 %v863
  %v866 = vmul.u32 %v859, %v850
  %v867 = vadd.s32 %v862, %v864
  %vm868 = vc.u32 %v862, %v864
  %v869 = vadd.s32 %v865, 1
  %v870 = vsel %vm868, %v869, %v865
  %v871 = vadd.s32 %v866, %v870
  %v872 = vadd.s32 %v871, 536870912
  %v873 = vshrl.u32 %v872, 30
  %v874 = vshll.u32 %v873, 30
  %v875 = vsub.s32 %v871, %v874
  %vm876 = vcmp.lt.s32.totalorder %v875, 0
  %v877 = vsub.s32 0, %v875
  %v878 = vsel %vm876, %v877, %v875
  %v879 = vclz %v878
  %v880 = vsub.s32 %v879, 2
  %vm881 = vcmp.gt.s32.totalorder 0, %v880
  %v882 = vsel %vm881, 0, %v880
  %v883 = vsub.s32 32, %v882
  %v884 = vshll.u32 %v875, %v882
  %v885 = vshrl.u32 %v867, %v883
  %v886 = vor.u32 %v884, %v885
  %v887 = vsub.s32 4294967266, %v882
  %v888 = vadd.s32 %v887, 127
  %v889 = vshll.u32 %v888, 23
  %v890 = vor.u32 4788187, %v889
  %v891 = vand.u32 2147483647, %v890
  %v893 = vcvt.s32.f32 %v886
  %v894 = vmul.f32 %v893, %v891
  %v895 = vxor.u32 %v894, 2147483648
  %v896 = vsel %vm813, %v895, %v894
  %v897 = vsub.s32 4, %v873
  %v898 = vsel %vm813, %v897, %v873
  %v899 = vsel %vm812, %v703, %v896
  %v900 = vsel %vm812, 0, %v898
  %v901 = vcosq.f32.pop %v899
  %v902 = vsinq.f32.pop %v899
  %vm903 = vweird.f32 %v703
  %v904 = vand.u32 %v900, 3
  %vm905 = vcmp.lt.s32.totalorder %v904, 2
  %vm906 = vcmp.eq.s32.totalorder %v904, 0
  %v907 = vxor.u32 %v902, 2147483648
  %v908 = vsel %vm906, %v901, %v907
  %vm909 = vcmp.eq.s32.totalorder %v904, 2
  %v910 = vxor.u32 %v901, 2147483648
  %v911 = vsel %vm909, %v910, %v902
  %v912 = vsel %vm905, %v908, %v911
  %v913 = vsel %vm903, nan, %v912
  %v914 = vand.u32 2147483647, %v704
  %vm915 = vcmp.le.f32.partialorder %v914, 0.7853982
  %vm916 = vcmp.lt.s32.totalorder %v704, 0
  %v917 = vand.u32 %v704, 2139095040
  %v918 = vshrl.u32 %v917, 23
  %v919 = vsub.s32 %v918, 127
  %v920 = vand.u32 2147483647, %v704
  %v921 = vand.u32 %v920, 8388607
  %v922 = vor.u32 %v921, 8388608
  %v923 = vsub.s32 0, %v922
  %v924 = vadd.s32 %v919, 1
  %vm925 = vcmp.gt.s32.totalorder %v924, 0
  %v926 = vsel %vm925, %v924, 0
  %v927 = vshrl.u32 %v926, 5
  %v928 = vand.u32 %v926, 31
  %v929 = vsub.s32 32, %v928
  %v930 = vshrl.u32 683565275, %v929
  %v931 = vshll.u32 683565275, %v928
  %v932 = vshrl.u32 2475754826, %v929
  %v933 = vor.u32 %v931, %v932
  %v934 = vshll.u32 2475754826, %v928
  %v935 = vshrl.u32 2131351028, %v929
  %v936 = vor.u32 %v934, %v935
  %v937 = vshll.u32 2131351028, %v928
  %v938 = vshrl.u32 2102212464, %v929
  %v939 = vor.u32 %v937, %v938
  %v940 = vshll.u32 2102212464, %v928
  %v941 = vshrl.u32 920167782, %v929
  %v942 = vor.u32 %v940, %v941
  %v943 = vshll.u32 920167782, %v928
  %v944 = vshrl.u32 1326507024, %v929
  %v945 = vor.u32 %v943, %v944
  %vm946 = vcmp.lt.s32.totalorder %v927, 1
  %vm947 = vcmp.lt.s32.totalorder %v927, 2
  %vm948 = vcmp.lt.s32.totalorder %v927, 3
  %vm949 = vcmp.lt.s32.totalorder %v927, 4
  %v950 = vsel %vm946, %v930, %v933
  %v951 = vsel %vm949, %v939, 2102212464
  %v952 = vsel %vm948, %v936, %v951
  %v953 = vsel %vm947, %v950, %v952
  %v954 = vsel %vm946, %v933, %v936
  %v955 = vsel %vm949, %v942, 920167782
  %v956 = vsel %vm948, %v939, %v955
  %v957 = vsel %vm947, %v954, %v956
  %v958 = vsel %vm946, %v936, %v939
  %v959 = vsel %vm949, %v945, 1326507024
  %v960 = vsel %vm948, %v942, %v959
  %v961 = vsel %vm947, %v958, %v960
  %v962 = vshll.u32 %v922, 8
  %v963 = vmul.u32.u64.compose %v962, %v961
  %v964 = vextract.low.u32 %v963
  %v965 = vextract.high.u32 %v963
  %v966 = vmul.u32.u64.compose %v962, %v957
  %v967 = vextract.low.u32 %v966
  %v968 = vextract.high.u32 %v966
  %v969 = vmul.u32 %v962, %v953
  %v970 = vadd.s32 %v965, %v967
  %vm971 = vc.u32 %v965, %v967
  %v972 = vadd.s32 %v968, 1
  %v973 = vsel %vm971, %v972, %v968
  %v974 = vadd.s32 %v969, %v973
  %v975 = vadd.s32 %v974, 536870912
  %v976 = vshrl.u32 %v975, 30
  %v977 = vshll.u32 %v976, 30
  %v978 = vsub.s32 %v974, %v977
  %vm979 = vcmp.lt.s32.totalorder %v978, 0
  %v980 = vsub.s32 0, %v978
  %v981 = vsel %vm979, %v980, %v978
  %v982 = vclz %v981
  %v983 = vsub.s32 %v982, 2
  %vm984 = vcmp.gt.s32.totalorder 0, %v983
  %v985 = vsel %vm984, 0, %v983
  %v986 = vsub.s32 32, %v985
  %v987 = vshll.u32 %v978, %v985
  %v988 = vshrl.u32 %v970, %v986
  %v989 = vor.u32 %v987, %v988
  %v990 = vsub.s32 4294967266, %v985
  %v991 = vadd.s32 %v990, 127
  %v992 = vshll.u32 %v991, 23
  %v993 = vor.u32 4788187, %v992
  %v994 = vand.u32 2147483647, %v993
  %v996 = vcvt.s32.f32 %v989
  %v997 = vmul.f32 %v996, %v994
  %v998 = vxor.u32 %v997, 2147483648
  %v999 = vsel %vm916, %v998, %v997
  %v1000 = vsub.s32 4, %v976
  %v1001 = vsel %vm916, %v1000, %v976
  %v1002 = vsel %vm915, %v704, %v999
  %v1003 = vsel %vm915, 0, %v1001
  %v1004 = vcosq.f32.pop %v1002
  %v1005 = vsinq.f32.pop %v1002
  %vm1006 = vweird.f32 %v704
  %v1007 = vadd.s32 %v1003, 3
  %v1008 = vand.u32 %v1007, 3
  %vm1009 = vcmp.lt.s32.totalorder %v1008, 2
  %vm1010 = vcmp.eq.s32.totalorder %v1008, 0
  %v1011 = vxor.u32 %v1005, 2147483648
  %v1012 = vsel %vm1010, %v1004, %v1011
  %vm1013 = vcmp.eq.s32.totalorder %v1008, 2
  %v1014 = vxor.u32 %v1004, 2147483648
  %v1015 = vsel %vm1013, %v1014, %v1005
  %v1016 = vsel %vm1009, %v1012, %v1015
  %v1017 = vsel %vm1006, nan, %v1016
  %v1018 = vand.u32 2147483647, %v704
  %vm1019 = vcmp.le.f32.partialorder %v1018, 0.7853982
  %vm1020 = vcmp.lt.s32.totalorder %v704, 0
  %v1021 = vand.u32 %v704, 2139095040
  %v1022 = vshrl.u32 %v1021, 23
  %v1023 = vsub.s32 %v1022, 127
  %v1024 = vand.u32 2147483647, %v704
  %v1025 = vand.u32 %v1024, 8388607
  %v1026 = vor.u32 %v1025, 8388608
  %v1027 = vsub.s32 0, %v1026
  %v1028 = vadd.s32 %v1023, 1
  %vm1029 = vcmp.gt.s32.totalorder %v1028, 0
  %v1030 = vsel %vm1029, %v1028, 0
  %v1031 = vshrl.u32 %v1030, 5
  %v1032 = vand.u32 %v1030, 31
  %v1033 = vsub.s32 32, %v1032
  %v1034 = vshrl.u32 683565275, %v1033
  %v1035 = vshll.u32 683565275, %v1032
  %v1036 = vshrl.u32 2475754826, %v1033
  %v1037 = vor.u32 %v1035, %v1036
  %v1038 = vshll.u32 2475754826, %v1032
  %v1039 = vshrl.u32 2131351028, %v1033
  %v1040 = vor.u32 %v1038, %v1039
  %v1041 = vshll.u32 2131351028, %v1032
  %v1042 = vshrl.u32 2102212464, %v1033
  %v1043 = vor.u32 %v1041, %v1042
  %v1044 = vshll.u32 2102212464, %v1032
  %v1045 = vshrl.u32 920167782, %v1033
  %v1046 = vor.u32 %v1044, %v1045
  %v1047 = vshll.u32 920167782, %v1032
  %v1048 = vshrl.u32 1326507024, %v1033
  %v1049 = vor.u32 %v1047, %v1048
  %vm1050 = vcmp.lt.s32.totalorder %v1031, 1
  %vm1051 = vcmp.lt.s32.totalorder %v1031, 2
  %vm1052 = vcmp.lt.s32.totalorder %v1031, 3
  %vm1053 = vcmp.lt.s32.totalorder %v1031, 4
  %v1054 = vsel %vm1050, %v1034, %v1037
  %v1055 = vsel %vm1053, %v1043, 2102212464
  %v1056 = vsel %vm1052, %v1040, %v1055
  %v1057 = vsel %vm1051, %v1054, %v1056
  %v1058 = vsel %vm1050, %v1037, %v1040
  %v1059 = vsel %vm1053, %v1046, 920167782
  %v1060 = vsel %vm1052, %v1043, %v1059
  %v1061 = vsel %vm1051, %v1058, %v1060
  %v1062 = vsel %vm1050, %v1040, %v1043
  %v1063 = vsel %vm1053, %v1049, 1326507024
  %v1064 = vsel %vm1052, %v1046, %v1063
  %v1065 = vsel %vm1051, %v1062, %v1064
  %v1066 = vshll.u32 %v1026, 8
  %v1067 = vmul.u32.u64.compose %v1066, %v1065
  %v1068 = vextract.low.u32 %v1067
  %v1069 = vextract.high.u32 %v1067
  %v1070 = vmul.u32.u64.compose %v1066, %v1061
  %v1071 = vextract.low.u32 %v1070
  %v1072 = vextract.high.u32 %v1070
  %v1073 = vmul.u32 %v1066, %v1057
  %v1074 = vadd.s32 %v1069, %v1071
  %vm1075 = vc.u32 %v1069, %v1071
  %v1076 = vadd.s32 %v1072, 1
  %v1077 = vsel %vm1075, %v1076, %v1072
  %v1078 = vadd.s32 %v1073, %v1077
  %v1079 = vadd.s32 %v1078, 536870912
  %v1080 = vshrl.u32 %v1079, 30
  %v1081 = vshll.u32 %v1080, 30
  %v1082 = vsub.s32 %v1078, %v1081
  %vm1083 = vcmp.lt.s32.totalorder %v1082, 0
  %v1084 = vsub.s32 0, %v1082
  %v1085 = vsel %vm1083, %v1084, %v1082
  %v1086 = vclz %v1085
  %v1087 = vsub.s32 %v1086, 2
  %vm1088 = vcmp.gt.s32.totalorder 0, %v1087
  %v1089 = vsel %vm1088, 0, %v1087
  %v1090 = vsub.s32 32, %v1089
  %v1091 = vshll.u32 %v1082, %v1089
  %v1092 = vshrl.u32 %v1074, %v1090
  %v1093 = vor.u32 %v1091, %v1092
  %v1094 = vsub.s32 4294967266, %v1089
  %v1095 = vadd.s32 %v1094, 127
  %v1096 = vshll.u32 %v1095, 23
  %v1097 = vor.u32 4788187, %v1096
  %v1098 = vand.u32 2147483647, %v1097
  %v1100 = vcvt.s32.f32 %v1093
  %v1101 = vmul.f32 %v1100, %v1098
  %v1102 = vxor.u32 %v1101, 2147483648
  %v1103 = vsel %vm1020, %v1102, %v1101
  %v1104 = vsub.s32 4, %v1080
  %v1105 = vsel %vm1020, %v1104, %v1080
  %v1106 = vsel %vm1019, %v704, %v1103
  %v1107 = vsel %vm1019, 0, %v1105
  %v1108 = vcosq.f32.pop %v1106
  %v1109 = vsinq.f32.pop %v1106
  %vm1110 = vweird.f32 %v704
  %v1111 = vand.u32 %v1107, 3
  %vm1112 = vcmp.lt.s32.totalorder %v1111, 2
  %vm1113 = vcmp.eq.s32.totalorder %v1111, 0
  %v1114 = vxor.u32 %v1109, 2147483648
  %v1115 = vsel %vm1113, %v1108, %v1114
  %vm1116 = vcmp.eq.s32.totalorder %v1111, 2
  %v1117 = vxor.u32 %v1108, 2147483648
  %v1118 = vsel %vm1116, %v1117, %v1109
  %v1119 = vsel %vm1112, %v1115, %v1118
  %v1120 = vsel %vm1110, nan, %v1119
  %v1121 = vmul.f32 %v810, 0.5
  %v1122 = vmul.f32 %v913, -0.5
  %v1123 = vmul.f32 %v913, -1.0
  %v1124 = vmul.f32 %v1120, -1.0
  %v1125 = vmul.f32 %v1017, 2.0
  %v1126 = vmul.f32 %v1120, 2.0
  %v1127 = vmul.f32 %v1121, 12.0
  %v1128 = vmul.f32 %v1122, 12.0
  %v1129 = vmul.f32 %v810, 12.0
  %v1130 = vmul.f32 %v1123, 12.0
  %v1131 = vmul.f32 %v913, 12.0
  %v1132 = vmul.f32 %v1017, 1.5
  %v1133 = vmul.f32 %v1124, 1.5
  %v1134 = vmul.f32 %v1125, 1.5
  %v1135 = vmul.f32 %v1126, 1.5
  %v1136 = vmul.f32 %v1129, %v810
  %v1137 = vmul.f32 %v1129, %v1123
  %v1138 = vmul.f32 %v1129, %v913
  %v1139 = vmul.f32 %v1127, %v1121
  %v1140 = vadd.f32 %v1139, 1.0
  %v1141 = vmul.f32 %v1127, %v1122
  %v1142 = vmul.f32 %v1127, %v810
  %v1143 = vmul.f32 %v1127, %v1123
  %v1144 = vmul.f32 %v1127, %v913
  %v1145 = vmul.f32 %v1128, %v1122
  %v1146 = vadd.f32 %v1145, 1.0
  %v1147 = vmul.f32 %v1128, %v810
  %v1148 = vmul.f32 %v1128, %v1123
  %v1149 = vmul.f32 %v1128, %v913
  %v1150 = vadd.f32 %v1136, 0.5
  %v1151 = vmul.f32 %v1132, %v1017
  %v1152 = vadd.f32 %v1150, %v1151
  %v1153 = vmul.f32 %v1132, %v1124
  %v1154 = vadd.f32 %v1137, %v1153
  %v1155 = vmul.f32 %v1132, %v1125
  %v1156 = vadd.f32 %v1136, %v1155
  %v1157 = vmul.f32 %v1132, %v1126
  %v1158 = vadd.f32 %v1138, %v1157
  %v1159 = vmul.f32 %v1130, %v1123
  %v1160 = vadd.f32 %v1159, 0.5
  %v1161 = vmul.f32 %v1133, %v1124
  %v1162 = vadd.f32 %v1160, %v1161
  %v1163 = vmul.f32 %v1133, %v1125
  %v1164 = vadd.f32 %v1137, %v1163
  %v1165 = vmul.f32 %v1130, %v913
  %v1166 = vmul.f32 %v1133, %v1126
  %v1167 = vadd.f32 %v1165, %v1166
  %v1168 = vmul.f32 %v1134, %v1125
  %v1169 = vadd.f32 %v1136, %v1168
  %v1170 = vadd.f32 %v1169, 0.33333334
  %v1171 = vmul.f32 %v1134, %v1126
  %v1172 = vadd.f32 %v1138, %v1171
  %v1173 = vmul.f32 %v1131, %v913
  %v1174 = vmul.f32 %v1135, %v1126
  %v1175 = vadd.f32 %v1173, %v1174
  %v1176 = vmul.f32 %v705, %v705
  %v1177 = vmul.f32 %v706, %v706
  %v1178 = vmul.f32 %v1176, %v913
  %v1179 = vmul.f32 %v1176, %v810
  %v1180 = vmul.f32 %v1177, %v1126
  %v1181 = vmul.f32 %v1177, %v1125
  %v1182 = vmul.f32 %v1178, 0.5
  %v1183 = vmul.f32 %v1179, 0.5
  %v1184 = vsub.f32 %v1183, 9.8
  %v1185 = vmul.f32 %v1180, 0.5
  %v1186 = vadd.f32 %v1178, %v1185
  %v1187 = vmul.f32 %v1181, 0.5
  %v1188 = vadd.f32 %v1179, %v1187
  %v1189 = vsub.f32 %v1188, 9.8
  %v1190 = vadd.f32 %v1178, %v1180
  %v1191 = vsub.f32 0.0, %v1179
  %v1192 = vsub.f32 %v1191, %v1181
  %v1193 = vrcp.pop %v1140
  %v1194 = vmul.f32 1.0, %v1193
  %v1195 = vmul.f32 %v1141, %v1194
  %v1196 = vmul.f32 %v1195, %v1141
  %v1197 = vsub.f32 %v1146, %v1196
  %v1198 = vmul.f32 %v1195, %v1142
  %v1199 = vsub.f32 %v1147, %v1198
  %v1200 = vmul.f32 %v1195, %v1143
  %v1201 = vsub.f32 %v1148, %v1200
  %v1202 = vmul.f32 %v1195, %v1144
  %v1203 = vsub.f32 %v1149, %v1202
  %v1204 = vmul.f32 %v1195, %v1182
  %v1205 = vsub.f32 %v1184, %v1204
  %v1206 = vmul.f32 %v1142, %v1194
  %v1207 = vmul.f32 %v1206, %v1142
  %v1208 = vsub.f32 %v1152, %v1207
  %v1209 = vmul.f32 %v1206, %v1143
  %v1210 = vsub.f32 %v1154, %v1209
  %v1211 = vsub.f32 %v1156, %v1207
  %v1212 = vmul.f32 %v1206, %v1144
  %v1213 = vsub.f32 %v1158, %v1212
  %v1214 = vmul.f32 %v1206, %v1182
  %v1215 = vsub.f32 %v1186, %v1214
  %v1216 = vmul.f32 %v1143, %v1194
  %v1217 = vmul.f32 %v1216, %v1143
  %v1218 = vsub.f32 %v1162, %v1217
  %v1219 = vmul.f32 %v1216, %v1142
  %v1220 = vsub.f32 %v1164, %v1219
  %v1221 = vmul.f32 %v1216, %v1144
  %v1222 = vsub.f32 %v1167, %v1221
  %v1223 = vmul.f32 %v1216, %v1182
  %v1224 = vsub.f32 %v1189, %v1223
  %v1225 = vsub.f32 %v1170, %v1207
  %v1226 = vsub.f32 %v1172, %v1212
  %v1227 = vsub.f32 %v1190, %v1214
  %v1228 = vmul.f32 %v1144, %v1194
  %v1229 = vmul.f32 %v1228, %v1144
  %v1230 = vsub.f32 %v1175, %v1229
  %v1231 = vmul.f32 %v1228, %v1182
  %v1232 = vsub.f32 %v1192, %v1231
  %v1233 = vrcp.pop %v1197
  %v1234 = vmul.f32 1.0, %v1233
  %v1235 = vmul.f32 %v1199, %v1234
  %v1236 = vmul.f32 %v1235, %v1199
  %v1237 = vsub.f32 %v1208, %v1236
  %v1238 = vmul.f32 %v1235, %v1201
  %v1239 = vsub.f32 %v1210, %v1238
  %v1240 = vsub.f32 %v1211, %v1236
  %v1241 = vmul.f32 %v1235, %v1203
  %v1242 = vsub.f32 %v1213, %v1241
  %v1243 = vmul.f32 %v1235, %v1205
  %v1244 = vsub.f32 %v1215, %v1243
  %v1245 = vmul.f32 %v1201, %v1234
  %v1246 = vmul.f32 %v1245, %v1201
  %v1247 = vsub.f32 %v1218, %v1246
  %v1248 = vmul.f32 %v1245, %v1199
  %v1249 = vsub.f32 %v1220, %v1248
  %v1250 = vmul.f32 %v1245, %v1203
  %v1251 = vsub.f32 %v1222, %v1250
  %v1252 = vmul.f32 %v1245, %v1205
  %v1253 = vsub.f32 %v1224, %v1252
  %v1254 = vsub.f32 %v1225, %v1236
  %v1255 = vsub.f32 %v1226, %v1241
  %v1256 = vsub.f32 %v1227, %v1243
  %v1257 = vmul.f32 %v1203, %v1234
  %v1258 = vmul.f32 %v1257, %v1203
  %v1259 = vsub.f32 %v1230, %v1258
  %v1260 = vmul.f32 %v1257, %v1205
  %v1261 = vsub.f32 %v1232, %v1260
  %v1262 = vrcp.pop %v1237
  %v1263 = vmul.f32 1.0, %v1262
  %v1264 = vmul.f32 %v1239, %v1263
  %v1265 = vmul.f32 %v1264, %v1239
  %v1266 = vsub.f32 %v1247, %v1265
  %v1267 = vmul.f32 %v1264, %v1240
  %v1268 = vsub.f32 %v1249, %v1267
  %v1269 = vmul.f32 %v1264, %v1242
  %v1270 = vsub.f32 %v1251, %v1269
  %v1271 = vmul.f32 %v1264, %v1244
  %v1272 = vsub.f32 %v1253, %v1271
  %v1273 = vmul.f32 %v1240, %v1263
  %v1274 = vmul.f32 %v1273, %v1240
  %v1275 = vsub.f32 %v1254, %v1274
  %v1276 = vmul.f32 %v1273, %v1242
  %v1277 = vsub.f32 %v1255, %v1276
  %v1278 = vmul.f32 %v1273, %v1244
  %v1279 = vsub.f32 %v1256, %v1278
  %v1280 = vmul.f32 %v1242, %v1263
  %v1281 = vmul.f32 %v1280, %v1242
  %v1282 = vsub.f32 %v1259, %v1281
  %v1283 = vmul.f32 %v1280, %v1244
  %v1284 = vsub.f32 %v1261, %v1283
  %v1285 = vrcp.pop %v1266
  %v1286 = vmul.f32 1.0, %v1285
  %v1287 = vmul.f32 %v1268, %v1286
  %v1288 = vmul.f32 %v1287, %v1268
  %v1289 = vsub.f32 %v1275, %v1288
  %v1290 = vmul.f32 %v1287, %v1270
  %v1291 = vsub.f32 %v1277, %v1290
  %v1292 = vmul.f32 %v1287, %v1272
  %v1293 = vsub.f32 %v1279, %v1292
  %v1294 = vmul.f32 %v1270, %v1286
  %v1295 = vmul.f32 %v1294, %v1270
  %v1296 = vsub.f32 %v1282, %v1295
  %v1297 = vmul.f32 %v1294, %v1272
  %v1298 = vsub.f32 %v1284, %v1297
  %v1299 = vrcp.pop %v1289
  %v1300 = vmul.f32 1.0, %v1299
  %v1301 = vmul.f32 %v1291, %v1300
  %v1302 = vmul.f32 %v1301, %v1291
  %v1303 = vsub.f32 %v1296, %v1302
  %v1304 = vmul.f32 %v1301, %v1293
  %v1305 = vsub.f32 %v1298, %v1304
  %v1306 = vrcp.pop %v1303
  %v1307 = vmul.f32 1.0, %v1306
  %v1308 = vmul.f32 %v1305, %v1307
  %v1309 = vmul.f32 %v1291, %v1308
  %v1310 = vsub.f32 %v1293, %v1309
  %v1311 = vmul.f32 %v1310, %v1300
  %v1312 = vmul.f32 %v1268, %v1311
  %v1313 = vsub.f32 %v1272, %v1312
  %v1314 = vmul.f32 %v1270, %v1308
  %v1315 = vsub.f32 %v1313, %v1314
  %v1316 = vmul.f32 %v1315, %v1286
  %v1317 = vmul.f32 %v1239, %v1316
  %v1318 = vsub.f32 %v1244, %v1317
  %v1319 = vmul.f32 %v1240, %v1311
  %v1320 = vsub.f32 %v1318, %v1319
  %v1321 = vmul.f32 %v1242, %v1308
  %v1322 = vsub.f32 %v1320, %v1321
  %v1323 = vmul.f32 %v1322, %v1263
  %v1324 = vmul.f32 %v1199, %v1323
  %v1325 = vsub.f32 %v1205, %v1324
  %v1326 = vmul.f32 %v1201, %v1316
  %v1327 = vsub.f32 %v1325, %v1326
  %v1328 = vmul.f32 %v1199, %v1311
  %v1329 = vsub.f32 %v1327, %v1328
  %v1330 = vmul.f32 %v1203, %v1308
  %v1331 = vsub.f32 %v1329, %v1330
  %v1332 = vmul.f32 %v1331, %v1234
  %v1333 = vmul.f32 %v1141, %v1332
  %v1334 = vsub.f32 %v1182, %v1333
  %v1335 = vmul.f32 %v1142, %v1323
  %v1336 = vsub.f32 %v1334, %v1335
  %v1337 = vmul.f32 %v1143, %v1316
  %v1338 = vsub.f32 %v1336, %v1337
  %v1339 = vmul.f32 %v1142, %v1311
  %v1340 = vsub.f32 %v1338, %v1339
  %v1341 = vmul.f32 %v1144, %v1308
  %v1342 = vsub.f32 %v1340, %v1341
  %v1343 = vmul.f32 %v1342, %v1194
  %v1344 = vmul.f32 %v1121, %v1343
  %v1345 = vmul.f32 %v1122, %v1332
  %v1346 = vadd.f32 %v1344, %v1345
  %v1347 = vadd.f32 %v1323, %v1311
  %v1348 = vmul.f32 %v810, %v1347
  %v1349 = vadd.f32 %v1346, %v1348
  %v1350 = vmul.f32 %v1123, %v1316
  %v1351 = vadd.f32 %v1349, %v1350
  %v1352 = vmul.f32 %v913, %v1308
  %v1353 = vadd.f32 %v1351, %v1352
  %v1354 = vmul.f32 %v1017, %v1323
  %v1355 = vmul.f32 %v1124, %v1316
  %v1356 = vadd.f32 %v1354, %v1355
  %v1357 = vmul.f32 %v1125, %v1311
  %v1358 = vadd.f32 %v1356, %v1357
  %v1359 = vmul.f32 %v1126, %v1308
  %v1360 = vadd.f32 %v1358, %v1359
  %v1361 = vmul.f32 %v1343, -1.0
  %1362 = vst [vmem:[%s1 + $0x8] sm:$0xff] %v1361
  %v1363 = vsub.f32 -9.8, %v1332
  %1364 = vst [vmem:[%s673 + $0x8] sm:$0xff] %v1363
  %v1365 = vmul.f32 %v1353, -12.0
  %1366 = vst [vmem:[%s676 + $0x8] sm:$0xff] %v1365
  %v1367 = vmul.f32 %v1323, -0.5
  %1368 = vst [vmem:[%s679 + $0x8] sm:$0xff] %v1367
  %v1369 = vmul.f32 %v1316, 0.5
  %v1370 = vsub.f32 -9.8, %v1369
  %1371 = vst [vmem:[%s683 + $0x8] sm:$0xff] %v1370
  %v1372 = vmul.f32 %v1360, -1.5
  %1373 = vst [vmem:[%s686 + $0x8] sm:$0xff] %v1372
  %v1374 = vmul.f32 %v1311, -0.33333334
  %1375 = vst [vmem:[%s689 + $0x8] sm:$0xff] %v1374
  %1376 = vst [vmem:[%s691 + $0x8] sm:$0xff] %v1343
  %1377 = vst [vmem:[%s693 + $0x8] sm:$0xff] %v1332
  %1378 = vst [vmem:[%s695 + $0x8] sm:$0xff] %v1323
  %1379 = vst [vmem:[%s697 + $0x8] sm:$0xff] %v1316
  %1380 = vst [vmem:[%s699 + $0x8] sm:$0xff] %v1311
  %1381 = vst [vmem:[%s701 + $0x8] sm:$0xff] %v1308
  %v1382 = vld [vmem:[%s8 + $0x10] sm:$0xff]
  %v1383 = vld [vmem:[%s10 + $0x10] sm:$0xff]
  %v1384 = vld [vmem:[%s12 + $0x10] sm:$0xff]
  %v1385 = vld [vmem:[%s14 + $0x10] sm:$0xff]
  %v1386 = vand.u32 2147483647, %v1382
  %vm1387 = vcmp.le.f32.partialorder %v1386, 0.7853982
  %vm1388 = vcmp.lt.s32.totalorder %v1382, 0
  %v1389 = vand.u32 %v1382, 2139095040
  %v1390 = vshrl.u32 %v1389, 23
  %v1391 = vsub.s32 %v1390, 127
  %v1392 = vand.u32 2147483647, %v1382
  %v1393 = vand.u32 %v1392, 8388607
  %v1394 = vor.u32 %v1393, 8388608
  %v1395 = vsub.s32 0, %v1394
  %v1396 = vadd.s32 %v1391, 1
  %vm1397 = vcmp.gt.s32.totalorder %v1396, 0
  %v1398 = vsel %vm1397, %v1396, 0
  %v1399 = vshrl.u32 %v1398, 5
  %v1400 = vand.u32 %v1398, 31
  %v1401 = vsub.s32 32, %v1400
  %v1402 = vshrl.u32 683565275, %v1401
  %v1403 = vshll.u32 683565275, %v1400
  %v1404 = vshrl.u32 2475754826, %v1401
  %v1405 = vor.u32 %v1403, %v1404
  %v1406 = vshll.u32 2475754826, %v1400
  %v1407 = vshrl.u32 2131351028, %v1401
  %v1408 = vor.u32 %v1406, %v1407
  %v1409 = vshll.u32 2131351028, %v1400
  %v1410 = vshrl.u32 2102212464, %v1401
  %v1411 = vor.u32 %v1409, %v1410
  %v1412 = vshll.u32 2102212464, %v1400
  %v1413 = vshrl.u32 920167782, %v1401
  %v1414 = vor.u32 %v1412, %v1413
  %v1415 = vshll.u32 920167782, %v1400
  %v1416 = vshrl.u32 1326507024, %v1401
  %v1417 = vor.u32 %v1415, %v1416
  %vm1418 = vcmp.lt.s32.totalorder %v1399, 1
  %vm1419 = vcmp.lt.s32.totalorder %v1399, 2
  %vm1420 = vcmp.lt.s32.totalorder %v1399, 3
  %vm1421 = vcmp.lt.s32.totalorder %v1399, 4
  %v1422 = vsel %vm1418, %v1402, %v1405
  %v1423 = vsel %vm1421, %v1411, 2102212464
  %v1424 = vsel %vm1420, %v1408, %v1423
  %v1425 = vsel %vm1419, %v1422, %v1424
  %v1426 = vsel %vm1418, %v1405, %v1408
  %v1427 = vsel %vm1421, %v1414, 920167782
  %v1428 = vsel %vm1420, %v1411, %v1427
  %v1429 = vsel %vm1419, %v1426, %v1428
  %v1430 = vsel %vm1418, %v1408, %v1411
  %v1431 = vsel %vm1421, %v1417, 1326507024
  %v1432 = vsel %vm1420, %v1414, %v1431
  %v1433 = vsel %vm1419, %v1430, %v1432
  %v1434 = vshll.u32 %v1394, 8
  %v1435 = vmul.u32.u64.compose %v1434, %v1433
  %v1436 = vextract.low.u32 %v1435
  %v1437 = vextract.high.u32 %v1435
  %v1438 = vmul.u32.u64.compose %v1434, %v1429
  %v1439 = vextract.low.u32 %v1438
  %v1440 = vextract.high.u32 %v1438
  %v1441 = vmul.u32 %v1434, %v1425
  %v1442 = vadd.s32 %v1437, %v1439
  %vm1443 = vc.u32 %v1437, %v1439
  %v1444 = vadd.s32 %v1440, 1
  %v1445 = vsel %vm1443, %v1444, %v1440
  %v1446 = vadd.s32 %v1441, %v1445
  %v1447 = vadd.s32 %v1446, 536870912
  %v1448 = vshrl.u32 %v1447, 30
  %v1449 = vshll.u32 %v1448, 30
  %v1450 = vsub.s32 %v1446, %v1449
  %vm1451 = vcmp.lt.s32.totalorder %v1450, 0
  %v1452 = vsub.s32 0, %v1450
  %v1453 = vsel %vm1451, %v1452, %v1450
  %v1454 = vclz %v1453
  %v1455 = vsub.s32 %v1454, 2
  %vm1456 = vcmp.gt.s32.totalorder 0, %v1455
  %v1457 = vsel %vm1456, 0, %v1455
  %v1458 = vsub.s32 32, %v1457
  %v1459 = vshll.u32 %v1450, %v1457
  %v1460 = vshrl.u32 %v1442, %v1458
  %v1461 = vor.u32 %v1459, %v1460
  %v1462 = vsub.s32 4294967266, %v1457
  %v1463 = vadd.s32 %v1462, 127
  %v1464 = vshll.u32 %v1463, 23
  %v1465 = vor.u32 4788187, %v1464
  %v1466 = vand.u32 2147483647, %v1465
  %v1468 = vcvt.s32.f32 %v1461
  %v1469 = vmul.f32 %v1468, %v1466
  %v1470 = vxor.u32 %v1469, 2147483648
  %v1471 = vsel %vm1388, %v1470, %v1469
  %v1472 = vsub.s32 4, %v1448
  %v1473 = vsel %vm1388, %v1472, %v1448
  %v1474 = vsel %vm1387, %v1382, %v1471
  %v1475 = vsel %vm1387, 0, %v1473
  %v1476 = vcosq.f32.pop %v1474
  %v1477 = vsinq.f32.pop %v1474
  %vm1478 = vweird.f32 %v1382
  %v1479 = vadd.s32 %v1475, 3
  %v1480 = vand.u32 %v1479, 3
  %vm1481 = vcmp.lt.s32.totalorder %v1480, 2
  %vm1482 = vcmp.eq.s32.totalorder %v1480, 0
  %v1483 = vxor.u32 %v1477, 2147483648
  %v1484 = vsel %vm1482, %v1476, %v1483
  %vm1485 = vcmp.eq.s32.totalorder %v1480, 2
  %v1486 = vxor.u32 %v1476, 2147483648
  %v1487 = vsel %vm1485, %v1486, %v1477
  %v1488 = vsel %vm1481, %v1484, %v1487
  %v1489 = vsel %vm1478, nan, %v1488
  %v1490 = vand.u32 2147483647, %v1382
  %vm1491 = vcmp.le.f32.partialorder %v1490, 0.7853982
  %vm1492 = vcmp.lt.s32.totalorder %v1382, 0
  %v1493 = vand.u32 %v1382, 2139095040
  %v1494 = vshrl.u32 %v1493, 23
  %v1495 = vsub.s32 %v1494, 127
  %v1496 = vand.u32 2147483647, %v1382
  %v1497 = vand.u32 %v1496, 8388607
  %v1498 = vor.u32 %v1497, 8388608
  %v1499 = vsub.s32 0, %v1498
  %v1500 = vadd.s32 %v1495, 1
  %vm1501 = vcmp.gt.s32.totalorder %v1500, 0
  %v1502 = vsel %vm1501, %v1500, 0
  %v1503 = vshrl.u32 %v1502, 5
  %v1504 = vand.u32 %v1502, 31
  %v1505 = vsub.s32 32, %v1504
  %v1506 = vshrl.u32 683565275, %v1505
  %v1507 = vshll.u32 683565275, %v1504
  %v1508 = vshrl.u32 2475754826, %v1505
  %v1509 = vor.u32 %v1507, %v1508
  %v1510 = vshll.u32 2475754826, %v1504
  %v1511 = vshrl.u32 2131351028, %v1505
  %v1512 = vor.u32 %v1510, %v1511
  %v1513 = vshll.u32 2131351028, %v1504
  %v1514 = vshrl.u32 2102212464, %v1505
  %v1515 = vor.u32 %v1513, %v1514
  %v1516 = vshll.u32 2102212464, %v1504
  %v1517 = vshrl.u32 920167782, %v1505
  %v1518 = vor.u32 %v1516, %v1517
  %v1519 = vshll.u32 920167782, %v1504
  %v1520 = vshrl.u32 1326507024, %v1505
  %v1521 = vor.u32 %v1519, %v1520
  %vm1522 = vcmp.lt.s32.totalorder %v1503, 1
  %vm1523 = vcmp.lt.s32.totalorder %v1503, 2
  %vm1524 = vcmp.lt.s32.totalorder %v1503, 3
  %vm1525 = vcmp.lt.s32.totalorder %v1503, 4
  %v1526 = vsel %vm1522, %v1506, %v1509
  %v1527 = vsel %vm1525, %v1515, 2102212464
  %v1528 = vsel %vm1524, %v1512, %v1527
  %v1529 = vsel %vm1523, %v1526, %v1528
  %v1530 = vsel %vm1522, %v1509, %v1512
  %v1531 = vsel %vm1525, %v1518, 920167782
  %v1532 = vsel %vm1524, %v1515, %v1531
  %v1533 = vsel %vm1523, %v1530, %v1532
  %v1534 = vsel %vm1522, %v1512, %v1515
  %v1535 = vsel %vm1525, %v1521, 1326507024
  %v1536 = vsel %vm1524, %v1518, %v1535
  %v1537 = vsel %vm1523, %v1534, %v1536
  %v1538 = vshll.u32 %v1498, 8
  %v1539 = vmul.u32.u64.compose %v1538, %v1537
  %v1540 = vextract.low.u32 %v1539
  %v1541 = vextract.high.u32 %v1539
  %v1542 = vmul.u32.u64.compose %v1538, %v1533
  %v1543 = vextract.low.u32 %v1542
  %v1544 = vextract.high.u32 %v1542
  %v1545 = vmul.u32 %v1538, %v1529
  %v1546 = vadd.s32 %v1541, %v1543
  %vm1547 = vc.u32 %v1541, %v1543
  %v1548 = vadd.s32 %v1544, 1
  %v1549 = vsel %vm1547, %v1548, %v1544
  %v1550 = vadd.s32 %v1545, %v1549
  %v1551 = vadd.s32 %v1550, 536870912
  %v1552 = vshrl.u32 %v1551, 30
  %v1553 = vshll.u32 %v1552, 30
  %v1554 = vsub.s32 %v1550, %v1553
  %vm1555 = vcmp.lt.s32.totalorder %v1554, 0
  %v1556 = vsub.s32 0, %v1554
  %v1557 = vsel %vm1555, %v1556, %v1554
  %v1558 = vclz %v1557
  %v1559 = vsub.s32 %v1558, 2
  %vm1560 = vcmp.gt.s32.totalorder 0, %v1559
  %v1561 = vsel %vm1560, 0, %v1559
  %v1562 = vsub.s32 32, %v1561
  %v1563 = vshll.u32 %v1554, %v1561
  %v1564 = vshrl.u32 %v1546, %v1562
  %v1565 = vor.u32 %v1563, %v1564
  %v1566 = vsub.s32 4294967266, %v1561
  %v1567 = vadd.s32 %v1566, 127
  %v1568 = vshll.u32 %v1567, 23
  %v1569 = vor.u32 4788187, %v1568
  %v1570 = vand.u32 2147483647, %v1569
  %v1572 = vcvt.s32.f32 %v1565
  %v1573 = vmul.f32 %v1572, %v1570
  %v1574 = vxor.u32 %v1573, 2147483648
  %v1575 = vsel %vm1492, %v1574, %v1573
  %v1576 = vsub.s32 4, %v1552
  %v1577 = vsel %vm1492, %v1576, %v1552
  %v1578 = vsel %vm1491, %v1382, %v1575
  %v1579 = vsel %vm1491, 0, %v1577
  %v1580 = vcosq.f32.pop %v1578
  %v1581 = vsinq.f32.pop %v1578
  %vm1582 = vweird.f32 %v1382
  %v1583 = vand.u32 %v1579, 3
  %vm1584 = vcmp.lt.s32.totalorder %v1583, 2
  %vm1585 = vcmp.eq.s32.totalorder %v1583, 0
  %v1586 = vxor.u32 %v1581, 2147483648
  %v1587 = vsel %vm1585, %v1580, %v1586
  %vm1588 = vcmp.eq.s32.totalorder %v1583, 2
  %v1589 = vxor.u32 %v1580, 2147483648
  %v1590 = vsel %vm1588, %v1589, %v1581
  %v1591 = vsel %vm1584, %v1587, %v1590
  %v1592 = vsel %vm1582, nan, %v1591
  %v1593 = vand.u32 2147483647, %v1383
  %vm1594 = vcmp.le.f32.partialorder %v1593, 0.7853982
  %vm1595 = vcmp.lt.s32.totalorder %v1383, 0
  %v1596 = vand.u32 %v1383, 2139095040
  %v1597 = vshrl.u32 %v1596, 23
  %v1598 = vsub.s32 %v1597, 127
  %v1599 = vand.u32 2147483647, %v1383
  %v1600 = vand.u32 %v1599, 8388607
  %v1601 = vor.u32 %v1600, 8388608
  %v1602 = vsub.s32 0, %v1601
  %v1603 = vadd.s32 %v1598, 1
  %vm1604 = vcmp.gt.s32.totalorder %v1603, 0
  %v1605 = vsel %vm1604, %v1603, 0
  %v1606 = vshrl.u32 %v1605, 5
  %v1607 = vand.u32 %v1605, 31
  %v1608 = vsub.s32 32, %v1607
  %v1609 = vshrl.u32 683565275, %v1608
  %v1610 = vshll.u32 683565275, %v1607
  %v1611 = vshrl.u32 2475754826, %v1608
  %v1612 = vor.u32 %v1610, %v1611
  %v1613 = vshll.u32 2475754826, %v1607
  %v1614 = vshrl.u32 2131351028, %v1608
  %v1615 = vor.u32 %v1613, %v1614
  %v1616 = vshll.u32 2131351028, %v1607
  %v1617 = vshrl.u32 2102212464, %v1608
  %v1618 = vor.u32 %v1616, %v1617
  %v1619 = vshll.u32 2102212464, %v1607
  %v1620 = vshrl.u32 920167782, %v1608
  %v1621 = vor.u32 %v1619, %v1620
  %v1622 = vshll.u32 920167782, %v1607
  %v1623 = vshrl.u32 1326507024, %v1608
  %v1624 = vor.u32 %v1622, %v1623
  %vm1625 = vcmp.lt.s32.totalorder %v1606, 1
  %vm1626 = vcmp.lt.s32.totalorder %v1606, 2
  %vm1627 = vcmp.lt.s32.totalorder %v1606, 3
  %vm1628 = vcmp.lt.s32.totalorder %v1606, 4
  %v1629 = vsel %vm1625, %v1609, %v1612
  %v1630 = vsel %vm1628, %v1618, 2102212464
  %v1631 = vsel %vm1627, %v1615, %v1630
  %v1632 = vsel %vm1626, %v1629, %v1631
  %v1633 = vsel %vm1625, %v1612, %v1615
  %v1634 = vsel %vm1628, %v1621, 920167782
  %v1635 = vsel %vm1627, %v1618, %v1634
  %v1636 = vsel %vm1626, %v1633, %v1635
  %v1637 = vsel %vm1625, %v1615, %v1618
  %v1638 = vsel %vm1628, %v1624, 1326507024
  %v1639 = vsel %vm1627, %v1621, %v1638
  %v1640 = vsel %vm1626, %v1637, %v1639
  %v1641 = vshll.u32 %v1601, 8
  %v1642 = vmul.u32.u64.compose %v1641, %v1640
  %v1643 = vextract.low.u32 %v1642
  %v1644 = vextract.high.u32 %v1642
  %v1645 = vmul.u32.u64.compose %v1641, %v1636
  %v1646 = vextract.low.u32 %v1645
  %v1647 = vextract.high.u32 %v1645
  %v1648 = vmul.u32 %v1641, %v1632
  %v1649 = vadd.s32 %v1644, %v1646
  %vm1650 = vc.u32 %v1644, %v1646
  %v1651 = vadd.s32 %v1647, 1
  %v1652 = vsel %vm1650, %v1651, %v1647
  %v1653 = vadd.s32 %v1648, %v1652
  %v1654 = vadd.s32 %v1653, 536870912
  %v1655 = vshrl.u32 %v1654, 30
  %v1656 = vshll.u32 %v1655, 30
  %v1657 = vsub.s32 %v1653, %v1656
  %vm1658 = vcmp.lt.s32.totalorder %v1657, 0
  %v1659 = vsub.s32 0, %v1657
  %v1660 = vsel %vm1658, %v1659, %v1657
  %v1661 = vclz %v1660
  %v1662 = vsub.s32 %v1661, 2
  %vm1663 = vcmp.gt.s32.totalorder 0, %v1662
  %v1664 = vsel %vm1663, 0, %v1662
  %v1665 = vsub.s32 32, %v1664
  %v1666 = vshll.u32 %v1657, %v1664
  %v1667 = vshrl.u32 %v1649, %v1665
  %v1668 = vor.u32 %v1666, %v1667
  %v1669 = vsub.s32 4294967266, %v1664
  %v1670 = vadd.s32 %v1669, 127
  %v1671 = vshll.u32 %v1670, 23
  %v1672 = vor.u32 4788187, %v1671
  %v1673 = vand.u32 2147483647, %v1672
  %v1675 = vcvt.s32.f32 %v1668
  %v1676 = vmul.f32 %v1675, %v1673
  %v1677 = vxor.u32 %v1676, 2147483648
  %v1678 = vsel %vm1595, %v1677, %v1676
  %v1679 = vsub.s32 4, %v1655
  %v1680 = vsel %vm1595, %v1679, %v1655
  %v1681 = vsel %vm1594, %v1383, %v1678
  %v1682 = vsel %vm1594, 0, %v1680
  %v1683 = vcosq.f32.pop %v1681
  %v1684 = vsinq.f32.pop %v1681
  %vm1685 = vweird.f32 %v1383
  %v1686 = vadd.s32 %v1682, 3
  %v1687 = vand.u32 %v1686, 3
  %vm1688 = vcmp.lt.s32.totalorder %v1687, 2
  %vm1689 = vcmp.eq.s32.totalorder %v1687, 0
  %v1690 = vxor.u32 %v1684, 2147483648
  %v1691 = vsel %vm1689, %v1683, %v1690
  %vm1692 = vcmp.eq.s32.totalorder %v1687, 2
  %v1693 = vxor.u32 %v1683, 2147483648
  %v1694 = vsel %vm1692, %v1693, %v1684
  %v1695 = vsel %vm1688, %v1691, %v1694
  %v1696 = vsel %vm1685, nan, %v1695
  %v1697 = vand.u32 2147483647, %v1383
  %vm1698 = vcmp.le.f32.partialorder %v1697, 0.7853982
  %vm1699 = vcmp.lt.s32.totalorder %v1383, 0
  %v1700 = vand.u32 %v1383, 2139095040
  %v1701 = vshrl.u32 %v1700, 23
  %v1702 = vsub.s32 %v1701, 127
  %v1703 = vand.u32 2147483647, %v1383
  %v1704 = vand.u32 %v1703, 8388607
  %v1705 = vor.u32 %v1704, 8388608
  %v1706 = vsub.s32 0, %v1705
  %v1707 = vadd.s32 %v1702, 1
  %vm1708 = vcmp.gt.s32.totalorder %v1707, 0
  %v1709 = vsel %vm1708, %v1707, 0
  %v1710 = vshrl.u32 %v1709, 5
  %v1711 = vand.u32 %v1709, 31
  %v1712 = vsub.s32 32, %v1711
  %v1713 = vshrl.u32 683565275, %v1712
  %v1714 = vshll.u32 683565275, %v1711
  %v1715 = vshrl.u32 2475754826, %v1712
  %v1716 = vor.u32 %v1714, %v1715
  %v1717 = vshll.u32 2475754826, %v1711
  %v1718 = vshrl.u32 2131351028, %v1712
  %v1719 = vor.u32 %v1717, %v1718
  %v1720 = vshll.u32 2131351028, %v1711
  %v1721 = vshrl.u32 2102212464, %v1712
  %v1722 = vor.u32 %v1720, %v1721
  %v1723 = vshll.u32 2102212464, %v1711
  %v1724 = vshrl.u32 920167782, %v1712
  %v1725 = vor.u32 %v1723, %v1724
  %v1726 = vshll.u32 920167782, %v1711
  %v1727 = vshrl.u32 1326507024, %v1712
  %v1728 = vor.u32 %v1726, %v1727
  %vm1729 = vcmp.lt.s32.totalorder %v1710, 1
  %vm1730 = vcmp.lt.s32.totalorder %v1710, 2
  %vm1731 = vcmp.lt.s32.totalorder %v1710, 3
  %vm1732 = vcmp.lt.s32.totalorder %v1710, 4
  %v1733 = vsel %vm1729, %v1713, %v1716
  %v1734 = vsel %vm1732, %v1722, 2102212464
  %v1735 = vsel %vm1731, %v1719, %v1734
  %v1736 = vsel %vm1730, %v1733, %v1735
  %v1737 = vsel %vm1729, %v1716, %v1719
  %v1738 = vsel %vm1732, %v1725, 920167782
  %v1739 = vsel %vm1731, %v1722, %v1738
  %v1740 = vsel %vm1730, %v1737, %v1739
  %v1741 = vsel %vm1729, %v1719, %v1722
  %v1742 = vsel %vm1732, %v1728, 1326507024
  %v1743 = vsel %vm1731, %v1725, %v1742
  %v1744 = vsel %vm1730, %v1741, %v1743
  %v1745 = vshll.u32 %v1705, 8
  %v1746 = vmul.u32.u64.compose %v1745, %v1744
  %v1747 = vextract.low.u32 %v1746
  %v1748 = vextract.high.u32 %v1746
  %v1749 = vmul.u32.u64.compose %v1745, %v1740
  %v1750 = vextract.low.u32 %v1749
  %v1751 = vextract.high.u32 %v1749
  %v1752 = vmul.u32 %v1745, %v1736
  %v1753 = vadd.s32 %v1748, %v1750
  %vm1754 = vc.u32 %v1748, %v1750
  %v1755 = vadd.s32 %v1751, 1
  %v1756 = vsel %vm1754, %v1755, %v1751
  %v1757 = vadd.s32 %v1752, %v1756
  %v1758 = vadd.s32 %v1757, 536870912
  %v1759 = vshrl.u32 %v1758, 30
  %v1760 = vshll.u32 %v1759, 30
  %v1761 = vsub.s32 %v1757, %v1760
  %vm1762 = vcmp.lt.s32.totalorder %v1761, 0
  %v1763 = vsub.s32 0, %v1761
  %v1764 = vsel %vm1762, %v1763, %v1761
  %v1765 = vclz %v1764
  %v1766 = vsub.s32 %v1765, 2
  %vm1767 = vcmp.gt.s32.totalorder 0, %v1766
  %v1768 = vsel %vm1767, 0, %v1766
  %v1769 = vsub.s32 32, %v1768
  %v1770 = vshll.u32 %v1761, %v1768
  %v1771 = vshrl.u32 %v1753, %v1769
  %v1772 = vor.u32 %v1770, %v1771
  %v1773 = vsub.s32 4294967266, %v1768
  %v1774 = vadd.s32 %v1773, 127
  %v1775 = vshll.u32 %v1774, 23
  %v1776 = vor.u32 4788187, %v1775
  %v1777 = vand.u32 2147483647, %v1776
  %v1779 = vcvt.s32.f32 %v1772
  %v1780 = vmul.f32 %v1779, %v1777
  %v1781 = vxor.u32 %v1780, 2147483648
  %v1782 = vsel %vm1699, %v1781, %v1780
  %v1783 = vsub.s32 4, %v1759
  %v1784 = vsel %vm1699, %v1783, %v1759
  %v1785 = vsel %vm1698, %v1383, %v1782
  %v1786 = vsel %vm1698, 0, %v1784
  %v1787 = vcosq.f32.pop %v1785
  %v1788 = vsinq.f32.pop %v1785
  %vm1789 = vweird.f32 %v1383
  %v1790 = vand.u32 %v1786, 3
  %vm1791 = vcmp.lt.s32.totalorder %v1790, 2
  %vm1792 = vcmp.eq.s32.totalorder %v1790, 0
  %v1793 = vxor.u32 %v1788, 2147483648
  %v1794 = vsel %vm1792, %v1787, %v1793
  %vm1795 = vcmp.eq.s32.totalorder %v1790, 2
  %v1796 = vxor.u32 %v1787, 2147483648
  %v1797 = vsel %vm1795, %v1796, %v1788
  %v1798 = vsel %vm1791, %v1794, %v1797
  %v1799 = vsel %vm1789, nan, %v1798
  %v1800 = vmul.f32 %v1489, 0.5
  %v1801 = vmul.f32 %v1592, -0.5
  %v1802 = vmul.f32 %v1592, -1.0
  %v1803 = vmul.f32 %v1799, -1.0
  %v1804 = vmul.f32 %v1696, 2.0
  %v1805 = vmul.f32 %v1799, 2.0
  %v1806 = vmul.f32 %v1800, 12.0
  %v1807 = vmul.f32 %v1801, 12.0
  %v1808 = vmul.f32 %v1489, 12.0
  %v1809 = vmul.f32 %v1802, 12.0
  %v1810 = vmul.f32 %v1592, 12.0
  %v1811 = vmul.f32 %v1696, 1.5
  %v1812 = vmul.f32 %v1803, 1.5
  %v1813 = vmul.f32 %v1804, 1.5
  %v1814 = vmul.f32 %v1805, 1.5
  %v1815 = vmul.f32 %v1808, %v1489
  %v1816 = vmul.f32 %v1808, %v1802
  %v1817 = vmul.f32 %v1808, %v1592
  %v1818 = vmul.f32 %v1806, %v1800
  %v1819 = vadd.f32 %v1818, 1.0
  %v1820 = vmul.f32 %v1806, %v1801
  %v1821 = vmul.f32 %v1806, %v1489
  %v1822 = vmul.f32 %v1806, %v1802
  %v1823 = vmul.f32 %v1806, %v1592
  %v1824 = vmul.f32 %v1807, %v1801
  %v1825 = vadd.f32 %v1824, 1.0
  %v1826 = vmul.f32 %v1807, %v1489
  %v1827 = vmul.f32 %v1807, %v1802
  %v1828 = vmul.f32 %v1807, %v1592
  %v1829 = vadd.f32 %v1815, 0.5
  %v1830 = vmul.f32 %v1811, %v1696
  %v1831 = vadd.f32 %v1829, %v1830
  %v1832 = vmul.f32 %v1811, %v1803
  %v1833 = vadd.f32 %v1816, %v1832
  %v1834 = vmul.f32 %v1811, %v1804
  %v1835 = vadd.f32 %v1815, %v1834
  %v1836 = vmul.f32 %v1811, %v1805
  %v1837 = vadd.f32 %v1817, %v1836
  %v1838 = vmul.f32 %v1809, %v1802
  %v1839 = vadd.f32 %v1838, 0.5
  %v1840 = vmul.f32 %v1812, %v1803
  %v1841 = vadd.f32 %v1839, %v1840
  %v1842 = vmul.f32 %v1812, %v1804
  %v1843 = vadd.f32 %v1816, %v1842
  %v1844 = vmul.f32 %v1809, %v1592
  %v1845 = vmul.f32 %v1812, %v1805
  %v1846 = vadd.f32 %v1844, %v1845
  %v1847 = vmul.f32 %v1813, %v1804
  %v1848 = vadd.f32 %v1815, %v1847
  %v1849 = vadd.f32 %v1848, 0.33333334
  %v1850 = vmul.f32 %v1813, %v1805
  %v1851 = vadd.f32 %v1817, %v1850
  %v1852 = vmul.f32 %v1810, %v1592
  %v1853 = vmul.f32 %v1814, %v1805
  %v1854 = vadd.f32 %v1852, %v1853
  %v1855 = vmul.f32 %v1384, %v1384
  %v1856 = vmul.f32 %v1385, %v1385
  %v1857 = vmul.f32 %v1855, %v1592
  %v1858 = vmul.f32 %v1855, %v1489
  %v1859 = vmul.f32 %v1856, %v1805
  %v1860 = vmul.f32 %v1856, %v1804
  %v1861 = vmul.f32 %v1857, 0.5
  %v1862 = vmul.f32 %v1858, 0.5
  %v1863 = vsub.f32 %v1862, 9.8
  %v1864 = vmul.f32 %v1859, 0.5
  %v1865 = vadd.f32 %v1857, %v1864
  %v1866 = vmul.f32 %v1860, 0.5
  %v1867 = vadd.f32 %v1858, %v1866
  %v1868 = vsub.f32 %v1867, 9.8
  %v1869 = vadd.f32 %v1857, %v1859
  %v1870 = vsub.f32 0.0, %v1858
  %v1871 = vsub.f32 %v1870, %v1860
  %v1872 = vrcp.pop %v1819
  %v1873 = vmul.f32 1.0, %v1872
  %v1874 = vmul.f32 %v1820, %v1873
  %v1875 = vmul.f32 %v1874, %v1820
  %v1876 = vsub.f32 %v1825, %v1875
  %v1877 = vmul.f32 %v1874, %v1821
  %v1878 = vsub.f32 %v1826, %v1877
  %v1879 = vmul.f32 %v1874, %v1822
  %v1880 = vsub.f32 %v1827, %v1879
  %v1881 = vmul.f32 %v1874, %v1823
  %v1882 = vsub.f32 %v1828, %v1881
  %v1883 = vmul.f32 %v1874, %v1861
  %v1884 = vsub.f32 %v1863, %v1883
  %v1885 = vmul.f32 %v1821, %v1873
  %v1886 = vmul.f32 %v1885, %v1821
  %v1887 = vsub.f32 %v1831, %v1886
  %v1888 = vmul.f32 %v1885, %v1822
  %v1889 = vsub.f32 %v1833, %v1888
  %v1890 = vsub.f32 %v1835, %v1886
  %v1891 = vmul.f32 %v1885, %v1823
  %v1892 = vsub.f32 %v1837, %v1891
  %v1893 = vmul.f32 %v1885, %v1861
  %v1894 = vsub.f32 %v1865, %v1893
  %v1895 = vmul.f32 %v1822, %v1873
  %v1896 = vmul.f32 %v1895, %v1822
  %v1897 = vsub.f32 %v1841, %v1896
  %v1898 = vmul.f32 %v1895, %v1821
  %v1899 = vsub.f32 %v1843, %v1898
  %v1900 = vmul.f32 %v1895, %v1823
  %v1901 = vsub.f32 %v1846, %v1900
  %v1902 = vmul.f32 %v1895, %v1861
  %v1903 = vsub.f32 %v1868, %v1902
  %v1904 = vsub.f32 %v1849, %v1886
  %v1905 = vsub.f32 %v1851, %v1891
  %v1906 = vsub.f32 %v1869, %v1893
  %v1907 = vmul.f32 %v1823, %v1873
  %v1908 = vmul.f32 %v1907, %v1823
  %v1909 = vsub.f32 %v1854, %v1908
  %v1910 = vmul.f32 %v1907, %v1861
  %v1911 = vsub.f32 %v1871, %v1910
  %v1912 = vrcp.pop %v1876
  %v1913 = vmul.f32 1.0, %v1912
  %v1914 = vmul.f32 %v1878, %v1913
  %v1915 = vmul.f32 %v1914, %v1878
  %v1916 = vsub.f32 %v1887, %v1915
  %v1917 = vmul.f32 %v1914, %v1880
  %v1918 = vsub.f32 %v1889, %v1917
  %v1919 = vsub.f32 %v1890, %v1915
  %v1920 = vmul.f32 %v1914, %v1882
  %v1921 = vsub.f32 %v1892, %v1920
  %v1922 = vmul.f32 %v1914, %v1884
  %v1923 = vsub.f32 %v1894, %v1922
  %v1924 = vmul.f32 %v1880, %v1913
  %v1925 = vmul.f32 %v1924, %v1880
  %v1926 = vsub.f32 %v1897, %v1925
  %v1927 = vmul.f32 %v1924, %v1878
  %v1928 = vsub.f32 %v1899, %v1927
  %v1929 = vmul.f32 %v1924, %v1882
  %v1930 = vsub.f32 %v1901, %v1929
  %v1931 = vmul.f32 %v1924, %v1884
  %v1932 = vsub.f32 %v1903, %v1931
  %v1933 = vsub.f32 %v1904, %v1915
  %v1934 = vsub.f32 %v1905, %v1920
  %v1935 = vsub.f32 %v1906, %v1922
  %v1936 = vmul.f32 %v1882, %v1913
  %v1937 = vmul.f32 %v1936, %v1882
  %v1938 = vsub.f32 %v1909, %v1937
  %v1939 = vmul.f32 %v1936, %v1884
  %v1940 = vsub.f32 %v1911, %v1939
  %v1941 = vrcp.pop %v1916
  %v1942 = vmul.f32 1.0, %v1941
  %v1943 = vmul.f32 %v1918, %v1942
  %v1944 = vmul.f32 %v1943, %v1918
  %v1945 = vsub.f32 %v1926, %v1944
  %v1946 = vmul.f32 %v1943, %v1919
  %v1947 = vsub.f32 %v1928, %v1946
  %v1948 = vmul.f32 %v1943, %v1921
  %v1949 = vsub.f32 %v1930, %v1948
  %v1950 = vmul.f32 %v1943, %v1923
  %v1951 = vsub.f32 %v1932, %v1950
  %v1952 = vmul.f32 %v1919, %v1942
  %v1953 = vmul.f32 %v1952, %v1919
  %v1954 = vsub.f32 %v1933, %v1953
  %v1955 = vmul.f32 %v1952, %v1921
  %v1956 = vsub.f32 %v1934, %v1955
  %v1957 = vmul.f32 %v1952, %v1923
  %v1958 = vsub.f32 %v1935, %v1957
  %v1959 = vmul.f32 %v1921, %v1942
  %v1960 = vmul.f32 %v1959, %v1921
  %v1961 = vsub.f32 %v1938, %v1960
  %v1962 = vmul.f32 %v1959, %v1923
  %v1963 = vsub.f32 %v1940, %v1962
  %v1964 = vrcp.pop %v1945
  %v1965 = vmul.f32 1.0, %v1964
  %v1966 = vmul.f32 %v1947, %v1965
  %v1967 = vmul.f32 %v1966, %v1947
  %v1968 = vsub.f32 %v1954, %v1967
  %v1969 = vmul.f32 %v1966, %v1949
  %v1970 = vsub.f32 %v1956, %v1969
  %v1971 = vmul.f32 %v1966, %v1951
  %v1972 = vsub.f32 %v1958, %v1971
  %v1973 = vmul.f32 %v1949, %v1965
  %v1974 = vmul.f32 %v1973, %v1949
  %v1975 = vsub.f32 %v1961, %v1974
  %v1976 = vmul.f32 %v1973, %v1951
  %v1977 = vsub.f32 %v1963, %v1976
  %v1978 = vrcp.pop %v1968
  %v1979 = vmul.f32 1.0, %v1978
  %v1980 = vmul.f32 %v1970, %v1979
  %v1981 = vmul.f32 %v1980, %v1970
  %v1982 = vsub.f32 %v1975, %v1981
  %v1983 = vmul.f32 %v1980, %v1972
  %v1984 = vsub.f32 %v1977, %v1983
  %v1985 = vrcp.pop %v1982
  %v1986 = vmul.f32 1.0, %v1985
  %v1987 = vmul.f32 %v1984, %v1986
  %v1988 = vmul.f32 %v1970, %v1987
  %v1989 = vsub.f32 %v1972, %v1988
  %v1990 = vmul.f32 %v1989, %v1979
  %v1991 = vmul.f32 %v1947, %v1990
  %v1992 = vsub.f32 %v1951, %v1991
  %v1993 = vmul.f32 %v1949, %v1987
  %v1994 = vsub.f32 %v1992, %v1993
  %v1995 = vmul.f32 %v1994, %v1965
  %v1996 = vmul.f32 %v1918, %v1995
  %v1997 = vsub.f32 %v1923, %v1996
  %v1998 = vmul.f32 %v1919, %v1990
  %v1999 = vsub.f32 %v1997, %v1998
  %v2000 = vmul.f32 %v1921, %v1987
  %v2001 = vsub.f32 %v1999, %v2000
  %v2002 = vmul.f32 %v2001, %v1942
  %v2003 = vmul.f32 %v1878, %v2002
  %v2004 = vsub.f32 %v1884, %v2003
  %v2005 = vmul.f32 %v1880, %v1995
  %v2006 = vsub.f32 %v2004, %v2005
  %v2007 = vmul.f32 %v1878, %v1990
  %v2008 = vsub.f32 %v2006, %v2007
  %v2009 = vmul.f32 %v1882, %v1987
  %v2010 = vsub.f32 %v2008, %v2009
  %v2011 = vmul.f32 %v2010, %v1913
  %v2012 = vmul.f32 %v1820, %v2011
  %v2013 = vsub.f32 %v1861, %v2012
  %v2014 = vmul.f32 %v1821, %v2002
  %v2015 = vsub.f32 %v2013, %v2014
  %v2016 = vmul.f32 %v1822, %v1995
  %v2017 = vsub.f32 %v2015, %v2016
  %v2018 = vmul.f32 %v1821, %v1990
  %v2019 = vsub.f32 %v2017, %v2018
  %v2020 = vmul.f32 %v1823, %v1987
  %v2021 = vsub.f32 %v2019, %v2020
  %v2022 = vmul.f32 %v2021, %v1873
  %v2023 = vmul.f32 %v1800, %v2022
  %v2024 = vmul.f32 %v1801, %v2011
  %v2025 = vadd.f32 %v2023, %v2024
  %v2026 = vadd.f32 %v2002, %v1990
  %v2027 = vmul.f32 %v1489, %v2026
  %v2028 = vadd.f32 %v2025, %v2027
  %v2029 = vmul.f32 %v1802, %v1995
  %v2030 = vadd.f32 %v2028, %v2029
  %v2031 = vmul.f32 %v1592, %v1987
  %v2032 = vadd.f32 %v2030, %v2031
  %v2033 = vmul.f32 %v1696, %v2002
  %v2034 = vmul.f32 %v1803, %v1995
  %v2035 = vadd.f32 %v2033, %v2034
  %v2036 = vmul.f32 %v1804, %v1990
  %v2037 = vadd.f32 %v2035, %v2036
  %v2038 = vmul.f32 %v1805, %v1987
  %v2039 = vadd.f32 %v2037, %v2038
  %v2040 = vmul.f32 %v2022, -1.0
  %2041 = vst [vmem:[%s1 + $0x10] sm:$0xff] %v2040
  %v2042 = vsub.f32 -9.8, %v2011
  %2043 = vst [vmem:[%s673 + $0x10] sm:$0xff] %v2042
  %v2044 = vmul.f32 %v2032, -12.0
  %2045 = vst [vmem:[%s676 + $0x10] sm:$0xff] %v2044
  %v2046 = vmul.f32 %v2002, -0.5
  %2047 = vst [vmem:[%s679 + $0x10] sm:$0xff] %v2046
  %v2048 = vmul.f32 %v1995, 0.5
  %v2049 = vsub.f32 -9.8, %v2048
  %2050 = vst [vmem:[%s683 + $0x10] sm:$0xff] %v2049
  %v2051 = vmul.f32 %v2039, -1.5
  %2052 = vst [vmem:[%s686 + $0x10] sm:$0xff] %v2051
  %v2053 = vmul.f32 %v1990, -0.33333334
  %2054 = vst [vmem:[%s689 + $0x10] sm:$0xff] %v2053
  %2055 = vst [vmem:[%s691 + $0x10] sm:$0xff] %v2022
  %2056 = vst [vmem:[%s693 + $0x10] sm:$0xff] %v2011
  %2057 = vst [vmem:[%s695 + $0x10] sm:$0xff] %v2002
  %2058 = vst [vmem:[%s697 + $0x10] sm:$0xff] %v1995
  %2059 = vst [vmem:[%s699 + $0x10] sm:$0xff] %v1990
  %2060 = vst [vmem:[%s701 + $0x10] sm:$0xff] %v1987
  %v2061 = vld [vmem:[%s8 + $0x18] sm:$0xff]
  %v2062 = vld [vmem:[%s10 + $0x18] sm:$0xff]
  %v2063 = vld [vmem:[%s12 + $0x18] sm:$0xff]
  %v2064 = vld [vmem:[%s14 + $0x18] sm:$0xff]
  %v2065 = vand.u32 2147483647, %v2061
  %vm2066 = vcmp.le.f32.partialorder %v2065, 0.7853982
  %vm2067 = vcmp.lt.s32.totalorder %v2061, 0
  %v2068 = vand.u32 %v2061, 2139095040
  %v2069 = vshrl.u32 %v2068, 23
  %v2070 = vsub.s32 %v2069, 127
  %v2071 = vand.u32 2147483647, %v2061
  %v2072 = vand.u32 %v2071, 8388607
  %v2073 = vor.u32 %v2072, 8388608
  %v2074 = vsub.s32 0, %v2073
  %v2075 = vadd.s32 %v2070, 1
  %vm2076 = vcmp.gt.s32.totalorder %v2075, 0
  %v2077 = vsel %vm2076, %v2075, 0
  %v2078 = vshrl.u32 %v2077, 5
  %v2079 = vand.u32 %v2077, 31
  %v2080 = vsub.s32 32, %v2079
  %v2081 = vshrl.u32 683565275, %v2080
  %v2082 = vshll.u32 683565275, %v2079
  %v2083 = vshrl.u32 2475754826, %v2080
  %v2084 = vor.u32 %v2082, %v2083
  %v2085 = vshll.u32 2475754826, %v2079
  %v2086 = vshrl.u32 2131351028, %v2080
  %v2087 = vor.u32 %v2085, %v2086
  %v2088 = vshll.u32 2131351028, %v2079
  %v2089 = vshrl.u32 2102212464, %v2080
  %v2090 = vor.u32 %v2088, %v2089
  %v2091 = vshll.u32 2102212464, %v2079
  %v2092 = vshrl.u32 920167782, %v2080
  %v2093 = vor.u32 %v2091, %v2092
  %v2094 = vshll.u32 920167782, %v2079
  %v2095 = vshrl.u32 1326507024, %v2080
  %v2096 = vor.u32 %v2094, %v2095
  %vm2097 = vcmp.lt.s32.totalorder %v2078, 1
  %vm2098 = vcmp.lt.s32.totalorder %v2078, 2
  %vm2099 = vcmp.lt.s32.totalorder %v2078, 3
  %vm2100 = vcmp.lt.s32.totalorder %v2078, 4
  %v2101 = vsel %vm2097, %v2081, %v2084
  %v2102 = vsel %vm2100, %v2090, 2102212464
  %v2103 = vsel %vm2099, %v2087, %v2102
  %v2104 = vsel %vm2098, %v2101, %v2103
  %v2105 = vsel %vm2097, %v2084, %v2087
  %v2106 = vsel %vm2100, %v2093, 920167782
  %v2107 = vsel %vm2099, %v2090, %v2106
  %v2108 = vsel %vm2098, %v2105, %v2107
  %v2109 = vsel %vm2097, %v2087, %v2090
  %v2110 = vsel %vm2100, %v2096, 1326507024
  %v2111 = vsel %vm2099, %v2093, %v2110
  %v2112 = vsel %vm2098, %v2109, %v2111
  %v2113 = vshll.u32 %v2073, 8
  %v2114 = vmul.u32.u64.compose %v2113, %v2112
  %v2115 = vextract.low.u32 %v2114
  %v2116 = vextract.high.u32 %v2114
  %v2117 = vmul.u32.u64.compose %v2113, %v2108
  %v2118 = vextract.low.u32 %v2117
  %v2119 = vextract.high.u32 %v2117
  %v2120 = vmul.u32 %v2113, %v2104
  %v2121 = vadd.s32 %v2116, %v2118
  %vm2122 = vc.u32 %v2116, %v2118
  %v2123 = vadd.s32 %v2119, 1
  %v2124 = vsel %vm2122, %v2123, %v2119
  %v2125 = vadd.s32 %v2120, %v2124
  %v2126 = vadd.s32 %v2125, 536870912
  %v2127 = vshrl.u32 %v2126, 30
  %v2128 = vshll.u32 %v2127, 30
  %v2129 = vsub.s32 %v2125, %v2128
  %vm2130 = vcmp.lt.s32.totalorder %v2129, 0
  %v2131 = vsub.s32 0, %v2129
  %v2132 = vsel %vm2130, %v2131, %v2129
  %v2133 = vclz %v2132
  %v2134 = vsub.s32 %v2133, 2
  %vm2135 = vcmp.gt.s32.totalorder 0, %v2134
  %v2136 = vsel %vm2135, 0, %v2134
  %v2137 = vsub.s32 32, %v2136
  %v2138 = vshll.u32 %v2129, %v2136
  %v2139 = vshrl.u32 %v2121, %v2137
  %v2140 = vor.u32 %v2138, %v2139
  %v2141 = vsub.s32 4294967266, %v2136
  %v2142 = vadd.s32 %v2141, 127
  %v2143 = vshll.u32 %v2142, 23
  %v2144 = vor.u32 4788187, %v2143
  %v2145 = vand.u32 2147483647, %v2144
  %v2147 = vcvt.s32.f32 %v2140
  %v2148 = vmul.f32 %v2147, %v2145
  %v2149 = vxor.u32 %v2148, 2147483648
  %v2150 = vsel %vm2067, %v2149, %v2148
  %v2151 = vsub.s32 4, %v2127
  %v2152 = vsel %vm2067, %v2151, %v2127
  %v2153 = vsel %vm2066, %v2061, %v2150
  %v2154 = vsel %vm2066, 0, %v2152
  %v2155 = vcosq.f32.pop %v2153
  %v2156 = vsinq.f32.pop %v2153
  %vm2157 = vweird.f32 %v2061
  %v2158 = vadd.s32 %v2154, 3
  %v2159 = vand.u32 %v2158, 3
  %vm2160 = vcmp.lt.s32.totalorder %v2159, 2
  %vm2161 = vcmp.eq.s32.totalorder %v2159, 0
  %v2162 = vxor.u32 %v2156, 2147483648
  %v2163 = vsel %vm2161, %v2155, %v2162
  %vm2164 = vcmp.eq.s32.totalorder %v2159, 2
  %v2165 = vxor.u32 %v2155, 2147483648
  %v2166 = vsel %vm2164, %v2165, %v2156
  %v2167 = vsel %vm2160, %v2163, %v2166
  %v2168 = vsel %vm2157, nan, %v2167
  %v2169 = vand.u32 2147483647, %v2061
  %vm2170 = vcmp.le.f32.partialorder %v2169, 0.7853982
  %vm2171 = vcmp.lt.s32.totalorder %v2061, 0
  %v2172 = vand.u32 %v2061, 2139095040
  %v2173 = vshrl.u32 %v2172, 23
  %v2174 = vsub.s32 %v2173, 127
  %v2175 = vand.u32 2147483647, %v2061
  %v2176 = vand.u32 %v2175, 8388607
  %v2177 = vor.u32 %v2176, 8388608
  %v2178 = vsub.s32 0, %v2177
  %v2179 = vadd.s32 %v2174, 1
  %vm2180 = vcmp.gt.s32.totalorder %v2179, 0
  %v2181 = vsel %vm2180, %v2179, 0
  %v2182 = vshrl.u32 %v2181, 5
  %v2183 = vand.u32 %v2181, 31
  %v2184 = vsub.s32 32, %v2183
  %v2185 = vshrl.u32 683565275, %v2184
  %v2186 = vshll.u32 683565275, %v2183
  %v2187 = vshrl.u32 2475754826, %v2184
  %v2188 = vor.u32 %v2186, %v2187
  %v2189 = vshll.u32 2475754826, %v2183
  %v2190 = vshrl.u32 2131351028, %v2184
  %v2191 = vor.u32 %v2189, %v2190
  %v2192 = vshll.u32 2131351028, %v2183
  %v2193 = vshrl.u32 2102212464, %v2184
  %v2194 = vor.u32 %v2192, %v2193
  %v2195 = vshll.u32 2102212464, %v2183
  %v2196 = vshrl.u32 920167782, %v2184
  %v2197 = vor.u32 %v2195, %v2196
  %v2198 = vshll.u32 920167782, %v2183
  %v2199 = vshrl.u32 1326507024, %v2184
  %v2200 = vor.u32 %v2198, %v2199
  %vm2201 = vcmp.lt.s32.totalorder %v2182, 1
  %vm2202 = vcmp.lt.s32.totalorder %v2182, 2
  %vm2203 = vcmp.lt.s32.totalorder %v2182, 3
  %vm2204 = vcmp.lt.s32.totalorder %v2182, 4
  %v2205 = vsel %vm2201, %v2185, %v2188
  %v2206 = vsel %vm2204, %v2194, 2102212464
  %v2207 = vsel %vm2203, %v2191, %v2206
  %v2208 = vsel %vm2202, %v2205, %v2207
  %v2209 = vsel %vm2201, %v2188, %v2191
  %v2210 = vsel %vm2204, %v2197, 920167782
  %v2211 = vsel %vm2203, %v2194, %v2210
  %v2212 = vsel %vm2202, %v2209, %v2211
  %v2213 = vsel %vm2201, %v2191, %v2194
  %v2214 = vsel %vm2204, %v2200, 1326507024
  %v2215 = vsel %vm2203, %v2197, %v2214
  %v2216 = vsel %vm2202, %v2213, %v2215
  %v2217 = vshll.u32 %v2177, 8
  %v2218 = vmul.u32.u64.compose %v2217, %v2216
  %v2219 = vextract.low.u32 %v2218
  %v2220 = vextract.high.u32 %v2218
  %v2221 = vmul.u32.u64.compose %v2217, %v2212
  %v2222 = vextract.low.u32 %v2221
  %v2223 = vextract.high.u32 %v2221
  %v2224 = vmul.u32 %v2217, %v2208
  %v2225 = vadd.s32 %v2220, %v2222
  %vm2226 = vc.u32 %v2220, %v2222
  %v2227 = vadd.s32 %v2223, 1
  %v2228 = vsel %vm2226, %v2227, %v2223
  %v2229 = vadd.s32 %v2224, %v2228
  %v2230 = vadd.s32 %v2229, 536870912
  %v2231 = vshrl.u32 %v2230, 30
  %v2232 = vshll.u32 %v2231, 30
  %v2233 = vsub.s32 %v2229, %v2232
  %vm2234 = vcmp.lt.s32.totalorder %v2233, 0
  %v2235 = vsub.s32 0, %v2233
  %v2236 = vsel %vm2234, %v2235, %v2233
  %v2237 = vclz %v2236
  %v2238 = vsub.s32 %v2237, 2
  %vm2239 = vcmp.gt.s32.totalorder 0, %v2238
  %v2240 = vsel %vm2239, 0, %v2238
  %v2241 = vsub.s32 32, %v2240
  %v2242 = vshll.u32 %v2233, %v2240
  %v2243 = vshrl.u32 %v2225, %v2241
  %v2244 = vor.u32 %v2242, %v2243
  %v2245 = vsub.s32 4294967266, %v2240
  %v2246 = vadd.s32 %v2245, 127
  %v2247 = vshll.u32 %v2246, 23
  %v2248 = vor.u32 4788187, %v2247
  %v2249 = vand.u32 2147483647, %v2248
  %v2251 = vcvt.s32.f32 %v2244
  %v2252 = vmul.f32 %v2251, %v2249
  %v2253 = vxor.u32 %v2252, 2147483648
  %v2254 = vsel %vm2171, %v2253, %v2252
  %v2255 = vsub.s32 4, %v2231
  %v2256 = vsel %vm2171, %v2255, %v2231
  %v2257 = vsel %vm2170, %v2061, %v2254
  %v2258 = vsel %vm2170, 0, %v2256
  %v2259 = vcosq.f32.pop %v2257
  %v2260 = vsinq.f32.pop %v2257
  %vm2261 = vweird.f32 %v2061
  %v2262 = vand.u32 %v2258, 3
  %vm2263 = vcmp.lt.s32.totalorder %v2262, 2
  %vm2264 = vcmp.eq.s32.totalorder %v2262, 0
  %v2265 = vxor.u32 %v2260, 2147483648
  %v2266 = vsel %vm2264, %v2259, %v2265
  %vm2267 = vcmp.eq.s32.totalorder %v2262, 2
  %v2268 = vxor.u32 %v2259, 2147483648
  %v2269 = vsel %vm2267, %v2268, %v2260
  %v2270 = vsel %vm2263, %v2266, %v2269
  %v2271 = vsel %vm2261, nan, %v2270
  %v2272 = vand.u32 2147483647, %v2062
  %vm2273 = vcmp.le.f32.partialorder %v2272, 0.7853982
  %vm2274 = vcmp.lt.s32.totalorder %v2062, 0
  %v2275 = vand.u32 %v2062, 2139095040
  %v2276 = vshrl.u32 %v2275, 23
  %v2277 = vsub.s32 %v2276, 127
  %v2278 = vand.u32 2147483647, %v2062
  %v2279 = vand.u32 %v2278, 8388607
  %v2280 = vor.u32 %v2279, 8388608
  %v2281 = vsub.s32 0, %v2280
  %v2282 = vadd.s32 %v2277, 1
  %vm2283 = vcmp.gt.s32.totalorder %v2282, 0
  %v2284 = vsel %vm2283, %v2282, 0
  %v2285 = vshrl.u32 %v2284, 5
  %v2286 = vand.u32 %v2284, 31
  %v2287 = vsub.s32 32, %v2286
  %v2288 = vshrl.u32 683565275, %v2287
  %v2289 = vshll.u32 683565275, %v2286
  %v2290 = vshrl.u32 2475754826, %v2287
  %v2291 = vor.u32 %v2289, %v2290
  %v2292 = vshll.u32 2475754826, %v2286
  %v2293 = vshrl.u32 2131351028, %v2287
  %v2294 = vor.u32 %v2292, %v2293
  %v2295 = vshll.u32 2131351028, %v2286
  %v2296 = vshrl.u32 2102212464, %v2287
  %v2297 = vor.u32 %v2295, %v2296
  %v2298 = vshll.u32 2102212464, %v2286
  %v2299 = vshrl.u32 920167782, %v2287
  %v2300 = vor.u32 %v2298, %v2299
  %v2301 = vshll.u32 920167782, %v2286
  %v2302 = vshrl.u32 1326507024, %v2287
  %v2303 = vor.u32 %v2301, %v2302
  %vm2304 = vcmp.lt.s32.totalorder %v2285, 1
  %vm2305 = vcmp.lt.s32.totalorder %v2285, 2
  %vm2306 = vcmp.lt.s32.totalorder %v2285, 3
  %vm2307 = vcmp.lt.s32.totalorder %v2285, 4
  %v2308 = vsel %vm2304, %v2288, %v2291
  %v2309 = vsel %vm2307, %v2297, 2102212464
  %v2310 = vsel %vm2306, %v2294, %v2309
  %v2311 = vsel %vm2305, %v2308, %v2310
  %v2312 = vsel %vm2304, %v2291, %v2294
  %v2313 = vsel %vm2307, %v2300, 920167782
  %v2314 = vsel %vm2306, %v2297, %v2313
  %v2315 = vsel %vm2305, %v2312, %v2314
  %v2316 = vsel %vm2304, %v2294, %v2297
  %v2317 = vsel %vm2307, %v2303, 1326507024
  %v2318 = vsel %vm2306, %v2300, %v2317
  %v2319 = vsel %vm2305, %v2316, %v2318
  %v2320 = vshll.u32 %v2280, 8
  %v2321 = vmul.u32.u64.compose %v2320, %v2319
  %v2322 = vextract.low.u32 %v2321
  %v2323 = vextract.high.u32 %v2321
  %v2324 = vmul.u32.u64.compose %v2320, %v2315
  %v2325 = vextract.low.u32 %v2324
  %v2326 = vextract.high.u32 %v2324
  %v2327 = vmul.u32 %v2320, %v2311
  %v2328 = vadd.s32 %v2323, %v2325
  %vm2329 = vc.u32 %v2323, %v2325
  %v2330 = vadd.s32 %v2326, 1
  %v2331 = vsel %vm2329, %v2330, %v2326
  %v2332 = vadd.s32 %v2327, %v2331
  %v2333 = vadd.s32 %v2332, 536870912
  %v2334 = vshrl.u32 %v2333, 30
  %v2335 = vshll.u32 %v2334, 30
  %v2336 = vsub.s32 %v2332, %v2335
  %vm2337 = vcmp.lt.s32.totalorder %v2336, 0
  %v2338 = vsub.s32 0, %v2336
  %v2339 = vsel %vm2337, %v2338, %v2336
  %v2340 = vclz %v2339
  %v2341 = vsub.s32 %v2340, 2
  %vm2342 = vcmp.gt.s32.totalorder 0, %v2341
  %v2343 = vsel %vm2342, 0, %v2341
  %v2344 = vsub.s32 32, %v2343
  %v2345 = vshll.u32 %v2336, %v2343
  %v2346 = vshrl.u32 %v2328, %v2344
  %v2347 = vor.u32 %v2345, %v2346
  %v2348 = vsub.s32 4294967266, %v2343
  %v2349 = vadd.s32 %v2348, 127
  %v2350 = vshll.u32 %v2349, 23
  %v2351 = vor.u32 4788187, %v2350
  %v2352 = vand.u32 2147483647, %v2351
  %v2354 = vcvt.s32.f32 %v2347
  %v2355 = vmul.f32 %v2354, %v2352
  %v2356 = vxor.u32 %v2355, 2147483648
  %v2357 = vsel %vm2274, %v2356, %v2355
  %v2358 = vsub.s32 4, %v2334
  %v2359 = vsel %vm2274, %v2358, %v2334
  %v2360 = vsel %vm2273, %v2062, %v2357
  %v2361 = vsel %vm2273, 0, %v2359
  %v2362 = vcosq.f32.pop %v2360
  %v2363 = vsinq.f32.pop %v2360
  %vm2364 = vweird.f32 %v2062
  %v2365 = vadd.s32 %v2361, 3
  %v2366 = vand.u32 %v2365, 3
  %vm2367 = vcmp.lt.s32.totalorder %v2366, 2
  %vm2368 = vcmp.eq.s32.totalorder %v2366, 0
  %v2369 = vxor.u32 %v2363, 2147483648
  %v2370 = vsel %vm2368, %v2362, %v2369
  %vm2371 = vcmp.eq.s32.totalorder %v2366, 2
  %v2372 = vxor.u32 %v2362, 2147483648
  %v2373 = vsel %vm2371, %v2372, %v2363
  %v2374 = vsel %vm2367, %v2370, %v2373
  %v2375 = vsel %vm2364, nan, %v2374
  %v2376 = vand.u32 2147483647, %v2062
  %vm2377 = vcmp.le.f32.partialorder %v2376, 0.7853982
  %vm2378 = vcmp.lt.s32.totalorder %v2062, 0
  %v2379 = vand.u32 %v2062, 2139095040
  %v2380 = vshrl.u32 %v2379, 23
  %v2381 = vsub.s32 %v2380, 127
  %v2382 = vand.u32 2147483647, %v2062
  %v2383 = vand.u32 %v2382, 8388607
  %v2384 = vor.u32 %v2383, 8388608
  %v2385 = vsub.s32 0, %v2384
  %v2386 = vadd.s32 %v2381, 1
  %vm2387 = vcmp.gt.s32.totalorder %v2386, 0
  %v2388 = vsel %vm2387, %v2386, 0
  %v2389 = vshrl.u32 %v2388, 5
  %v2390 = vand.u32 %v2388, 31
  %v2391 = vsub.s32 32, %v2390
  %v2392 = vshrl.u32 683565275, %v2391
  %v2393 = vshll.u32 683565275, %v2390
  %v2394 = vshrl.u32 2475754826, %v2391
  %v2395 = vor.u32 %v2393, %v2394
  %v2396 = vshll.u32 2475754826, %v2390
  %v2397 = vshrl.u32 2131351028, %v2391
  %v2398 = vor.u32 %v2396, %v2397
  %v2399 = vshll.u32 2131351028, %v2390
  %v2400 = vshrl.u32 2102212464, %v2391
  %v2401 = vor.u32 %v2399, %v2400
  %v2402 = vshll.u32 2102212464, %v2390
  %v2403 = vshrl.u32 920167782, %v2391
  %v2404 = vor.u32 %v2402, %v2403
  %v2405 = vshll.u32 920167782, %v2390
  %v2406 = vshrl.u32 1326507024, %v2391
  %v2407 = vor.u32 %v2405, %v2406
  %vm2408 = vcmp.lt.s32.totalorder %v2389, 1
  %vm2409 = vcmp.lt.s32.totalorder %v2389, 2
  %vm2410 = vcmp.lt.s32.totalorder %v2389, 3
  %vm2411 = vcmp.lt.s32.totalorder %v2389, 4
  %v2412 = vsel %vm2408, %v2392, %v2395
  %v2413 = vsel %vm2411, %v2401, 2102212464
  %v2414 = vsel %vm2410, %v2398, %v2413
  %v2415 = vsel %vm2409, %v2412, %v2414
  %v2416 = vsel %vm2408, %v2395, %v2398
  %v2417 = vsel %vm2411, %v2404, 920167782
  %v2418 = vsel %vm2410, %v2401, %v2417
  %v2419 = vsel %vm2409, %v2416, %v2418
  %v2420 = vsel %vm2408, %v2398, %v2401
  %v2421 = vsel %vm2411, %v2407, 1326507024
  %v2422 = vsel %vm2410, %v2404, %v2421
  %v2423 = vsel %vm2409, %v2420, %v2422
  %v2424 = vshll.u32 %v2384, 8
  %v2425 = vmul.u32.u64.compose %v2424, %v2423
  %v2426 = vextract.low.u32 %v2425
  %v2427 = vextract.high.u32 %v2425
  %v2428 = vmul.u32.u64.compose %v2424, %v2419
  %v2429 = vextract.low.u32 %v2428
  %v2430 = vextract.high.u32 %v2428
  %v2431 = vmul.u32 %v2424, %v2415
  %v2432 = vadd.s32 %v2427, %v2429
  %vm2433 = vc.u32 %v2427, %v2429
  %v2434 = vadd.s32 %v2430, 1
  %v2435 = vsel %vm2433, %v2434, %v2430
  %v2436 = vadd.s32 %v2431, %v2435
  %v2437 = vadd.s32 %v2436, 536870912
  %v2438 = vshrl.u32 %v2437, 30
  %v2439 = vshll.u32 %v2438, 30
  %v2440 = vsub.s32 %v2436, %v2439
  %vm2441 = vcmp.lt.s32.totalorder %v2440, 0
  %v2442 = vsub.s32 0, %v2440
  %v2443 = vsel %vm2441, %v2442, %v2440
  %v2444 = vclz %v2443
  %v2445 = vsub.s32 %v2444, 2
  %vm2446 = vcmp.gt.s32.totalorder 0, %v2445
  %v2447 = vsel %vm2446, 0, %v2445
  %v2448 = vsub.s32 32, %v2447
  %v2449 = vshll.u32 %v2440, %v2447
  %v2450 = vshrl.u32 %v2432, %v2448
  %v2451 = vor.u32 %v2449, %v2450
  %v2452 = vsub.s32 4294967266, %v2447
  %v2453 = vadd.s32 %v2452, 127
  %v2454 = vshll.u32 %v2453, 23
  %v2455 = vor.u32 4788187, %v2454
  %v2456 = vand.u32 2147483647, %v2455
  %v2458 = vcvt.s32.f32 %v2451
  %v2459 = vmul.f32 %v2458, %v2456
  %v2460 = vxor.u32 %v2459, 2147483648
  %v2461 = vsel %vm2378, %v2460, %v2459
  %v2462 = vsub.s32 4, %v2438
  %v2463 = vsel %vm2378, %v2462, %v2438
  %v2464 = vsel %vm2377, %v2062, %v2461
  %v2465 = vsel %vm2377, 0, %v2463
  %v2466 = vcosq.f32.pop %v2464
  %v2467 = vsinq.f32.pop %v2464
  %vm2468 = vweird.f32 %v2062
  %v2469 = vand.u32 %v2465, 3
  %vm2470 = vcmp.lt.s32.totalorder %v2469, 2
  %vm2471 = vcmp.eq.s32.totalorder %v2469, 0
  %v2472 = vxor.u32 %v2467, 2147483648
  %v2473 = vsel %vm2471, %v2466, %v2472
  %vm2474 = vcmp.eq.s32.totalorder %v2469, 2
  %v2475 = vxor.u32 %v2466, 2147483648
  %v2476 = vsel %vm2474, %v2475, %v2467
  %v2477 = vsel %vm2470, %v2473, %v2476
  %v2478 = vsel %vm2468, nan, %v2477
  %v2479 = vmul.f32 %v2168, 0.5
  %v2480 = vmul.f32 %v2271, -0.5
  %v2481 = vmul.f32 %v2271, -1.0
  %v2482 = vmul.f32 %v2478, -1.0
  %v2483 = vmul.f32 %v2375, 2.0
  %v2484 = vmul.f32 %v2478, 2.0
  %v2485 = vmul.f32 %v2479, 12.0
  %v2486 = vmul.f32 %v2480, 12.0
  %v2487 = vmul.f32 %v2168, 12.0
  %v2488 = vmul.f32 %v2481, 12.0
  %v2489 = vmul.f32 %v2271, 12.0
  %v2490 = vmul.f32 %v2375, 1.5
  %v2491 = vmul.f32 %v2482, 1.5
  %v2492 = vmul.f32 %v2483, 1.5
  %v2493 = vmul.f32 %v2484, 1.5
  %v2494 = vmul.f32 %v2487, %v2168
  %v2495 = vmul.f32 %v2487, %v2481
  %v2496 = vmul.f32 %v2487, %v2271
  %v2497 = vmul.f32 %v2485, %v2479
  %v2498 = vadd.f32 %v2497, 1.0
  %v2499 = vmul.f32 %v2485, %v2480
  %v2500 = vmul.f32 %v2485, %v2168
  %v2501 = vmul.f32 %v2485, %v2481
  %v2502 = vmul.f32 %v2485, %v2271
  %v2503 = vmul.f32 %v2486, %v2480
  %v2504 = vadd.f32 %v2503, 1.0
  %v2505 = vmul.f32 %v2486, %v2168
  %v2506 = vmul.f32 %v2486, %v2481
  %v2507 = vmul.f32 %v2486, %v2271
  %v2508 = vadd.f32 %v2494, 0.5
  %v2509 = vmul.f32 %v2490, %v2375
  %v2510 = vadd.f32 %v2508, %v2509
  %v2511 = vmul.f32 %v2490, %v2482
  %v2512 = vadd.f32 %v2495, %v2511
  %v2513 = vmul.f32 %v2490, %v2483
  %v2514 = vadd.f32 %v2494, %v2513
  %v2515 = vmul.f32 %v2490, %v2484
  %v2516 = vadd.f32 %v2496, %v2515
  %v2517 = vmul.f32 %v2488, %v2481
  %v2518 = vadd.f32 %v2517, 0.5
  %v2519 = vmul.f32 %v2491, %v2482
  %v2520 = vadd.f32 %v2518, %v2519
  %v2521 = vmul.f32 %v2491, %v2483
  %v2522 = vadd.f32 %v2495, %v2521
  %v2523 = vmul.f32 %v2488, %v2271
  %v2524 = vmul.f32 %v2491, %v2484
  %v2525 = vadd.f32 %v2523, %v2524
  %v2526 = vmul.f32 %v2492, %v2483
  %v2527 = vadd.f32 %v2494, %v2526
  %v2528 = vadd.f32 %v2527, 0.33333334
  %v2529 = vmul.f32 %v2492, %v2484
  %v2530 = vadd.f32 %v2496, %v2529
  %v2531 = vmul.f32 %v2489, %v2271
  %v2532 = vmul.f32 %v2493, %v2484
  %v2533 = vadd.f32 %v2531, %v2532
  %v2534 = vmul.f32 %v2063, %v2063
  %v2535 = vmul.f32 %v2064, %v2064
  %v2536 = vmul.f32 %v2534, %v2271
  %v2537 = vmul.f32 %v2534, %v2168
  %v2538 = vmul.f32 %v2535, %v2484
  %v2539 = vmul.f32 %v2535, %v2483
  %v2540 = vmul.f32 %v2536, 0.5
  %v2541 = vmul.f32 %v2537, 0.5
  %v2542 = vsub.f32 %v2541, 9.8
  %v2543 = vmul.f32 %v2538, 0.5
  %v2544 = vadd.f32 %v2536, %v2543
  %v2545 = vmul.f32 %v2539, 0.5
  %v2546 = vadd.f32 %v2537, %v2545
  %v2547 = vsub.f32 %v2546, 9.8
  %v2548 = vadd.f32 %v2536, %v2538
  %v2549 = vsub.f32 0.0, %v2537
  %v2550 = vsub.f32 %v2549, %v2539
  %v2551 = vrcp.pop %v2498
  %v2552 = vmul.f32 1.0, %v2551
  %v2553 = vmul.f32 %v2499, %v2552
  %v2554 = vmul.f32 %v2553, %v2499
  %v2555 = vsub.f32 %v2504, %v2554
  %v2556 = vmul.f32 %v2553, %v2500
  %v2557 = vsub.f32 %v2505, %v2556
  %v2558 = vmul.f32 %v2553, %v2501
  %v2559 = vsub.f32 %v2506, %v2558
  %v2560 = vmul.f32 %v2553, %v2502
  %v2561 = vsub.f32 %v2507, %v2560
  %v2562 = vmul.f32 %v2553, %v2540
  %v2563 = vsub.f32 %v2542, %v2562
  %v2564 = vmul.f32 %v2500, %v2552
  %v2565 = vmul.f32 %v2564, %v2500
  %v2566 = vsub.f32 %v2510, %v2565
  %v2567 = vmul.f32 %v2564, %v2501
  %v2568 = vsub.f32 %v2512, %v2567
  %v2569 = vsub.f32 %v2514, %v2565
  %v2570 = vmul.f32 %v2564, %v2502
  %v2571 = vsub.f32 %v2516, %v2570
  %v2572 = vmul.f32 %v2564, %v2540
  %v2573 = vsub.f32 %v2544, %v2572
  %v2574 = vmul.f32 %v2501, %v2552
  %v2575 = vmul.f32 %v2574, %v2501
  %v2576 = vsub.f32 %v2520, %v2575
  %v2577 = vmul.f32 %v2574, %v2500
  %v2578 = vsub.f32 %v2522, %v2577
  %v2579 = vmul.f32 %v2574, %v2502
  %v2580 = vsub.f32 %v2525, %v2579
  %v2581 = vmul.f32 %v2574, %v2540
  %v2582 = vsub.f32 %v2547, %v2581
  %v2583 = vsub.f32 %v2528, %v2565
  %v2584 = vsub.f32 %v2530, %v2570
  %v2585 = vsub.f32 %v2548, %v2572
  %v2586 = vmul.f32 %v2502, %v2552
  %v2587 = vmul.f32 %v2586, %v2502
  %v2588 = vsub.f32 %v2533, %v2587
  %v2589 = vmul.f32 %v2586, %v2540
  %v2590 = vsub.f32 %v2550, %v2589
  %v2591 = vrcp.pop %v2555
  %v2592 = vmul.f32 1.0, %v2591
  %v2593 = vmul.f32 %v2557, %v2592
  %v2594 = vmul.f32 %v2593, %v2557
  %v2595 = vsub.f32 %v2566, %v2594
  %v2596 = vmul.f32 %v2593, %v2559
  %v2597 = vsub.f32 %v2568, %v2596
  %v2598 = vsub.f32 %v2569, %v2594
  %v2599 = vmul.f32 %v2593, %v2561
  %v2600 = vsub.f32 %v2571, %v2599
  %v2601 = vmul.f32 %v2593, %v2563
  %v2602 = vsub.f32 %v2573, %v2601
  %v2603 = vmul.f32 %v2559, %v2592
  %v2604 = vmul.f32 %v2603, %v2559
  %v2605 = vsub.f32 %v2576, %v2604
  %v2606 = vmul.f32 %v2603, %v2557
  %v2607 = vsub.f32 %v2578, %v2606
  %v2608 = vmul.f32 %v2603, %v2561
  %v2609 = vsub.f32 %v2580, %v2608
  %v2610 = vmul.f32 %v2603, %v2563
  %v2611 = vsub.f32 %v2582, %v2610
  %v2612 = vsub.f32 %v2583, %v2594
  %v2613 = vsub.f32 %v2584, %v2599
  %v2614 = vsub.f32 %v2585, %v2601
  %v2615 = vmul.f32 %v2561, %v2592
  %v2616 = vmul.f32 %v2615, %v2561
  %v2617 = vsub.f32 %v2588, %v2616
  %v2618 = vmul.f32 %v2615, %v2563
  %v2619 = vsub.f32 %v2590, %v2618
  %v2620 = vrcp.pop %v2595
  %v2621 = vmul.f32 1.0, %v2620
  %v2622 = vmul.f32 %v2597, %v2621
  %v2623 = vmul.f32 %v2622, %v2597
  %v2624 = vsub.f32 %v2605, %v2623
  %v2625 = vmul.f32 %v2622, %v2598
  %v2626 = vsub.f32 %v2607, %v2625
  %v2627 = vmul.f32 %v2622, %v2600
  %v2628 = vsub.f32 %v2609, %v2627
  %v2629 = vmul.f32 %v2622, %v2602
  %v2630 = vsub.f32 %v2611, %v2629
  %v2631 = vmul.f32 %v2598, %v2621
  %v2632 = vmul.f32 %v2631, %v2598
  %v2633 = vsub.f32 %v2612, %v2632
  %v2634 = vmul.f32 %v2631, %v2600
  %v2635 = vsub.f32 %v2613, %v2634
  %v2636 = vmul.f32 %v2631, %v2602
  %v2637 = vsub.f32 %v2614, %v2636
  %v2638 = vmul.f32 %v2600, %v2621
  %v2639 = vmul.f32 %v2638, %v2600
  %v2640 = vsub.f32 %v2617, %v2639
  %v2641 = vmul.f32 %v2638, %v2602
  %v2642 = vsub.f32 %v2619, %v2641
  %v2643 = vrcp.pop %v2624
  %v2644 = vmul.f32 1.0, %v2643
  %v2645 = vmul.f32 %v2626, %v2644
  %v2646 = vmul.f32 %v2645, %v2626
  %v2647 = vsub.f32 %v2633, %v2646
  %v2648 = vmul.f32 %v2645, %v2628
  %v2649 = vsub.f32 %v2635, %v2648
  %v2650 = vmul.f32 %v2645, %v2630
  %v2651 = vsub.f32 %v2637, %v2650
  %v2652 = vmul.f32 %v2628, %v2644
  %v2653 = vmul.f32 %v2652, %v2628
  %v2654 = vsub.f32 %v2640, %v2653
  %v2655 = vmul.f32 %v2652, %v2630
  %v2656 = vsub.f32 %v2642, %v2655
  %v2657 = vrcp.pop %v2647
  %v2658 = vmul.f32 1.0, %v2657
  %v2659 = vmul.f32 %v2649, %v2658
  %v2660 = vmul.f32 %v2659, %v2649
  %v2661 = vsub.f32 %v2654, %v2660
  %v2662 = vmul.f32 %v2659, %v2651
  %v2663 = vsub.f32 %v2656, %v2662
  %v2664 = vrcp.pop %v2661
  %v2665 = vmul.f32 1.0, %v2664
  %v2666 = vmul.f32 %v2663, %v2665
  %v2667 = vmul.f32 %v2649, %v2666
  %v2668 = vsub.f32 %v2651, %v2667
  %v2669 = vmul.f32 %v2668, %v2658
  %v2670 = vmul.f32 %v2626, %v2669
  %v2671 = vsub.f32 %v2630, %v2670
  %v2672 = vmul.f32 %v2628, %v2666
  %v2673 = vsub.f32 %v2671, %v2672
  %v2674 = vmul.f32 %v2673, %v2644
  %v2675 = vmul.f32 %v2597, %v2674
  %v2676 = vsub.f32 %v2602, %v2675
  %v2677 = vmul.f32 %v2598, %v2669
  %v2678 = vsub.f32 %v2676, %v2677
  %v2679 = vmul.f32 %v2600, %v2666
  %v2680 = vsub.f32 %v2678, %v2679
  %v2681 = vmul.f32 %v2680, %v2621
  %v2682 = vmul.f32 %v2557, %v2681
  %v2683 = vsub.f32 %v2563, %v2682
  %v2684 = vmul.f32 %v2559, %v2674
  %v2685 = vsub.f32 %v2683, %v2684
  %v2686 = vmul.f32 %v2557, %v2669
  %v2687 = vsub.f32 %v2685, %v2686
  %v2688 = vmul.f32 %v2561, %v2666
  %v2689 = vsub.f32 %v2687, %v2688
  %v2690 = vmul.f32 %v2689, %v2592
  %v2691 = vmul.f32 %v2499, %v2690
  %v2692 = vsub.f32 %v2540, %v2691
  %v2693 = vmul.f32 %v2500, %v2681
  %v2694 = vsub.f32 %v2692, %v2693
  %v2695 = vmul.f32 %v2501, %v2674
  %v2696 = vsub.f32 %v2694, %v2695
  %v2697 = vmul.f32 %v2500, %v2669
  %v2698 = vsub.f32 %v2696, %v2697
  %v2699 = vmul.f32 %v2502, %v2666
  %v2700 = vsub.f32 %v2698, %v2699
  %v2701 = vmul.f32 %v2700, %v2552
  %v2702 = vmul.f32 %v2479, %v2701
  %v2703 = vmul.f32 %v2480, %v2690
  %v2704 = vadd.f32 %v2702, %v2703
  %v2705 = vadd.f32 %v2681, %v2669
  %v2706 = vmul.f32 %v2168, %v2705
  %v2707 = vadd.f32 %v2704, %v2706
  %v2708 = vmul.f32 %v2481, %v2674
  %v2709 = vadd.f32 %v2707, %v2708
  %v2710 = vmul.f32 %v2271, %v2666
  %v2711 = vadd.f32 %v2709, %v2710
  %v2712 = vmul.f32 %v2375, %v2681
  %v2713 = vmul.f32 %v2482, %v2674
  %v2714 = vadd.f32 %v2712, %v2713
  %v2715 = vmul.f32 %v2483, %v2669
  %v2716 = vadd.f32 %v2714, %v2715
  %v2717 = vmul.f32 %v2484, %v2666
  %v2718 = vadd.f32 %v2716, %v2717
  %v2719 = vmul.f32 %v2701, -1.0
  %2720 = vst [vmem:[%s1 + $0x18] sm:$0xff] %v2719
  %v2721 = vsub.f32 -9.8, %v2690
  %2722 = vst [vmem:[%s673 + $0x18] sm:$0xff] %v2721
  %v2723 = vmul.f32 %v2711, -12.0
  %2724 = vst [vmem:[%s676 + $0x18] sm:$0xff] %v2723
  %v2725 = vmul.f32 %v2681, -0.5
  %2726 = vst [vmem:[%s679 + $0x18] sm:$0xff] %v2725
  %v2727 = vmul.f32 %v2674, 0.5
  %v2728 = vsub.f32 -9.8, %v2727
  %2729 = vst [vmem:[%s683 + $0x18] sm:$0xff] %v2728
  %v2730 = vmul.f32 %v2718, -1.5
  %2731 = vst [vmem:[%s686 + $0x18] sm:$0xff] %v2730
  %v2732 = vmul.f32 %v2669, -0.33333334
  %2733 = vst [vmem:[%s689 + $0x18] sm:$0xff] %v2732
  %2734 = vst [vmem:[%s691 + $0x18] sm:$0xff] %v2701
  %2735 = vst [vmem:[%s693 + $0x18] sm:$0xff] %v2690
  %2736 = vst [vmem:[%s695 + $0x18] sm:$0xff] %v2681
  %2737 = vst [vmem:[%s697 + $0x18] sm:$0xff] %v2674
  %2738 = vst [vmem:[%s699 + $0x18] sm:$0xff] %v2669
  %2739 = vst [vmem:[%s701 + $0x18] sm:$0xff] %v2666
  // Predicated region
  $region6: #{slider_crank_dae.1} parent=0 // pred_check
    _
  $region7: #{slider_crank_dae.1} parent=0 // pred_check_branch
    %2741 = sbr.rel (0) target = $region9
  $region8: #{slider_crank_dae.1} parent=0 // pred_region
    _
  $region9: #{slider_crank_dae.1} parent=0 // pred_fallthru
    _
  // Predicated region
  $region10: #{slider_crank_dae.1} parent=0 // pred_check
    _
  $region11: #{slider_crank_dae.1} parent=0 // pred_check_branch
    %2743 = sbr.rel (0) target = $region13
  $region12: #{slider_crank_dae.1} parent=0 // pred_region
    _
  $region13: #{slider_crank_dae.1} parent=0 // pred_fallthru
    _

</llo_original>
